<compile_context>
chip_gen: v7x
topology: tpu7x:2x2x1
jax: 0.10.0
libtpu: 0.0.40
codegen_flags: <defaults>
</compile_context>

<pallas_src>
import functools
import math

import jax
import jax.numpy as jnp
from jax.experimental import pallas as pl
from jax.experimental.pallas import tpu as pltpu


def _fused_conv_kernel(x_ref, w_ref, b_ref, o_ref, *, kh, kw, stride,
                       tile_oh, ow, apply_relu, negative_slope):
    """One (batch, OH-tile) grid step of the fused-im2col convolution.

    x_ref : (H, W, Cin)          full padded NHWC image (VMEM resident, per batch elem)
    w_ref : (KH*KW*Cin, Cout)    tap-major weight matrix
    b_ref : (1, Cout)            f32 bias row (zeros when bn=True)
    o_ref : (tile_oh, OW, Cout)  output tile
    """
    cin = x_ref.shape[-1]
    cout = o_ref.shape[-1]
    t = pl.program_id(1)
    # First input row touched by this OH tile (exact: OH % tile_oh == 0, no clamping).
    h0 = pl.multiple_of(t * (tile_oh * stride), tile_oh * stride)

    # Fused im2col: slice the (tile_oh, OW, Cin) window of every tap (i, j) straight
    # out of the resident image and concatenate along channels -> K = KH*KW*Cin.
    cols = []
    for i in range(kh):
        row_ds = (pl.ds(h0 + i, tile_oh) if stride == 1
                  else pl.ds(h0 + i, tile_oh, stride=stride))
        for j in range(kw):
            col_ds = (pl.ds(j, ow) if stride == 1
                      else pl.ds(j, ow, stride=stride))
            cols.append(x_ref[row_ds, col_ds, :])          # (tile_oh, OW, Cin)
    patch = cols[0] if len(cols) == 1 else jnp.concatenate(cols, axis=-1)
    patch = patch.reshape(tile_oh * ow, kh * kw * cin)     # M = tile_oh*OW, K = KH*KW*Cin

    # One MXU pass per tile, f32 accumulation, fused bias + LeakyReLU epilogue.
    acc = jnp.dot(patch, w_ref[...], preferred_element_type=jnp.float32)
    acc = acc + b_ref[...].astype(jnp.float32)
    if apply_relu:
        acc = jnp.where(acc >= 0, acc, negative_slope * acc)       # LeakyReLU(0.1)
    o_ref[...] = acc.astype(o_ref.dtype).reshape(tile_oh, ow, cout)


def _vmem_bytes(shape, itemsize):
    """Rough VMEM footprint: last two dims padded to the (8, 128) tile grid."""
    s = list(shape)
    s[-1] = -(-s[-1] // 128) * 128
    if len(s) >= 2:
        s[-2] = -(-s[-2] // 8) * 8
    total = itemsize
    for d in s:
        total *= d
    return total


class Conv2dPallas:
    """JAX/Pallas equivalent of src/network/base.py::Conv2d."""

    def __init__(self, in_channels, out_channels, kernel_size, stride=1,
                 relu=True, same_padding=False, bn=False, *, key,
                 matmul_dtype=jnp.bfloat16):
        self.in_channels = in_channels
        self.out_channels = out_channels
        self.kernel_size = kernel_size
        self.stride = stride
        self.padding = int((kernel_size - 1) / 2) if same_padding else 0
        self.use_relu = relu
        self.use_bn = bn
        self.negative_slope = 0.1
        self.bn_eps = 0.001
        # bf16 MXU inputs + bf16 stores, f32 accumulation/epilogue by default;
        # matmul_dtype=jnp.float32 gives f32 parity with PyTorch.
        self.matmul_dtype = matmul_dtype

        k_w, k_b = jax.random.split(key)
        # xavier_normal_ on the conv weight (Cout, Cin, KH, KW)
        fan_in = in_channels * kernel_size * kernel_size
        fan_out = out_channels * kernel_size * kernel_size
        std = math.sqrt(2.0 / (fan_in + fan_out))
        self.weight = std * jax.random.normal(
            k_w, (out_channels, in_channels, kernel_size, kernel_size), jnp.float32)

        if not bn:
            # PyTorch Conv2d default bias init: U(-1/sqrt(fan_in), 1/sqrt(fan_in))
            bound = 1.0 / math.sqrt(fan_in)
            self.bias = jax.random.uniform(
                k_b, (out_channels,), jnp.float32, minval=-bound, maxval=bound)
        else:
            self.bias = None
            # BatchNorm2d(affine=True) default params
            self.gamma = jnp.ones((out_channels,), jnp.float32)
            self.beta = jnp.zeros((out_channels,), jnp.float32)

    def __call__(self, x_nchw):
        n, c, h, w = x_nchw.shape
        k = self.kernel_size
        s = self.stride

        # Cast to the MXU dtype FIRST so pad/transpose move bf16 instead of f32.
        if x_nchw.dtype != self.matmul_dtype:
            x_nchw = x_nchw.astype(self.matmul_dtype)
        if self.padding > 0:
            x_nchw = jnp.pad(
                x_nchw,
                ((0, 0), (0, 0),
                 (self.padding, self.padding), (self.padding, self.padding)))
            h += 2 * self.padding
            w += 2 * self.padding
        x_nhwc = jnp.transpose(x_nchw, (0, 2, 3, 1))       # NCHW -> NHWC

        oh = (h - k) // s + 1
        ow = (w - k) // s + 1
        cout = self.out_channels
        out_dtype = jnp.dtype(self.matmul_dtype)
        in_item = jnp.dtype(self.matmul_dtype).itemsize
        out_item = out_dtype.itemsize

        # weight (Cout, Cin, KH, KW) -> (KH*KW*Cin, Cout), matching the in-kernel
        # concat order (kh outer, kw middle, channel innermost).
        w_mat = jnp.transpose(self.weight, (2, 3, 1, 0)).reshape(k * k * c, cout)
        w_mat = w_mat.astype(self.matmul_dtype)
        bias_vec = (self.bias if self.bias is not None
                    else jnp.zeros((cout,), jnp.float32))
        b_row = bias_vec.reshape(1, cout).astype(jnp.float32)

        # OH tiling: largest divisor of OH with M = tile_oh*OW in an MXU-friendly range
        # and the per-tile patch/acc/output footprint bounded. No OH padding at all.
        per_row_bytes = ow * (k * k * c * in_item + cout * (4 + out_item))
        tile_oh = 1
        for d in range(1, oh + 1):
            if oh % d == 0 and d * ow <= 512 and d * per_row_bytes <= (8 << 20):
                tile_oh = d
        n_oh_tiles = oh // tile_oh

        # BN (if enabled) sits between conv and relu -> relu fused only when bn is off.
        fuse_relu = self.use_relu and not self.use_bn

        kernel = functools.partial(
            _fused_conv_kernel,
            kh=k, kw=k, stride=s, tile_oh=tile_oh, ow=ow,
            apply_relu=fuse_relu, negative_slope=self.negative_slope)

        # VMEM budget: double-buffered image/weight/bias/output + in-kernel temporaries;
        # generation-aware cap, never clamped below the computed need.
        vmem_need = (2 * _vmem_bytes((h, w, c), in_item)              # resident image
                     + 2 * _vmem_bytes((k * k * c, cout), in_item)    # weights
                     + 2 * _vmem_bytes((1, cout), 4)                  # bias
                     + 2 * _vmem_bytes((tile_oh, ow, cout), out_item)   # output tile
                     + _vmem_bytes((tile_oh * ow, k * k * c), in_item)  # patch temp
                     + 2 * _vmem_bytes((tile_oh * ow, cout), 4))        # f32 acc temps
        try:
            vmem_cap = int(getattr(pltpu.get_tpu_info(), "vmem_capacity_bytes",
                                   64 << 20))
        except Exception:
            vmem_cap = 64 << 20
        usable = max(16 << 20, (vmem_cap * 3) // 4)
        vmem_limit = int(min(max(vmem_need + (4 << 20), 16 << 20), usable))

        y_nhwc = pl.pallas_call(
            kernel,
            out_shape=jax.ShapeDtypeStruct((n, oh, ow, cout), out_dtype),
            grid_spec=pltpu.PrefetchScalarGridSpec(
                num_scalar_prefetch=0,
                grid=(n, n_oh_tiles),
                in_specs=[
                    # Full image per batch element; block index constant over the
                    # OH-tile axis so the pipeline keeps it VMEM-resident.
                    pl.BlockSpec((None, h, w, c), lambda b, t: (b, 0, 0, 0)),
                    pl.BlockSpec((k * k * c, cout), lambda b, t: (0, 0)),
                    pl.BlockSpec((1, cout), lambda b, t: (0, 0)),
                ],
                out_specs=pl.BlockSpec((None, tile_oh, ow, cout),
                                       lambda b, t: (b, t, 0, 0)),
            ),
            compiler_params=pltpu.CompilerParams(
                dimension_semantics=("parallel", "parallel"),
                vmem_limit_bytes=vmem_limit),
        )(x_nhwc, w_mat, b_row)

        if self.use_bn:
            # TODO(synk): fold the per-channel sum / sum-of-squares reduction into the
            # conv kernel (extra accumulated outputs) to save one HBM read pass; this is
            # training-mode batch-stat BatchNorm (no running_mean/var tracking).
            y32 = y_nhwc.astype(jnp.float32)
            mean = jnp.mean(y32, axis=(0, 1, 2), keepdims=True)
            var = jnp.var(y32, axis=(0, 1, 2), keepdims=True)
            y32 = (y32 - mean) * jax.lax.rsqrt(var + self.bn_eps)
            y32 = (y32 * self.gamma.reshape(1, 1, 1, -1)
                   + self.beta.reshape(1, 1, 1, -1))
            if self.use_relu:
                y32 = jnp.where(y32 >= 0, y32, self.negative_slope * y32)
            y_nhwc = y32

        # NHWC -> NCHW at the module boundary (PyTorch-facing layout, f32).
        return jnp.transpose(y_nhwc, (0, 3, 1, 2)).astype(jnp.float32)


def _reference_forward(mod, x_nchw):
    """Pure-JAX f32 reference (lax conv) for correctness checking."""
    y = jax.lax.conv_general_dilated(
        x_nchw, mod.weight,
        window_strides=(mod.stride, mod.stride),
        padding=[(mod.padding, mod.padding), (mod.padding, mod.padding)],
        dimension_numbers=("NCHW", "OIHW", "NCHW"))
    if mod.bias is not None:
        y = y + mod.bias.reshape(1, -1, 1, 1)
    if mod.use_bn:
        mean = jnp.mean(y, axis=(0, 2, 3), keepdims=True)
        var = jnp.var(y, axis=(0, 2, 3), keepdims=True)
        y = (y - mean) / jnp.sqrt(var + mod.bn_eps)
        y = y * mod.gamma.reshape(1, -1, 1, 1) + mod.beta.reshape(1, -1, 1, 1)
    if mod.use_relu:
        y = jnp.where(y >= 0, y, mod.negative_slope * y)
    return y


if __name__ == "__main__":
    key = jax.random.PRNGKey(0)
    k_param, k_x = jax.random.split(key)

    # Conv2d(4, 8, 3) with defaults: stride=1, LeakyReLU(0.1), no padding, no BN (bias on).
    mod = Conv2dPallas(in_channels=4, out_channels=8, kernel_size=3,
                       stride=1, relu=True, same_padding=False, bn=False,
                       key=k_param)
    x = jax.random.normal(k_x, (2, 4, 16, 16), jnp.float32)   # NCHW

    # Default fast path: bf16 MXU inputs/stores, f32 accumulation + epilogue.
    y = jax.block_until_ready(mod(x))
    y_ref = jax.block_until_ready(_reference_forward(mod, x))
    assert y.shape == (2, 8, 14, 14), y.shape
    assert jnp.allclose(y, y_ref, atol=5e-2, rtol=5e-2), \
        float(jnp.max(jnp.abs(y - y_ref)))

    # Exact-parity path: f32 matmul inputs/outputs.
    mod.matmul_dtype = jnp.float32
    y32 = jax.block_until_ready(mod(x))
    assert jnp.allclose(y32, y_ref, atol=1e-4, rtol=1e-4), \
        float(jnp.max(jnp.abs(y32 - y_ref)))

    # bn=True branch: conv-only kernel + NHWC BatchNorm/LeakyReLU in the wrapper.
    mod_bn = Conv2dPallas(in_channels=4, out_channels=8, kernel_size=3,
                          stride=1, relu=True, same_padding=True, bn=True,
                          key=k_param, matmul_dtype=jnp.float32)
    y_bn = jax.block_until_ready(mod_bn(x))
    y_bn_ref = jax.block_until_ready(_reference_forward(mod_bn, x))
    assert y_bn.shape == (2, 8, 16, 16), y_bn.shape
    assert jnp.allclose(y_bn, y_bn_ref, atol=5e-4, rtol=5e-4), \
        float(jnp.max(jnp.abs(y_bn - y_bn_ref)))

    print("KERNEL_OK")
</pallas_src>

<mosaic_0001>
module attributes {stable_mosaic.version = 11 : i64} {
  func.func @_fused_conv_kernel(%arg0: i32, %arg1: i32, %arg2: memref<1x16x16x4xbf16, #tpu.memory_space<vmem>>, %arg3: memref<36x8xbf16, #tpu.memory_space<vmem>>, %arg4: memref<1x8xf32, #tpu.memory_space<vmem>>, %arg5: memref<1x14x14x8xbf16, #tpu.memory_space<vmem>>) attributes {dimension_semantics = [#tpu.dimension_semantics<parallel>, #tpu.dimension_semantics<parallel>], iteration_bounds = array<i64: 2, 1>, scalar_prefetch = 0 : i64, scratch_operands = 0 : i64, tpu.core_type = #tpu.core_type<tc>, window_params = [{transform_indices = @transform_0, window_bounds = array<i64: 1, 16, 16, 4>}, {pipeline_mode = #tpu.pipeline_mode<synchronous>, transform_indices = @transform_1, window_bounds = array<i64: 36, 8>}, {pipeline_mode = #tpu.pipeline_mode<synchronous>, transform_indices = @transform_2, window_bounds = array<i64: 1, 8>}, {transform_indices = @transform_3, window_bounds = array<i64: 1, 14, 14, 8>}]} {
    %c14_i32 = arith.constant 14 : i32
    %0 = arith.muli %arg1, %c14_i32 : i32
    %1 = tpu.assume_multiple %0, 14 : i32
    %c0_i32 = arith.constant 0 : i32
    %2 = arith.addi %1, %c0_i32 : i32
    %c0 = arith.constant 0 : index
    %3 = arith.index_cast %2 : i32 to index
    %c0_0 = arith.constant 0 : index
    %c0_1 = arith.constant 0 : index
    %4 = vector.load %arg2[%c0, %3, %c0_0, %c0_1] : memref<1x16x16x4xbf16, #tpu.memory_space<vmem>>, vector<1x14x14x4xbf16>
    %5 = vector.shape_cast %4 : vector<1x14x14x4xbf16> to vector<14x14x4xbf16>
    %c0_2 = arith.constant 0 : index
    %6 = arith.index_cast %2 : i32 to index
    %c1 = arith.constant 1 : index
    %c0_3 = arith.constant 0 : index
    %7 = vector.load %arg2[%c0_2, %6, %c1, %c0_3] : memref<1x16x16x4xbf16, #tpu.memory_space<vmem>>, vector<1x14x14x4xbf16>
    %8 = vector.shape_cast %7 : vector<1x14x14x4xbf16> to vector<14x14x4xbf16>
    %c0_4 = arith.constant 0 : index
    %9 = arith.index_cast %2 : i32 to index
    %c2 = arith.constant 2 : index
    %c0_5 = arith.constant 0 : index
    %10 = vector.load %arg2[%c0_4, %9, %c2, %c0_5] : memref<1x16x16x4xbf16, #tpu.memory_space<vmem>>, vector<1x14x14x4xbf16>
    %11 = vector.shape_cast %10 : vector<1x14x14x4xbf16> to vector<14x14x4xbf16>
    %c1_i32 = arith.constant 1 : i32
    %12 = arith.addi %1, %c1_i32 : i32
    %c0_6 = arith.constant 0 : index
    %13 = arith.index_cast %12 : i32 to index
    %c0_7 = arith.constant 0 : index
    %c0_8 = arith.constant 0 : index
    %14 = vector.load %arg2[%c0_6, %13, %c0_7, %c0_8] : memref<1x16x16x4xbf16, #tpu.memory_space<vmem>>, vector<1x14x14x4xbf16>
    %15 = vector.shape_cast %14 : vector<1x14x14x4xbf16> to vector<14x14x4xbf16>
    %c0_9 = arith.constant 0 : index
    %16 = arith.index_cast %12 : i32 to index
    %c1_10 = arith.constant 1 : index
    %c0_11 = arith.constant 0 : index
    %17 = vector.load %arg2[%c0_9, %16, %c1_10, %c0_11] : memref<1x16x16x4xbf16, #tpu.memory_space<vmem>>, vector<1x14x14x4xbf16>
    %18 = vector.shape_cast %17 : vector<1x14x14x4xbf16> to vector<14x14x4xbf16>
    %c0_12 = arith.constant 0 : index
    %19 = arith.index_cast %12 : i32 to index
    %c2_13 = arith.constant 2 : index
    %c0_14 = arith.constant 0 : index
    %20 = vector.load %arg2[%c0_12, %19, %c2_13, %c0_14] : memref<1x16x16x4xbf16, #tpu.memory_space<vmem>>, vector<1x14x14x4xbf16>
    %21 = vector.shape_cast %20 : vector<1x14x14x4xbf16> to vector<14x14x4xbf16>
    %c2_i32 = arith.constant 2 : i32
    %22 = arith.addi %1, %c2_i32 : i32
    %c0_15 = arith.constant 0 : index
    %23 = arith.index_cast %22 : i32 to index
    %c0_16 = arith.constant 0 : index
    %c0_17 = arith.constant 0 : index
    %24 = vector.load %arg2[%c0_15, %23, %c0_16, %c0_17] : memref<1x16x16x4xbf16, #tpu.memory_space<vmem>>, vector<1x14x14x4xbf16>
    %25 = vector.shape_cast %24 : vector<1x14x14x4xbf16> to vector<14x14x4xbf16>
    %c0_18 = arith.constant 0 : index
    %26 = arith.index_cast %22 : i32 to index
    %c1_19 = arith.constant 1 : index
    %c0_20 = arith.constant 0 : index
    %27 = vector.load %arg2[%c0_18, %26, %c1_19, %c0_20] : memref<1x16x16x4xbf16, #tpu.memory_space<vmem>>, vector<1x14x14x4xbf16>
    %28 = vector.shape_cast %27 : vector<1x14x14x4xbf16> to vector<14x14x4xbf16>
    %c0_21 = arith.constant 0 : index
    %29 = arith.index_cast %22 : i32 to index
    %c2_22 = arith.constant 2 : index
    %c0_23 = arith.constant 0 : index
    %30 = vector.load %arg2[%c0_21, %29, %c2_22, %c0_23] : memref<1x16x16x4xbf16, #tpu.memory_space<vmem>>, vector<1x14x14x4xbf16>
    %31 = vector.shape_cast %30 : vector<1x14x14x4xbf16> to vector<14x14x4xbf16>
    %32 = tpu.concatenate %5, %8, %11, %15, %18, %21, %25, %28, %31 in 2 : vector<14x14x4xbf16>, vector<14x14x4xbf16>, vector<14x14x4xbf16>, vector<14x14x4xbf16>, vector<14x14x4xbf16>, vector<14x14x4xbf16>, vector<14x14x4xbf16>, vector<14x14x4xbf16>, vector<14x14x4xbf16> -> vector<14x14x36xbf16>
    %33 = vector.shape_cast %32 : vector<14x14x36xbf16> to vector<196x36xbf16>
    %c0_24 = arith.constant 0 : index
    %c0_25 = arith.constant 0 : index
    %34 = vector.load %arg3[%c0_24, %c0_25] : memref<36x8xbf16, #tpu.memory_space<vmem>>, vector<36x8xbf16>
    %cst = arith.constant dense<0.000000e+00> : vector<196x8xf32>
    %35 = tpu.matmul %33, %34, %cst {dimension_numbers = #tpu.dot_dimension_numbers<[1], [0], [0], [1], [0, 0, 1, 1], [], []>} : vector<196x36xbf16>, vector<36x8xbf16>, vector<196x8xf32> -> vector<196x8xf32>
    %c0_26 = arith.constant 0 : index
    %c0_27 = arith.constant 0 : index
    %36 = vector.load %arg4[%c0_26, %c0_27] : memref<1x8xf32, #tpu.memory_space<vmem>>, vector<1x8xf32>
    %37 = vector.broadcast %36 : vector<1x8xf32> to vector<196x8xf32>
    %38 = arith.addf %35, %37 : vector<196x8xf32>
    %cst_28 = arith.constant 0.000000e+00 : f32
    %39 = vector.broadcast %cst_28 : f32 to vector<196x8xf32>
    %40 = arith.cmpf oge, %38, %39 : vector<196x8xf32>
    %cst_29 = arith.constant 1.000000e-01 : f32
    %41 = vector.broadcast %cst_29 : f32 to vector<196x8xf32>
    %42 = arith.mulf %41, %38 : vector<196x8xf32>
    %43 = arith.select %40, %38, %42 : vector<196x8xi1>, vector<196x8xf32>
    %44 = arith.truncf %43 : vector<196x8xf32> to vector<196x8xbf16>
    %45 = vector.shape_cast %44 : vector<196x8xbf16> to vector<14x14x8xbf16>
    %c0_30 = arith.constant 0 : index
    %c0_31 = arith.constant 0 : index
    %c0_32 = arith.constant 0 : index
    %c0_33 = arith.constant 0 : index
    %46 = vector.load %arg5[%c0_30, %c0_31, %c0_32, %c0_33] : memref<1x14x14x8xbf16, #tpu.memory_space<vmem>>, vector<1x14x14x8xbf16>
    %47 = vector.shape_cast %46 : vector<1x14x14x8xbf16> to vector<14x14x8xbf16>
    %48 = vector.shape_cast %45 : vector<14x14x8xbf16> to vector<1x14x14x8xbf16>
    tpu.vector_store %arg5[%c0_30, %c0_31, %c0_32, %c0_33], %48 {strides = array<i32>} : memref<1x14x14x8xbf16, #tpu.memory_space<vmem>>, vector<1x14x14x8xbf16>,
    return
  }
  func.func @transform_0(%arg0: i32, %arg1: i32) -> (i32, i32, i32, i32) {
    %c0_i32 = arith.constant 0 : i32
    %c0_i32_0 = arith.constant 0 : i32
    %c0_i32_1 = arith.constant 0 : i32
    %c0_i32_2 = arith.constant 0 : i32
    return %arg0, %c0_i32, %c0_i32_0, %c0_i32_1 : i32, i32, i32, i32
  }
  func.func @transform_1(%arg0: i32, %arg1: i32) -> (i32, i32) {
    %c0_i32 = arith.constant 0 : i32
    %c0_i32_0 = arith.constant 0 : i32
    %c0_i32_1 = arith.constant 0 : i32
    return %c0_i32, %c0_i32_0 : i32, i32
  }
  func.func @transform_2(%arg0: i32, %arg1: i32) -> (i32, i32) {
    %c0_i32 = arith.constant 0 : i32
    %c0_i32_0 = arith.constant 0 : i32
    %c0_i32_1 = arith.constant 0 : i32
    return %c0_i32, %c0_i32_0 : i32, i32
  }
  func.func @transform_3(%arg0: i32, %arg1: i32) -> (i32, i32, i32, i32) {
    %c0_i32 = arith.constant 0 : i32
    %c0_i32_0 = arith.constant 0 : i32
    %c0_i32_1 = arith.constant 0 : i32
    return %arg0, %arg1, %c0_i32, %c0_i32_0 : i32, i32, i32, i32
  }
}

</mosaic_0001>

<llo_original>
// kernel: tpu_custom_call.1
$region0: #{tpu_custom_call.1}
  #allocation0 [shape = 'u32[]', space=smem, size = 0x4, offset = 0x4, fixed_abs, tag = 'smem constant byte address 0x4 - core index']
  #allocation1 [shape = 'u32[144,128]{1,0:T(1,128)}', space=vmem, size = 0x12000, scoped, tag = 'internal scratch']
  %s0 = inlined_call_operand.vmem [shape: bf16[2,16,16,4], index: 0, kind: input, shape index: {}]
  %s1 = inlined_call_operand.vmem [shape: bf16[36,8], index: 1, kind: input, shape index: {}]
  %s2 = inlined_call_operand.vmem [shape: f32[1,8], index: 2, kind: input, shape index: {}]
  %s3 = inlined_call_operand.vmem [shape: bf16[2,14,14,8], index: 3, kind: output, shape index: {}]
  %s4 = sld [smem:[#allocation0]]
  $region45: #{tpu_custom_call.1} parent=0
    _
  %s6 = ssub.s32 1, %s4
  %s7 = scalar_select 0, %s6, %s4
  loop: start=0, step=1, limit=4
  $region2: #{tpu_custom_call.1} parent=0 // loop_pre_header
    _
  $region3: #{tpu_custom_call.1} parent=0 // loop_header
    %s9 = sphi 0, %s13
    %p10 = scmp.ge.s32.totalorder %s9, 4
    %s16 = sphi 0, %s28
    %s17 = sphi 0, %s24
    %s18 = sphi 0, %s16
    %s19 = sphi 0, %s17
    %s20 = sphi 0, %s18
    %s21 = sphi 0, %s19
    %s31 = sphi 0, %s33
    %s34 = sphi 0, %s31
    %s35 = sphi 0, %s34
    %s51 = sphi 0, %s35
    %s55 = sphi 0, %s55
    %s57 = sphi 0, %s55
    %s58 = sphi 0, %s57
    %s72 = sphi 0, %s58
    %s76 = sphi 0, %s76
    %s78 = sphi 0, %s76
    %s79 = sphi 0, %s78
    %s93 = sphi 0, %s79
    %s101 = sphi 0, %s103
    %s104 = sphi 0, %s101
    %s105 = sphi 0, %s104
    %s121 = sphi 0, %s105
  $region4: #{tpu_custom_call.1} parent=0 // loop_header_branch
    %12 = sbr.rel (%p10) target = $region8
  $region5: #{tpu_custom_call.1} parent=0 // loop_body
    %s14 = ssub.s32 %s9, 1
    %s15 = ssub.s32 %s9, 2
    %s22 = sadd.s32 1, %s17
    %p23 = scmp.ge.s32.totalorder %s22, 1
    %s24 = scalar_select %p23, 0, %s22
    %s25 = sadd.s32 1, %s16
    %s26 = scalar_select %p23, %s25, %s16
    %p27 = scmp.ge.s32.totalorder %s26, 2
    %s28 = scalar_select %p27, 0, %s26
    %s29 = ssub.s32 %s16, %s28
    %p30 = scmp.eq.s32.totalorder %s29, 0
    %s32 = sadd.s32 %s31, 1
    %s33 = scalar_select %p30, %s31, %s32
    %p36 = pneg %p30
    %p37 = scmp.eq.s32.totalorder %s9, 1
    %p38 = por %p36, %p37
    %p39 = scmp.ne.s32.totalorder %s31, %s34
    %p40 = scmp.eq.s32.totalorder %s9, 0
    %p41 = por %p39, %p40
    %p42 = scmp.ne.s32.totalorder %s31, %s34
    %p43 = scmp.eq.s32.totalorder %s14, 1
    %p44 = por %p42, %p43
    %p45 = scmp.ne.s32.totalorder %s34, %s35
    %p46 = scmp.eq.s32.totalorder %s14, 0
    %p47 = por %p45, %p46
    %p48 = scmp.ne.s32.totalorder %s34, %s35
    %p49 = scmp.eq.s32.totalorder %s15, 1
    %p50 = por %p48, %p49
    %p52 = scmp.ne.s32.totalorder %s35, %s51
    %p53 = scmp.eq.s32.totalorder %s15, 0
    %p54 = por %p52, %p53
    %s56 = sadd.s32 %s55, 1
    %p59 = scmp.eq.s32.totalorder %s9, 1
    %p60 = scmp.ne.s32.totalorder %s55, %s57
    %p61 = scmp.eq.s32.totalorder %s9, 0
    %p62 = por %p60, %p61
    %p63 = scmp.ne.s32.totalorder %s55, %s57
    %p64 = scmp.eq.s32.totalorder %s14, 1
    %p65 = por %p63, %p64
    %p66 = scmp.ne.s32.totalorder %s57, %s58
    %p67 = scmp.eq.s32.totalorder %s14, 0
    %p68 = por %p66, %p67
    %p69 = scmp.ne.s32.totalorder %s57, %s58
    %p70 = scmp.eq.s32.totalorder %s15, 1
    %p71 = por %p69, %p70
    %p73 = scmp.ne.s32.totalorder %s58, %s72
    %p74 = scmp.eq.s32.totalorder %s15, 0
    %p75 = por %p73, %p74
    %s77 = sadd.s32 %s76, 1
    %p80 = scmp.eq.s32.totalorder %s9, 1
    %p81 = scmp.ne.s32.totalorder %s76, %s78
    %p82 = scmp.eq.s32.totalorder %s9, 0
    %p83 = por %p81, %p82
    %p84 = scmp.ne.s32.totalorder %s76, %s78
    %p85 = scmp.eq.s32.totalorder %s14, 1
    %p86 = por %p84, %p85
    %p87 = scmp.ne.s32.totalorder %s78, %s79
    %p88 = scmp.eq.s32.totalorder %s14, 0
    %p89 = por %p87, %p88
    %p90 = scmp.ne.s32.totalorder %s78, %s79
    %p91 = scmp.eq.s32.totalorder %s15, 1
    %p92 = por %p90, %p91
    %p94 = scmp.ne.s32.totalorder %s79, %s93
    %p95 = scmp.eq.s32.totalorder %s15, 0
    %p96 = por %p94, %p95
    %s97 = ssub.s32 %s16, %s28
    %s98 = ssub.s32 %s17, %s24
    %s99 = sor.u32 %s97, %s98
    %p100 = scmp.eq.s32.totalorder %s99, 0
    %s102 = sadd.s32 %s101, 1
    %s103 = scalar_select %p100, %s101, %s102
    %p106 = pneg %p100
    %p107 = scmp.eq.s32.totalorder %s9, 1
    %p108 = por %p106, %p107
    %p109 = scmp.ne.s32.totalorder %s101, %s104
    %p110 = scmp.eq.s32.totalorder %s9, 0
    %p111 = por %p109, %p110
    %p112 = scmp.ne.s32.totalorder %s101, %s104
    %p113 = scmp.eq.s32.totalorder %s14, 1
    %p114 = por %p112, %p113
    %p115 = scmp.ne.s32.totalorder %s104, %s105
    %p116 = scmp.eq.s32.totalorder %s14, 0
    %p117 = por %p115, %p116
    %p118 = scmp.ne.s32.totalorder %s104, %s105
    %p119 = scmp.eq.s32.totalorder %s15, 1
    %p120 = por %p118, %p119
    %p122 = scmp.ne.s32.totalorder %s105, %s121
    %p123 = scmp.eq.s32.totalorder %s15, 0
    %p124 = por %p122, %p123
    %p125 = scmp.le.s32.totalorder 1, %s9
    %p126 = scmp.lt.s32.totalorder %s9, 3
    %p127 = pnand %p125, %p126
    %p128 = pneg %p127
    // Predicated region
    $region9: #{tpu_custom_call.1} parent=5 // pred_check
      _
    $region10: #{tpu_custom_call.1} parent=5 // pred_check_branch
      %130 = sbr.rel (%p127) target = $region12
    $region11: #{tpu_custom_call.1} parent=5 // pred_region
      %s131 = ssub.s32 %s9, 1
      // Predicated region
      $region13: #{tpu_custom_call.1} parent=11 // pred_check
        %p132 = pneg %p68
      $region14: #{tpu_custom_call.1} parent=11 // pred_check_branch
        %134 = sbr.rel (%p132) target = $region16
      $region15: #{tpu_custom_call.1} parent=11 // pred_region
        _
      $region16: #{tpu_custom_call.1} parent=11 // pred_fallthru
        _
      // Predicated region
      $region17: #{tpu_custom_call.1} parent=11 // pred_check
        %p135 = pneg %p89
      $region18: #{tpu_custom_call.1} parent=11 // pred_check_branch
        %137 = sbr.rel (%p135) target = $region20
      $region19: #{tpu_custom_call.1} parent=11 // pred_region
        _
      $region20: #{tpu_custom_call.1} parent=11 // pred_fallthru
        _
    $region12: #{tpu_custom_call.1} parent=5 // pred_fallthru
      _
    %p138 = scmp.lt.s32.totalorder %s9, 2
    // Predicated region
    $region21: #{tpu_custom_call.1} parent=5 // pred_check
      %p139 = pneg %p138
    $region22: #{tpu_custom_call.1} parent=5 // pred_check_branch
      %141 = sbr.rel (%p139) target = $region24
    $region23: #{tpu_custom_call.1} parent=5 // pred_region
      // Predicated region
      $region25: #{tpu_custom_call.1} parent=23 // pred_check
        %p142 = pneg %p41
      $region26: #{tpu_custom_call.1} parent=23 // pred_check_branch
        %144 = sbr.rel (%p142) target = $region28
      $region27: #{tpu_custom_call.1} parent=23 // pred_region
        %p145 = scmp.lt.s32.totalorder %s16, 1
        %s146 = scalar_select %p145, %s16, 1
        %s147 = smul.addr %s146, 32
        %s148 = smul.addr %s147, 4
        %s149 = scalar_lea.vmem %s0, %s148
      $region28: #{tpu_custom_call.1} parent=23 // pred_fallthru
        _
    $region24: #{tpu_custom_call.1} parent=5 // pred_fallthru
      _
    %p150 = scmp.le.s32.totalorder 1, %s9
    %p151 = scmp.lt.s32.totalorder %s9, 3
    %p152 = pnand %p150, %p151
    %p153 = pneg %p152
    // Predicated region
    $region29: #{tpu_custom_call.1} parent=5 // pred_check
      _
    $region30: #{tpu_custom_call.1} parent=5 // pred_check_branch
      %155 = sbr.rel (%p152) target = $region32
    $region31: #{tpu_custom_call.1} parent=5 // pred_region
      %s156 = ssub.s32 %s9, 1
      %p157 = scmp.lt.s32.totalorder %s18, 1
      %s158 = scalar_select %p157, %s18, 1
      %s159 = smul.addr %s158, 32
      %s160 = smul.addr %s159, 4
      %s161 = scalar_lea.vmem %s0, %s160
      %p162 = pneg %p47
      %p163 = pneg %p44
      %p164 = pneg %p68
      %p165 = pneg %p65
      %p166 = pneg %p89
      %p167 = pneg %p86
      %p168 = pneg %p117
      %p169 = pneg %p114
      %s170 = smul.u32 14, %s19
      %p171 = scmp.lt.s32.totalorder %s18, 1
      %s172 = scalar_select %p171, %s18, 1
      %p173 = scmp.lt.s32.totalorder %s170, 13
      %s174 = scalar_select %p173, %s170, 13
      %s175 = smul.addr %s174, 2
      %s176 = smul.addr %s172, 28
      %s177 = sadd.s32 %s175, %s176
      %s178 = smul.addr %s177, 4
      %s179 = scalar_lea.vmem %s3, %s178
      %p180 = scmp.lt.s32.totalorder %s18, 1
      %s181 = scalar_select %p180, %s18, 1
      %s182 = smul.addr %s181, 32
      %s183 = smul.addr %s182, 4
      %s184 = scalar_lea.vmem %s0, %s183
      %s185 = smul.u32 14, %s19
      %p186 = scmp.lt.s32.totalorder %s18, 1
      %s187 = scalar_select %p186, %s18, 1
      %p188 = scmp.lt.s32.totalorder %s185, 13
      %s189 = scalar_select %p188, %s185, 13
      %s190 = smul.addr %s189, 2
      %s191 = smul.addr %s187, 28
      %s192 = sadd.s32 %s190, %s191
      %s193 = smul.addr %s192, 4
      %s194 = scalar_lea.vmem %s3, %s193
      %s195 = smul.u32 14, %s19
      %s197 = smul.u32 %s19, 14
      %s198 = smul.u32 %s197, 2
      %s199 = smul.addr %s198, 4
      %s200 = scalar_lea.vmem %s184, %s199
      %v201 = vld [vmem:[%s200] sm:$0xf]
      %v202 = vld [vmem:[%s200 + $0x4] sm:$0x7]
      %v203 = vld [vmem:[%s200 + $0x8] sm:$0xf]
      %v204 = vld [vmem:[%s200 + $0xc] sm:$0x7]
      %v205 = vld [vmem:[%s200 + $0x10] sm:$0xf]
      %v206 = vld [vmem:[%s200 + $0x14] sm:$0x7]
      %v207 = vld [vmem:[%s200 + $0x18] sm:$0xf]
      %v208 = vld [vmem:[%s200 + $0x1c] sm:$0x7]
      %v209 = vld [vmem:[%s200 + $0x20] sm:$0xf]
      %v210 = vld [vmem:[%s200 + $0x24] sm:$0x7]
      %v211 = vld [vmem:[%s200 + $0x28] sm:$0xf]
      %v212 = vld [vmem:[%s200 + $0x2c] sm:$0x7]
      %v213 = vld [vmem:[%s200 + $0x30] sm:$0xf]
      %v214 = vld [vmem:[%s200 + $0x34] sm:$0x7]
      %v215 = vld [vmem:[%s200 + $0x38] sm:$0xf]
      %v216 = vld [vmem:[%s200 + $0x3c] sm:$0x7]
      %v217 = vld [vmem:[%s200 + $0x40] sm:$0xf]
      %v218 = vld [vmem:[%s200 + $0x44] sm:$0x7]
      %v219 = vld [vmem:[%s200 + $0x48] sm:$0xf]
      %v220 = vld [vmem:[%s200 + $0x4c] sm:$0x7]
      %v221 = vld [vmem:[%s200 + $0x50] sm:$0xf]
      %v222 = vld [vmem:[%s200 + $0x54] sm:$0x7]
      %v223 = vld [vmem:[%s200 + $0x58] sm:$0xf]
      %v224 = vld [vmem:[%s200 + $0x5c] sm:$0x7]
      %v225 = vld [vmem:[%s200 + $0x60] sm:$0xf]
      %v226 = vld [vmem:[%s200 + $0x64] sm:$0x7]
      %v227 = vld [vmem:[%s200 + $0x68] sm:$0xf]
      %v228 = vld [vmem:[%s200 + $0x6c] sm:$0x7]
      %v229 = vld [vmem:[%s200 + $0x4] sm:$0xf]
      %v230 = vld [vmem:[%s200 + $0xc] sm:$0xf]
      %v231 = vld [vmem:[%s200 + $0x14] sm:$0xf]
      %v232 = vld [vmem:[%s200 + $0x1c] sm:$0xf]
      %v233 = vld [vmem:[%s200 + $0x24] sm:$0xf]
      %v234 = vld [vmem:[%s200 + $0x2c] sm:$0xf]
      %v235 = vld [vmem:[%s200 + $0x34] sm:$0xf]
      %v236 = vld [vmem:[%s200 + $0x3c] sm:$0xf]
      %v237 = vld [vmem:[%s200 + $0x44] sm:$0xf]
      %v238 = vld [vmem:[%s200 + $0x4c] sm:$0xf]
      %v239 = vld [vmem:[%s200 + $0x54] sm:$0xf]
      %v240 = vld [vmem:[%s200 + $0x5c] sm:$0xf]
      %v241 = vld [vmem:[%s200 + $0x64] sm:$0xf]
      %v242 = vld [vmem:[%s200 + $0x6c] sm:$0xf]
      %v243 = vld [vmem:[%s200] sm:$0xe]
      %v244 = vld [vmem:[%s200 + $0x8] sm:$0xe]
      %v245 = vld [vmem:[%s200 + $0x10] sm:$0xe]
      %v246 = vld [vmem:[%s200 + $0x18] sm:$0xe]
      %v247 = vld [vmem:[%s200 + $0x20] sm:$0xe]
      %v248 = vld [vmem:[%s200 + $0x28] sm:$0xe]
      %v249 = vld [vmem:[%s200 + $0x30] sm:$0xe]
      %v250 = vld [vmem:[%s200 + $0x38] sm:$0xe]
      %v251 = vld [vmem:[%s200 + $0x40] sm:$0xe]
      %v252 = vld [vmem:[%s200 + $0x48] sm:$0xe]
      %v253 = vld [vmem:[%s200 + $0x50] sm:$0xe]
      %v254 = vld [vmem:[%s200 + $0x58] sm:$0xe]
      %v255 = vld [vmem:[%s200 + $0x60] sm:$0xe]
      %v256 = vld [vmem:[%s200 + $0x68] sm:$0xe]
      %s257 = sadd.s32 %s197, 1
      %s258 = smul.u32 %s257, 2
      %s259 = smul.addr %s258, 4
      %s260 = scalar_lea.vmem %s184, %s259
      %v261 = vld [vmem:[%s260] sm:$0xf]
      %v262 = vld [vmem:[%s260 + $0x4] sm:$0x7]
      %v263 = vld [vmem:[%s260 + $0x8] sm:$0xf]
      %v264 = vld [vmem:[%s260 + $0xc] sm:$0x7]
      %v265 = vld [vmem:[%s260 + $0x10] sm:$0xf]
      %v266 = vld [vmem:[%s260 + $0x14] sm:$0x7]
      %v267 = vld [vmem:[%s260 + $0x18] sm:$0xf]
      %v268 = vld [vmem:[%s260 + $0x1c] sm:$0x7]
      %v269 = vld [vmem:[%s260 + $0x20] sm:$0xf]
      %v270 = vld [vmem:[%s260 + $0x24] sm:$0x7]
      %v271 = vld [vmem:[%s260 + $0x28] sm:$0xf]
      %v272 = vld [vmem:[%s260 + $0x2c] sm:$0x7]
      %v273 = vld [vmem:[%s260 + $0x30] sm:$0xf]
      %v274 = vld [vmem:[%s260 + $0x34] sm:$0x7]
      %v275 = vld [vmem:[%s260 + $0x38] sm:$0xf]
      %v276 = vld [vmem:[%s260 + $0x3c] sm:$0x7]
      %v277 = vld [vmem:[%s260 + $0x40] sm:$0xf]
      %v278 = vld [vmem:[%s260 + $0x44] sm:$0x7]
      %v279 = vld [vmem:[%s260 + $0x48] sm:$0xf]
      %v280 = vld [vmem:[%s260 + $0x4c] sm:$0x7]
      %v281 = vld [vmem:[%s260 + $0x50] sm:$0xf]
      %v282 = vld [vmem:[%s260 + $0x54] sm:$0x7]
      %v283 = vld [vmem:[%s260 + $0x58] sm:$0xf]
      %v284 = vld [vmem:[%s260 + $0x5c] sm:$0x7]
      %v285 = vld [vmem:[%s260 + $0x60] sm:$0xf]
      %v286 = vld [vmem:[%s260 + $0x64] sm:$0x7]
      %v287 = vld [vmem:[%s260 + $0x68] sm:$0xf]
      %v288 = vld [vmem:[%s260 + $0x6c] sm:$0x7]
      %v289 = vld [vmem:[%s260 + $0x4] sm:$0xf]
      %v290 = vld [vmem:[%s260 + $0xc] sm:$0xf]
      %v291 = vld [vmem:[%s260 + $0x14] sm:$0xf]
      %v292 = vld [vmem:[%s260 + $0x1c] sm:$0xf]
      %v293 = vld [vmem:[%s260 + $0x24] sm:$0xf]
      %v294 = vld [vmem:[%s260 + $0x2c] sm:$0xf]
      %v295 = vld [vmem:[%s260 + $0x34] sm:$0xf]
      %v296 = vld [vmem:[%s260 + $0x3c] sm:$0xf]
      %v297 = vld [vmem:[%s260 + $0x44] sm:$0xf]
      %v298 = vld [vmem:[%s260 + $0x4c] sm:$0xf]
      %v299 = vld [vmem:[%s260 + $0x54] sm:$0xf]
      %v300 = vld [vmem:[%s260 + $0x5c] sm:$0xf]
      %v301 = vld [vmem:[%s260 + $0x64] sm:$0xf]
      %v302 = vld [vmem:[%s260 + $0x6c] sm:$0xf]
      %v303 = vld [vmem:[%s260] sm:$0xe]
      %v304 = vld [vmem:[%s260 + $0x8] sm:$0xe]
      %v305 = vld [vmem:[%s260 + $0x10] sm:$0xe]
      %v306 = vld [vmem:[%s260 + $0x18] sm:$0xe]
      %v307 = vld [vmem:[%s260 + $0x20] sm:$0xe]
      %v308 = vld [vmem:[%s260 + $0x28] sm:$0xe]
      %v309 = vld [vmem:[%s260 + $0x30] sm:$0xe]
      %v310 = vld [vmem:[%s260 + $0x38] sm:$0xe]
      %v311 = vld [vmem:[%s260 + $0x40] sm:$0xe]
      %v312 = vld [vmem:[%s260 + $0x48] sm:$0xe]
      %v313 = vld [vmem:[%s260 + $0x50] sm:$0xe]
      %v314 = vld [vmem:[%s260 + $0x58] sm:$0xe]
      %v315 = vld [vmem:[%s260 + $0x60] sm:$0xe]
      %v316 = vld [vmem:[%s260 + $0x68] sm:$0xe]
      %s317 = sadd.s32 %s197, 2
      %s318 = smul.u32 %s317, 2
      %s319 = smul.addr %s318, 4
      %s320 = scalar_lea.vmem %s184, %s319
      %v321 = vld [vmem:[%s320] sm:$0xf]
      %v322 = vld [vmem:[%s320 + $0x4] sm:$0x7]
      %v323 = vld [vmem:[%s320 + $0x8] sm:$0xf]
      %v324 = vld [vmem:[%s320 + $0xc] sm:$0x7]
      %v325 = vld [vmem:[%s320 + $0x10] sm:$0xf]
      %v326 = vld [vmem:[%s320 + $0x14] sm:$0x7]
      %v327 = vld [vmem:[%s320 + $0x18] sm:$0xf]
      %v328 = vld [vmem:[%s320 + $0x1c] sm:$0x7]
      %v329 = vld [vmem:[%s320 + $0x20] sm:$0xf]
      %v330 = vld [vmem:[%s320 + $0x24] sm:$0x7]
      %v331 = vld [vmem:[%s320 + $0x28] sm:$0xf]
      %v332 = vld [vmem:[%s320 + $0x2c] sm:$0x7]
      %v333 = vld [vmem:[%s320 + $0x30] sm:$0xf]
      %v334 = vld [vmem:[%s320 + $0x34] sm:$0x7]
      %v335 = vld [vmem:[%s320 + $0x38] sm:$0xf]
      %v336 = vld [vmem:[%s320 + $0x3c] sm:$0x7]
      %v337 = vld [vmem:[%s320 + $0x40] sm:$0xf]
      %v338 = vld [vmem:[%s320 + $0x44] sm:$0x7]
      %v339 = vld [vmem:[%s320 + $0x48] sm:$0xf]
      %v340 = vld [vmem:[%s320 + $0x4c] sm:$0x7]
      %v341 = vld [vmem:[%s320 + $0x50] sm:$0xf]
      %v342 = vld [vmem:[%s320 + $0x54] sm:$0x7]
      %v343 = vld [vmem:[%s320 + $0x58] sm:$0xf]
      %v344 = vld [vmem:[%s320 + $0x5c] sm:$0x7]
      %v345 = vld [vmem:[%s320 + $0x60] sm:$0xf]
      %v346 = vld [vmem:[%s320 + $0x64] sm:$0x7]
      %v347 = vld [vmem:[%s320 + $0x68] sm:$0xf]
      %v348 = vld [vmem:[%s320 + $0x6c] sm:$0x7]
      %v349 = vld [vmem:[%s320 + $0x4] sm:$0xf]
      %v350 = vld [vmem:[%s320 + $0xc] sm:$0xf]
      %v351 = vld [vmem:[%s320 + $0x14] sm:$0xf]
      %v352 = vld [vmem:[%s320 + $0x1c] sm:$0xf]
      %v353 = vld [vmem:[%s320 + $0x24] sm:$0xf]
      %v354 = vld [vmem:[%s320 + $0x2c] sm:$0xf]
      %v355 = vld [vmem:[%s320 + $0x34] sm:$0xf]
      %v356 = vld [vmem:[%s320 + $0x3c] sm:$0xf]
      %v357 = vld [vmem:[%s320 + $0x44] sm:$0xf]
      %v358 = vld [vmem:[%s320 + $0x4c] sm:$0xf]
      %v359 = vld [vmem:[%s320 + $0x54] sm:$0xf]
      %v360 = vld [vmem:[%s320 + $0x5c] sm:$0xf]
      %v361 = vld [vmem:[%s320 + $0x64] sm:$0xf]
      %v362 = vld [vmem:[%s320 + $0x6c] sm:$0xf]
      %v363 = vld [vmem:[%s320] sm:$0xe]
      %v364 = vld [vmem:[%s320 + $0x8] sm:$0xe]
      %v365 = vld [vmem:[%s320 + $0x10] sm:$0xe]
      %v366 = vld [vmem:[%s320 + $0x18] sm:$0xe]
      %v367 = vld [vmem:[%s320 + $0x20] sm:$0xe]
      %v368 = vld [vmem:[%s320 + $0x28] sm:$0xe]
      %v369 = vld [vmem:[%s320 + $0x30] sm:$0xe]
      %v370 = vld [vmem:[%s320 + $0x38] sm:$0xe]
      %v371 = vld [vmem:[%s320 + $0x40] sm:$0xe]
      %v372 = vld [vmem:[%s320 + $0x48] sm:$0xe]
      %v373 = vld [vmem:[%s320 + $0x50] sm:$0xe]
      %v374 = vld [vmem:[%s320 + $0x58] sm:$0xe]
      %v375 = vld [vmem:[%s320 + $0x60] sm:$0xe]
      %v376 = vld [vmem:[%s320 + $0x68] sm:$0xe]
      %v405 = vunpack.c.l.b16 %v201
      %v406 = vunpack.c.l.b16 %v202
      %v407 = vunpack.c.l.b16 %v203
      %v408 = vunpack.c.l.b16 %v204
      %v409 = vunpack.c.l.b16 %v205
      %v410 = vunpack.c.l.b16 %v206
      %v411 = vunpack.c.l.b16 %v207
      %v412 = vunpack.c.l.b16 %v208
      %v413 = vunpack.c.l.b16 %v209
      %v414 = vunpack.c.l.b16 %v210
      %v415 = vunpack.c.l.b16 %v211
      %v416 = vunpack.c.l.b16 %v212
      %v417 = vunpack.c.l.b16 %v213
      %v418 = vunpack.c.l.b16 %v214
      %v419 = vunpack.c.l.b16 %v215
      %v420 = vunpack.c.l.b16 %v216
      %v421 = vunpack.c.l.b16 %v217
      %v422 = vunpack.c.l.b16 %v218
      %v423 = vunpack.c.l.b16 %v219
      %v424 = vunpack.c.l.b16 %v220
      %v425 = vunpack.c.l.b16 %v221
      %v426 = vunpack.c.l.b16 %v222
      %v427 = vunpack.c.l.b16 %v223
      %v428 = vunpack.c.l.b16 %v224
      %v429 = vunpack.c.l.b16 %v225
      %v430 = vunpack.c.l.b16 %v226
      %v431 = vunpack.c.l.b16 %v227
      %v432 = vunpack.c.l.b16 %v228
      %v433 = vpack.c.b16 %v406, %v405
      %v434 = vpack.c.b16 %v408, %v407
      %v435 = vpack.c.b16 %v410, %v409
      %v436 = vpack.c.b16 %v412, %v411
      %v437 = vpack.c.b16 %v414, %v413
      %v438 = vpack.c.b16 %v416, %v415
      %v439 = vpack.c.b16 %v418, %v417
      %v440 = vpack.c.b16 %v420, %v419
      %v441 = vpack.c.b16 %v422, %v421
      %v442 = vpack.c.b16 %v424, %v423
      %v443 = vpack.c.b16 %v426, %v425
      %v444 = vpack.c.b16 %v428, %v427
      %v445 = vpack.c.b16 %v430, %v429
      %v446 = vpack.c.b16 %v432, %v431
      %v461 = vunpack.c.l.b16 %v229
      %v462 = vunpack.c.l.b16 %v230
      %v463 = vunpack.c.l.b16 %v231
      %v464 = vunpack.c.l.b16 %v232
      %v465 = vunpack.c.l.b16 %v233
      %v466 = vunpack.c.l.b16 %v234
      %v467 = vunpack.c.l.b16 %v235
      %v468 = vunpack.c.l.b16 %v236
      %v469 = vunpack.c.l.b16 %v237
      %v470 = vunpack.c.l.b16 %v238
      %v471 = vunpack.c.l.b16 %v239
      %v472 = vunpack.c.l.b16 %v240
      %v473 = vunpack.c.l.b16 %v241
      %v474 = vunpack.c.l.b16 %v242
      %v475 = vpack.c.b16 %v461, %v405
      %v476 = vpack.c.b16 %v462, %v407
      %v477 = vpack.c.b16 %v463, %v409
      %v478 = vpack.c.b16 %v464, %v411
      %v479 = vpack.c.b16 %v465, %v413
      %v480 = vpack.c.b16 %v466, %v415
      %v481 = vpack.c.b16 %v467, %v417
      %v482 = vpack.c.b16 %v468, %v419
      %v483 = vpack.c.b16 %v469, %v421
      %v484 = vpack.c.b16 %v470, %v423
      %v485 = vpack.c.b16 %v471, %v425
      %v486 = vpack.c.b16 %v472, %v427
      %v487 = vpack.c.b16 %v473, %v429
      %v488 = vpack.c.b16 %v474, %v431
      %v490 = vshrl.u32 %v475, 16
      %v492 = vshll.u32 %v475, 16
      %v494 = vrot.slane %v492, 1
      %v495 = vor.u32 %v490, %v494
      %v497 = vshrl.u32 %v476, 16
      %v499 = vshll.u32 %v476, 16
      %v501 = vrot.slane %v499, 1
      %v502 = vor.u32 %v497, %v501
      %v504 = vshrl.u32 %v477, 16
      %v506 = vshll.u32 %v477, 16
      %v508 = vrot.slane %v506, 1
      %v509 = vor.u32 %v504, %v508
      %v511 = vshrl.u32 %v478, 16
      %v513 = vshll.u32 %v478, 16
      %v515 = vrot.slane %v513, 1
      %v516 = vor.u32 %v511, %v515
      %v518 = vshrl.u32 %v479, 16
      %v520 = vshll.u32 %v479, 16
      %v522 = vrot.slane %v520, 1
      %v523 = vor.u32 %v518, %v522
      %v525 = vshrl.u32 %v480, 16
      %v527 = vshll.u32 %v480, 16
      %v529 = vrot.slane %v527, 1
      %v530 = vor.u32 %v525, %v529
      %v532 = vshrl.u32 %v481, 16
      %v534 = vshll.u32 %v481, 16
      %v536 = vrot.slane %v534, 1
      %v537 = vor.u32 %v532, %v536
      %v539 = vshrl.u32 %v482, 16
      %v541 = vshll.u32 %v482, 16
      %v543 = vrot.slane %v541, 1
      %v544 = vor.u32 %v539, %v543
      %v546 = vshrl.u32 %v483, 16
      %v548 = vshll.u32 %v483, 16
      %v550 = vrot.slane %v548, 1
      %v551 = vor.u32 %v546, %v550
      %v553 = vshrl.u32 %v484, 16
      %v555 = vshll.u32 %v484, 16
      %v557 = vrot.slane %v555, 1
      %v558 = vor.u32 %v553, %v557
      %v560 = vshrl.u32 %v485, 16
      %v562 = vshll.u32 %v485, 16
      %v564 = vrot.slane %v562, 1
      %v565 = vor.u32 %v560, %v564
      %v567 = vshrl.u32 %v486, 16
      %v569 = vshll.u32 %v486, 16
      %v571 = vrot.slane %v569, 1
      %v572 = vor.u32 %v567, %v571
      %v574 = vshrl.u32 %v487, 16
      %v576 = vshll.u32 %v487, 16
      %v578 = vrot.slane %v576, 1
      %v579 = vor.u32 %v574, %v578
      %v581 = vshrl.u32 %v488, 16
      %v583 = vshll.u32 %v488, 16
      %v585 = vrot.slane %v583, 1
      %v586 = vor.u32 %v581, %v585
      %587 = vrot.lane.b32.xlu0 %v495, 4
      %v588 = vpop.permute.xlu0 %587
      %589 = vrot.lane.b32.xlu0 %v502, 4
      %v590 = vpop.permute.xlu0 %589
      %591 = vrot.lane.b32.xlu0 %v509, 4
      %v592 = vpop.permute.xlu0 %591
      %593 = vrot.lane.b32.xlu0 %v516, 4
      %v594 = vpop.permute.xlu0 %593
      %595 = vrot.lane.b32.xlu0 %v523, 4
      %v596 = vpop.permute.xlu0 %595
      %597 = vrot.lane.b32.xlu0 %v530, 4
      %v598 = vpop.permute.xlu0 %597
      %599 = vrot.lane.b32.xlu0 %v537, 4
      %v600 = vpop.permute.xlu0 %599
      %601 = vrot.lane.b32.xlu0 %v544, 4
      %v602 = vpop.permute.xlu0 %601
      %603 = vrot.lane.b32.xlu0 %v551, 4
      %v604 = vpop.permute.xlu0 %603
      %605 = vrot.lane.b32.xlu0 %v558, 4
      %v606 = vpop.permute.xlu0 %605
      %607 = vrot.lane.b32.xlu0 %v565, 4
      %v608 = vpop.permute.xlu0 %607
      %609 = vrot.lane.b32.xlu0 %v572, 4
      %v610 = vpop.permute.xlu0 %609
      %611 = vrot.lane.b32.xlu0 %v579, 4
      %v612 = vpop.permute.xlu0 %611
      %613 = vrot.lane.b32.xlu0 %v586, 4
      %v614 = vpop.permute.xlu0 %613
      %v629 = vunpack.c.l.b16 %v243
      %v630 = vunpack.c.l.b16 %v244
      %v631 = vunpack.c.l.b16 %v245
      %v632 = vunpack.c.l.b16 %v246
      %v633 = vunpack.c.l.b16 %v247
      %v634 = vunpack.c.l.b16 %v248
      %v635 = vunpack.c.l.b16 %v249
      %v636 = vunpack.c.l.b16 %v250
      %v637 = vunpack.c.l.b16 %v251
      %v638 = vunpack.c.l.b16 %v252
      %v639 = vunpack.c.l.b16 %v253
      %v640 = vunpack.c.l.b16 %v254
      %v641 = vunpack.c.l.b16 %v255
      %v642 = vunpack.c.l.b16 %v256
      %v643 = vpack.c.b16 %v461, %v629
      %v644 = vpack.c.b16 %v462, %v630
      %v645 = vpack.c.b16 %v463, %v631
      %v646 = vpack.c.b16 %v464, %v632
      %v647 = vpack.c.b16 %v465, %v633
      %v648 = vpack.c.b16 %v466, %v634
      %v649 = vpack.c.b16 %v467, %v635
      %v650 = vpack.c.b16 %v468, %v636
      %v651 = vpack.c.b16 %v469, %v637
      %v652 = vpack.c.b16 %v470, %v638
      %v653 = vpack.c.b16 %v471, %v639
      %v654 = vpack.c.b16 %v472, %v640
      %v655 = vpack.c.b16 %v473, %v641
      %v656 = vpack.c.b16 %v474, %v642
      %v657 = vrot.slane %v643, 1
      %v658 = vrot.slane %v644, 1
      %v659 = vrot.slane %v645, 1
      %v660 = vrot.slane %v646, 1
      %v661 = vrot.slane %v647, 1
      %v662 = vrot.slane %v648, 1
      %v663 = vrot.slane %v649, 1
      %v664 = vrot.slane %v650, 1
      %v665 = vrot.slane %v651, 1
      %v666 = vrot.slane %v652, 1
      %v667 = vrot.slane %v653, 1
      %v668 = vrot.slane %v654, 1
      %v669 = vrot.slane %v655, 1
      %v670 = vrot.slane %v656, 1
      %671 = vrot.lane.b32.xlu0 %v657, 8
      %v672 = vpop.permute.xlu0 %671
      %673 = vrot.lane.b32.xlu0 %v658, 8
      %v674 = vpop.permute.xlu0 %673
      %675 = vrot.lane.b32.xlu0 %v659, 8
      %v676 = vpop.permute.xlu0 %675
      %677 = vrot.lane.b32.xlu0 %v660, 8
      %v678 = vpop.permute.xlu0 %677
      %679 = vrot.lane.b32.xlu0 %v661, 8
      %v680 = vpop.permute.xlu0 %679
      %681 = vrot.lane.b32.xlu0 %v662, 8
      %v682 = vpop.permute.xlu0 %681
      %683 = vrot.lane.b32.xlu0 %v663, 8
      %v684 = vpop.permute.xlu0 %683
      %685 = vrot.lane.b32.xlu0 %v664, 8
      %v686 = vpop.permute.xlu0 %685
      %687 = vrot.lane.b32.xlu0 %v665, 8
      %v688 = vpop.permute.xlu0 %687
      %689 = vrot.lane.b32.xlu0 %v666, 8
      %v690 = vpop.permute.xlu0 %689
      %691 = vrot.lane.b32.xlu0 %v667, 8
      %v692 = vpop.permute.xlu0 %691
      %693 = vrot.lane.b32.xlu0 %v668, 8
      %v694 = vpop.permute.xlu0 %693
      %695 = vrot.lane.b32.xlu0 %v669, 8
      %v696 = vpop.permute.xlu0 %695
      %697 = vrot.lane.b32.xlu0 %v670, 8
      %v698 = vpop.permute.xlu0 %697
      %v727 = vunpack.c.l.b16 %v261
      %v728 = vunpack.c.l.b16 %v262
      %v729 = vunpack.c.l.b16 %v263
      %v730 = vunpack.c.l.b16 %v264
      %v731 = vunpack.c.l.b16 %v265
      %v732 = vunpack.c.l.b16 %v266
      %v733 = vunpack.c.l.b16 %v267
      %v734 = vunpack.c.l.b16 %v268
      %v735 = vunpack.c.l.b16 %v269
      %v736 = vunpack.c.l.b16 %v270
      %v737 = vunpack.c.l.b16 %v271
      %v738 = vunpack.c.l.b16 %v272
      %v739 = vunpack.c.l.b16 %v273
      %v740 = vunpack.c.l.b16 %v274
      %v741 = vunpack.c.l.b16 %v275
      %v742 = vunpack.c.l.b16 %v276
      %v743 = vunpack.c.l.b16 %v277
      %v744 = vunpack.c.l.b16 %v278
      %v745 = vunpack.c.l.b16 %v279
      %v746 = vunpack.c.l.b16 %v280
      %v747 = vunpack.c.l.b16 %v281
      %v748 = vunpack.c.l.b16 %v282
      %v749 = vunpack.c.l.b16 %v283
      %v750 = vunpack.c.l.b16 %v284
      %v751 = vunpack.c.l.b16 %v285
      %v752 = vunpack.c.l.b16 %v286
      %v753 = vunpack.c.l.b16 %v287
      %v754 = vunpack.c.l.b16 %v288
      %v755 = vpack.c.b16 %v728, %v727
      %v756 = vpack.c.b16 %v730, %v729
      %v757 = vpack.c.b16 %v732, %v731
      %v758 = vpack.c.b16 %v734, %v733
      %v759 = vpack.c.b16 %v736, %v735
      %v760 = vpack.c.b16 %v738, %v737
      %v761 = vpack.c.b16 %v740, %v739
      %v762 = vpack.c.b16 %v742, %v741
      %v763 = vpack.c.b16 %v744, %v743
      %v764 = vpack.c.b16 %v746, %v745
      %v765 = vpack.c.b16 %v748, %v747
      %v766 = vpack.c.b16 %v750, %v749
      %v767 = vpack.c.b16 %v752, %v751
      %v768 = vpack.c.b16 %v754, %v753
      %769 = vrot.lane.b32.xlu0 %v755, 12
      %v770 = vpop.permute.xlu0 %769
      %771 = vrot.lane.b32.xlu0 %v756, 12
      %v772 = vpop.permute.xlu0 %771
      %773 = vrot.lane.b32.xlu0 %v757, 12
      %v774 = vpop.permute.xlu0 %773
      %775 = vrot.lane.b32.xlu0 %v758, 12
      %v776 = vpop.permute.xlu0 %775
      %777 = vrot.lane.b32.xlu0 %v759, 12
      %v778 = vpop.permute.xlu0 %777
      %779 = vrot.lane.b32.xlu0 %v760, 12
      %v780 = vpop.permute.xlu0 %779
      %781 = vrot.lane.b32.xlu0 %v761, 12
      %v782 = vpop.permute.xlu0 %781
      %783 = vrot.lane.b32.xlu0 %v762, 12
      %v784 = vpop.permute.xlu0 %783
      %785 = vrot.lane.b32.xlu0 %v763, 12
      %v786 = vpop.permute.xlu0 %785
      %787 = vrot.lane.b32.xlu0 %v764, 12
      %v788 = vpop.permute.xlu0 %787
      %789 = vrot.lane.b32.xlu0 %v765, 12
      %v790 = vpop.permute.xlu0 %789
      %791 = vrot.lane.b32.xlu0 %v766, 12
      %v792 = vpop.permute.xlu0 %791
      %793 = vrot.lane.b32.xlu0 %v767, 12
      %v794 = vpop.permute.xlu0 %793
      %795 = vrot.lane.b32.xlu0 %v768, 12
      %v796 = vpop.permute.xlu0 %795
      %v811 = vunpack.c.l.b16 %v289
      %v812 = vunpack.c.l.b16 %v290
      %v813 = vunpack.c.l.b16 %v291
      %v814 = vunpack.c.l.b16 %v292
      %v815 = vunpack.c.l.b16 %v293
      %v816 = vunpack.c.l.b16 %v294
      %v817 = vunpack.c.l.b16 %v295
      %v818 = vunpack.c.l.b16 %v296
      %v819 = vunpack.c.l.b16 %v297
      %v820 = vunpack.c.l.b16 %v298
      %v821 = vunpack.c.l.b16 %v299
      %v822 = vunpack.c.l.b16 %v300
      %v823 = vunpack.c.l.b16 %v301
      %v824 = vunpack.c.l.b16 %v302
      %v825 = vpack.c.b16 %v811, %v727
      %v826 = vpack.c.b16 %v812, %v729
      %v827 = vpack.c.b16 %v813, %v731
      %v828 = vpack.c.b16 %v814, %v733
      %v829 = vpack.c.b16 %v815, %v735
      %v830 = vpack.c.b16 %v816, %v737
      %v831 = vpack.c.b16 %v817, %v739
      %v832 = vpack.c.b16 %v818, %v741
      %v833 = vpack.c.b16 %v819, %v743
      %v834 = vpack.c.b16 %v820, %v745
      %v835 = vpack.c.b16 %v821, %v747
      %v836 = vpack.c.b16 %v822, %v749
      %v837 = vpack.c.b16 %v823, %v751
      %v838 = vpack.c.b16 %v824, %v753
      %v840 = vshrl.u32 %v825, 16
      %v842 = vshll.u32 %v825, 16
      %v844 = vrot.slane %v842, 1
      %v845 = vor.u32 %v840, %v844
      %v847 = vshrl.u32 %v826, 16
      %v849 = vshll.u32 %v826, 16
      %v851 = vrot.slane %v849, 1
      %v852 = vor.u32 %v847, %v851
      %v854 = vshrl.u32 %v827, 16
      %v856 = vshll.u32 %v827, 16
      %v858 = vrot.slane %v856, 1
      %v859 = vor.u32 %v854, %v858
      %v861 = vshrl.u32 %v828, 16
      %v863 = vshll.u32 %v828, 16
      %v865 = vrot.slane %v863, 1
      %v866 = vor.u32 %v861, %v865
      %v868 = vshrl.u32 %v829, 16
      %v870 = vshll.u32 %v829, 16
      %v872 = vrot.slane %v870, 1
      %v873 = vor.u32 %v868, %v872
      %v875 = vshrl.u32 %v830, 16
      %v877 = vshll.u32 %v830, 16
      %v879 = vrot.slane %v877, 1
      %v880 = vor.u32 %v875, %v879
      %v882 = vshrl.u32 %v831, 16
      %v884 = vshll.u32 %v831, 16
      %v886 = vrot.slane %v884, 1
      %v887 = vor.u32 %v882, %v886
      %v889 = vshrl.u32 %v832, 16
      %v891 = vshll.u32 %v832, 16
      %v893 = vrot.slane %v891, 1
      %v894 = vor.u32 %v889, %v893
      %v896 = vshrl.u32 %v833, 16
      %v898 = vshll.u32 %v833, 16
      %v900 = vrot.slane %v898, 1
      %v901 = vor.u32 %v896, %v900
      %v903 = vshrl.u32 %v834, 16
      %v905 = vshll.u32 %v834, 16
      %v907 = vrot.slane %v905, 1
      %v908 = vor.u32 %v903, %v907
      %v910 = vshrl.u32 %v835, 16
      %v912 = vshll.u32 %v835, 16
      %v914 = vrot.slane %v912, 1
      %v915 = vor.u32 %v910, %v914
      %v917 = vshrl.u32 %v836, 16
      %v919 = vshll.u32 %v836, 16
      %v921 = vrot.slane %v919, 1
      %v922 = vor.u32 %v917, %v921
      %v924 = vshrl.u32 %v837, 16
      %v926 = vshll.u32 %v837, 16
      %v928 = vrot.slane %v926, 1
      %v929 = vor.u32 %v924, %v928
      %v931 = vshrl.u32 %v838, 16
      %v933 = vshll.u32 %v838, 16
      %v935 = vrot.slane %v933, 1
      %v936 = vor.u32 %v931, %v935
      %937 = vrot.lane.b32.xlu0 %v845, 16
      %v938 = vpop.permute.xlu0 %937
      %939 = vrot.lane.b32.xlu0 %v852, 16
      %v940 = vpop.permute.xlu0 %939
      %941 = vrot.lane.b32.xlu0 %v859, 16
      %v942 = vpop.permute.xlu0 %941
      %943 = vrot.lane.b32.xlu0 %v866, 16
      %v944 = vpop.permute.xlu0 %943
      %945 = vrot.lane.b32.xlu0 %v873, 16
      %v946 = vpop.permute.xlu0 %945
      %947 = vrot.lane.b32.xlu0 %v880, 16
      %v948 = vpop.permute.xlu0 %947
      %949 = vrot.lane.b32.xlu0 %v887, 16
      %v950 = vpop.permute.xlu0 %949
      %951 = vrot.lane.b32.xlu0 %v894, 16
      %v952 = vpop.permute.xlu0 %951
      %953 = vrot.lane.b32.xlu0 %v901, 16
      %v954 = vpop.permute.xlu0 %953
      %955 = vrot.lane.b32.xlu0 %v908, 16
      %v956 = vpop.permute.xlu0 %955
      %957 = vrot.lane.b32.xlu0 %v915, 16
      %v958 = vpop.permute.xlu0 %957
      %959 = vrot.lane.b32.xlu0 %v922, 16
      %v960 = vpop.permute.xlu0 %959
      %961 = vrot.lane.b32.xlu0 %v929, 16
      %v962 = vpop.permute.xlu0 %961
      %963 = vrot.lane.b32.xlu0 %v936, 16
      %v964 = vpop.permute.xlu0 %963
      %v979 = vunpack.c.l.b16 %v303
      %v980 = vunpack.c.l.b16 %v304
      %v981 = vunpack.c.l.b16 %v305
      %v982 = vunpack.c.l.b16 %v306
      %v983 = vunpack.c.l.b16 %v307
      %v984 = vunpack.c.l.b16 %v308
      %v985 = vunpack.c.l.b16 %v309
      %v986 = vunpack.c.l.b16 %v310
      %v987 = vunpack.c.l.b16 %v311
      %v988 = vunpack.c.l.b16 %v312
      %v989 = vunpack.c.l.b16 %v313
      %v990 = vunpack.c.l.b16 %v314
      %v991 = vunpack.c.l.b16 %v315
      %v992 = vunpack.c.l.b16 %v316
      %v993 = vpack.c.b16 %v811, %v979
      %v994 = vpack.c.b16 %v812, %v980
      %v995 = vpack.c.b16 %v813, %v981
      %v996 = vpack.c.b16 %v814, %v982
      %v997 = vpack.c.b16 %v815, %v983
      %v998 = vpack.c.b16 %v816, %v984
      %v999 = vpack.c.b16 %v817, %v985
      %v1000 = vpack.c.b16 %v818, %v986
      %v1001 = vpack.c.b16 %v819, %v987
      %v1002 = vpack.c.b16 %v820, %v988
      %v1003 = vpack.c.b16 %v821, %v989
      %v1004 = vpack.c.b16 %v822, %v990
      %v1005 = vpack.c.b16 %v823, %v991
      %v1006 = vpack.c.b16 %v824, %v992
      %v1007 = vrot.slane %v993, 1
      %v1008 = vrot.slane %v994, 1
      %v1009 = vrot.slane %v995, 1
      %v1010 = vrot.slane %v996, 1
      %v1011 = vrot.slane %v997, 1
      %v1012 = vrot.slane %v998, 1
      %v1013 = vrot.slane %v999, 1
      %v1014 = vrot.slane %v1000, 1
      %v1015 = vrot.slane %v1001, 1
      %v1016 = vrot.slane %v1002, 1
      %v1017 = vrot.slane %v1003, 1
      %v1018 = vrot.slane %v1004, 1
      %v1019 = vrot.slane %v1005, 1
      %v1020 = vrot.slane %v1006, 1
      %1021 = vrot.lane.b32.xlu0 %v1007, 20
      %v1022 = vpop.permute.xlu0 %1021
      %1023 = vrot.lane.b32.xlu0 %v1008, 20
      %v1024 = vpop.permute.xlu0 %1023
      %1025 = vrot.lane.b32.xlu0 %v1009, 20
      %v1026 = vpop.permute.xlu0 %1025
      %1027 = vrot.lane.b32.xlu0 %v1010, 20
      %v1028 = vpop.permute.xlu0 %1027
      %1029 = vrot.lane.b32.xlu0 %v1011, 20
      %v1030 = vpop.permute.xlu0 %1029
      %1031 = vrot.lane.b32.xlu0 %v1012, 20
      %v1032 = vpop.permute.xlu0 %1031
      %1033 = vrot.lane.b32.xlu0 %v1013, 20
      %v1034 = vpop.permute.xlu0 %1033
      %1035 = vrot.lane.b32.xlu0 %v1014, 20
      %v1036 = vpop.permute.xlu0 %1035
      %1037 = vrot.lane.b32.xlu0 %v1015, 20
      %v1038 = vpop.permute.xlu0 %1037
      %1039 = vrot.lane.b32.xlu0 %v1016, 20
      %v1040 = vpop.permute.xlu0 %1039
      %1041 = vrot.lane.b32.xlu0 %v1017, 20
      %v1042 = vpop.permute.xlu0 %1041
      %1043 = vrot.lane.b32.xlu0 %v1018, 20
      %v1044 = vpop.permute.xlu0 %1043
      %1045 = vrot.lane.b32.xlu0 %v1019, 20
      %v1046 = vpop.permute.xlu0 %1045
      %1047 = vrot.lane.b32.xlu0 %v1020, 20
      %v1048 = vpop.permute.xlu0 %1047
      %v1077 = vunpack.c.l.b16 %v321
      %v1078 = vunpack.c.l.b16 %v322
      %v1079 = vunpack.c.l.b16 %v323
      %v1080 = vunpack.c.l.b16 %v324
      %v1081 = vunpack.c.l.b16 %v325
      %v1082 = vunpack.c.l.b16 %v326
      %v1083 = vunpack.c.l.b16 %v327
      %v1084 = vunpack.c.l.b16 %v328
      %v1085 = vunpack.c.l.b16 %v329
      %v1086 = vunpack.c.l.b16 %v330
      %v1087 = vunpack.c.l.b16 %v331
      %v1088 = vunpack.c.l.b16 %v332
      %v1089 = vunpack.c.l.b16 %v333
      %v1090 = vunpack.c.l.b16 %v334
      %v1091 = vunpack.c.l.b16 %v335
      %v1092 = vunpack.c.l.b16 %v336
      %v1093 = vunpack.c.l.b16 %v337
      %v1094 = vunpack.c.l.b16 %v338
      %v1095 = vunpack.c.l.b16 %v339
      %v1096 = vunpack.c.l.b16 %v340
      %v1097 = vunpack.c.l.b16 %v341
      %v1098 = vunpack.c.l.b16 %v342
      %v1099 = vunpack.c.l.b16 %v343
      %v1100 = vunpack.c.l.b16 %v344
      %v1101 = vunpack.c.l.b16 %v345
      %v1102 = vunpack.c.l.b16 %v346
      %v1103 = vunpack.c.l.b16 %v347
      %v1104 = vunpack.c.l.b16 %v348
      %v1105 = vpack.c.b16 %v1078, %v1077
      %v1106 = vpack.c.b16 %v1080, %v1079
      %v1107 = vpack.c.b16 %v1082, %v1081
      %v1108 = vpack.c.b16 %v1084, %v1083
      %v1109 = vpack.c.b16 %v1086, %v1085
      %v1110 = vpack.c.b16 %v1088, %v1087
      %v1111 = vpack.c.b16 %v1090, %v1089
      %v1112 = vpack.c.b16 %v1092, %v1091
      %v1113 = vpack.c.b16 %v1094, %v1093
      %v1114 = vpack.c.b16 %v1096, %v1095
      %v1115 = vpack.c.b16 %v1098, %v1097
      %v1116 = vpack.c.b16 %v1100, %v1099
      %v1117 = vpack.c.b16 %v1102, %v1101
      %v1118 = vpack.c.b16 %v1104, %v1103
      %1119 = vrot.lane.b32.xlu0 %v1105, 24
      %v1120 = vpop.permute.xlu0 %1119
      %1121 = vrot.lane.b32.xlu0 %v1106, 24
      %v1122 = vpop.permute.xlu0 %1121
      %1123 = vrot.lane.b32.xlu0 %v1107, 24
      %v1124 = vpop.permute.xlu0 %1123
      %1125 = vrot.lane.b32.xlu0 %v1108, 24
      %v1126 = vpop.permute.xlu0 %1125
      %1127 = vrot.lane.b32.xlu0 %v1109, 24
      %v1128 = vpop.permute.xlu0 %1127
      %1129 = vrot.lane.b32.xlu0 %v1110, 24
      %v1130 = vpop.permute.xlu0 %1129
      %1131 = vrot.lane.b32.xlu0 %v1111, 24
      %v1132 = vpop.permute.xlu0 %1131
      %1133 = vrot.lane.b32.xlu0 %v1112, 24
      %v1134 = vpop.permute.xlu0 %1133
      %1135 = vrot.lane.b32.xlu0 %v1113, 24
      %v1136 = vpop.permute.xlu0 %1135
      %1137 = vrot.lane.b32.xlu0 %v1114, 24
      %v1138 = vpop.permute.xlu0 %1137
      %1139 = vrot.lane.b32.xlu0 %v1115, 24
      %v1140 = vpop.permute.xlu0 %1139
      %1141 = vrot.lane.b32.xlu0 %v1116, 24
      %v1142 = vpop.permute.xlu0 %1141
      %1143 = vrot.lane.b32.xlu0 %v1117, 24
      %v1144 = vpop.permute.xlu0 %1143
      %1145 = vrot.lane.b32.xlu0 %v1118, 24
      %v1146 = vpop.permute.xlu0 %1145
      %v1161 = vunpack.c.l.b16 %v349
      %v1162 = vunpack.c.l.b16 %v350
      %v1163 = vunpack.c.l.b16 %v351
      %v1164 = vunpack.c.l.b16 %v352
      %v1165 = vunpack.c.l.b16 %v353
      %v1166 = vunpack.c.l.b16 %v354
      %v1167 = vunpack.c.l.b16 %v355
      %v1168 = vunpack.c.l.b16 %v356
      %v1169 = vunpack.c.l.b16 %v357
      %v1170 = vunpack.c.l.b16 %v358
      %v1171 = vunpack.c.l.b16 %v359
      %v1172 = vunpack.c.l.b16 %v360
      %v1173 = vunpack.c.l.b16 %v361
      %v1174 = vunpack.c.l.b16 %v362
      %v1175 = vpack.c.b16 %v1161, %v1077
      %v1176 = vpack.c.b16 %v1162, %v1079
      %v1177 = vpack.c.b16 %v1163, %v1081
      %v1178 = vpack.c.b16 %v1164, %v1083
      %v1179 = vpack.c.b16 %v1165, %v1085
      %v1180 = vpack.c.b16 %v1166, %v1087
      %v1181 = vpack.c.b16 %v1167, %v1089
      %v1182 = vpack.c.b16 %v1168, %v1091
      %v1183 = vpack.c.b16 %v1169, %v1093
      %v1184 = vpack.c.b16 %v1170, %v1095
      %v1185 = vpack.c.b16 %v1171, %v1097
      %v1186 = vpack.c.b16 %v1172, %v1099
      %v1187 = vpack.c.b16 %v1173, %v1101
      %v1188 = vpack.c.b16 %v1174, %v1103
      %v1190 = vshrl.u32 %v1175, 16
      %v1192 = vshll.u32 %v1175, 16
      %v1194 = vrot.slane %v1192, 1
      %v1195 = vor.u32 %v1190, %v1194
      %v1197 = vshrl.u32 %v1176, 16
      %v1199 = vshll.u32 %v1176, 16
      %v1201 = vrot.slane %v1199, 1
      %v1202 = vor.u32 %v1197, %v1201
      %v1204 = vshrl.u32 %v1177, 16
      %v1206 = vshll.u32 %v1177, 16
      %v1208 = vrot.slane %v1206, 1
      %v1209 = vor.u32 %v1204, %v1208
      %v1211 = vshrl.u32 %v1178, 16
      %v1213 = vshll.u32 %v1178, 16
      %v1215 = vrot.slane %v1213, 1
      %v1216 = vor.u32 %v1211, %v1215
      %v1218 = vshrl.u32 %v1179, 16
      %v1220 = vshll.u32 %v1179, 16
      %v1222 = vrot.slane %v1220, 1
      %v1223 = vor.u32 %v1218, %v1222
      %v1225 = vshrl.u32 %v1180, 16
      %v1227 = vshll.u32 %v1180, 16
      %v1229 = vrot.slane %v1227, 1
      %v1230 = vor.u32 %v1225, %v1229
      %v1232 = vshrl.u32 %v1181, 16
      %v1234 = vshll.u32 %v1181, 16
      %v1236 = vrot.slane %v1234, 1
      %v1237 = vor.u32 %v1232, %v1236
      %v1239 = vshrl.u32 %v1182, 16
      %v1241 = vshll.u32 %v1182, 16
      %v1243 = vrot.slane %v1241, 1
      %v1244 = vor.u32 %v1239, %v1243
      %v1246 = vshrl.u32 %v1183, 16
      %v1248 = vshll.u32 %v1183, 16
      %v1250 = vrot.slane %v1248, 1
      %v1251 = vor.u32 %v1246, %v1250
      %v1253 = vshrl.u32 %v1184, 16
      %v1255 = vshll.u32 %v1184, 16
      %v1257 = vrot.slane %v1255, 1
      %v1258 = vor.u32 %v1253, %v1257
      %v1260 = vshrl.u32 %v1185, 16
      %v1262 = vshll.u32 %v1185, 16
      %v1264 = vrot.slane %v1262, 1
      %v1265 = vor.u32 %v1260, %v1264
      %v1267 = vshrl.u32 %v1186, 16
      %v1269 = vshll.u32 %v1186, 16
      %v1271 = vrot.slane %v1269, 1
      %v1272 = vor.u32 %v1267, %v1271
      %v1274 = vshrl.u32 %v1187, 16
      %v1276 = vshll.u32 %v1187, 16
      %v1278 = vrot.slane %v1276, 1
      %v1279 = vor.u32 %v1274, %v1278
      %v1281 = vshrl.u32 %v1188, 16
      %v1283 = vshll.u32 %v1188, 16
      %v1285 = vrot.slane %v1283, 1
      %v1286 = vor.u32 %v1281, %v1285
      %1287 = vrot.lane.b32.xlu0 %v1195, 28
      %v1288 = vpop.permute.xlu0 %1287
      %1289 = vrot.lane.b32.xlu0 %v1202, 28
      %v1290 = vpop.permute.xlu0 %1289
      %1291 = vrot.lane.b32.xlu0 %v1209, 28
      %v1292 = vpop.permute.xlu0 %1291
      %1293 = vrot.lane.b32.xlu0 %v1216, 28
      %v1294 = vpop.permute.xlu0 %1293
      %1295 = vrot.lane.b32.xlu0 %v1223, 28
      %v1296 = vpop.permute.xlu0 %1295
      %1297 = vrot.lane.b32.xlu0 %v1230, 28
      %v1298 = vpop.permute.xlu0 %1297
      %1299 = vrot.lane.b32.xlu0 %v1237, 28
      %v1300 = vpop.permute.xlu0 %1299
      %1301 = vrot.lane.b32.xlu0 %v1244, 28
      %v1302 = vpop.permute.xlu0 %1301
      %1303 = vrot.lane.b32.xlu0 %v1251, 28
      %v1304 = vpop.permute.xlu0 %1303
      %1305 = vrot.lane.b32.xlu0 %v1258, 28
      %v1306 = vpop.permute.xlu0 %1305
      %1307 = vrot.lane.b32.xlu0 %v1265, 28
      %v1308 = vpop.permute.xlu0 %1307
      %1309 = vrot.lane.b32.xlu0 %v1272, 28
      %v1310 = vpop.permute.xlu0 %1309
      %1311 = vrot.lane.b32.xlu0 %v1279, 28
      %v1312 = vpop.permute.xlu0 %1311
      %1313 = vrot.lane.b32.xlu0 %v1286, 28
      %v1314 = vpop.permute.xlu0 %1313
      %v1329 = vunpack.c.l.b16 %v363
      %v1330 = vunpack.c.l.b16 %v364
      %v1331 = vunpack.c.l.b16 %v365
      %v1332 = vunpack.c.l.b16 %v366
      %v1333 = vunpack.c.l.b16 %v367
      %v1334 = vunpack.c.l.b16 %v368
      %v1335 = vunpack.c.l.b16 %v369
      %v1336 = vunpack.c.l.b16 %v370
      %v1337 = vunpack.c.l.b16 %v371
      %v1338 = vunpack.c.l.b16 %v372
      %v1339 = vunpack.c.l.b16 %v373
      %v1340 = vunpack.c.l.b16 %v374
      %v1341 = vunpack.c.l.b16 %v375
      %v1342 = vunpack.c.l.b16 %v376
      %v1343 = vpack.c.b16 %v1161, %v1329
      %v1344 = vpack.c.b16 %v1162, %v1330
      %v1345 = vpack.c.b16 %v1163, %v1331
      %v1346 = vpack.c.b16 %v1164, %v1332
      %v1347 = vpack.c.b16 %v1165, %v1333
      %v1348 = vpack.c.b16 %v1166, %v1334
      %v1349 = vpack.c.b16 %v1167, %v1335
      %v1350 = vpack.c.b16 %v1168, %v1336
      %v1351 = vpack.c.b16 %v1169, %v1337
      %v1352 = vpack.c.b16 %v1170, %v1338
      %v1353 = vpack.c.b16 %v1171, %v1339
      %v1354 = vpack.c.b16 %v1172, %v1340
      %v1355 = vpack.c.b16 %v1173, %v1341
      %v1356 = vpack.c.b16 %v1174, %v1342
      %v1357 = vrot.slane %v1343, 1
      %v1358 = vrot.slane %v1344, 1
      %v1359 = vrot.slane %v1345, 1
      %v1360 = vrot.slane %v1346, 1
      %v1361 = vrot.slane %v1347, 1
      %v1362 = vrot.slane %v1348, 1
      %v1363 = vrot.slane %v1349, 1
      %v1364 = vrot.slane %v1350, 1
      %v1365 = vrot.slane %v1351, 1
      %v1366 = vrot.slane %v1352, 1
      %v1367 = vrot.slane %v1353, 1
      %v1368 = vrot.slane %v1354, 1
      %v1369 = vrot.slane %v1355, 1
      %v1370 = vrot.slane %v1356, 1
      %1371 = vrot.lane.b32.xlu0 %v1357, 32
      %v1372 = vpop.permute.xlu0 %1371
      %1373 = vrot.lane.b32.xlu0 %v1358, 32
      %v1374 = vpop.permute.xlu0 %1373
      %1375 = vrot.lane.b32.xlu0 %v1359, 32
      %v1376 = vpop.permute.xlu0 %1375
      %1377 = vrot.lane.b32.xlu0 %v1360, 32
      %v1378 = vpop.permute.xlu0 %1377
      %1379 = vrot.lane.b32.xlu0 %v1361, 32
      %v1380 = vpop.permute.xlu0 %1379
      %1381 = vrot.lane.b32.xlu0 %v1362, 32
      %v1382 = vpop.permute.xlu0 %1381
      %1383 = vrot.lane.b32.xlu0 %v1363, 32
      %v1384 = vpop.permute.xlu0 %1383
      %1385 = vrot.lane.b32.xlu0 %v1364, 32
      %v1386 = vpop.permute.xlu0 %1385
      %1387 = vrot.lane.b32.xlu0 %v1365, 32
      %v1388 = vpop.permute.xlu0 %1387
      %1389 = vrot.lane.b32.xlu0 %v1366, 32
      %v1390 = vpop.permute.xlu0 %1389
      %1391 = vrot.lane.b32.xlu0 %v1367, 32
      %v1392 = vpop.permute.xlu0 %1391
      %1393 = vrot.lane.b32.xlu0 %v1368, 32
      %v1394 = vpop.permute.xlu0 %1393
      %1395 = vrot.lane.b32.xlu0 %v1369, 32
      %v1396 = vpop.permute.xlu0 %1395
      %1397 = vrot.lane.b32.xlu0 %v1370, 32
      %v1398 = vpop.permute.xlu0 %1397
      %vm1399 = vcmask 31744
      %v1402 = vsel %vm1399, %v433, %v588
      %v1405 = vsel %vm1399, %v434, %v590
      %v1408 = vsel %vm1399, %v435, %v592
      %v1411 = vsel %vm1399, %v436, %v594
      %v1414 = vsel %vm1399, %v437, %v596
      %v1417 = vsel %vm1399, %v438, %v598
      %v1420 = vsel %vm1399, %v439, %v600
      %v1423 = vsel %vm1399, %v440, %v602
      %v1426 = vsel %vm1399, %v441, %v604
      %v1429 = vsel %vm1399, %v442, %v606
      %v1432 = vsel %vm1399, %v443, %v608
      %v1435 = vsel %vm1399, %v444, %v610
      %v1438 = vsel %vm1399, %v445, %v612
      %v1441 = vsel %vm1399, %v446, %v614
      %vm1442 = vcmask 64512
      %v1444 = vsel %vm1442, %v1402, %v672
      %v1446 = vsel %vm1442, %v1405, %v674
      %v1448 = vsel %vm1442, %v1408, %v676
      %v1450 = vsel %vm1442, %v1411, %v678
      %v1452 = vsel %vm1442, %v1414, %v680
      %v1454 = vsel %vm1442, %v1417, %v682
      %v1456 = vsel %vm1442, %v1420, %v684
      %v1458 = vsel %vm1442, %v1423, %v686
      %v1460 = vsel %vm1442, %v1426, %v688
      %v1462 = vsel %vm1442, %v1429, %v690
      %v1464 = vsel %vm1442, %v1432, %v692
      %v1466 = vsel %vm1442, %v1435, %v694
      %v1468 = vsel %vm1442, %v1438, %v696
      %v1470 = vsel %vm1442, %v1441, %v698
      %vm1471 = vcmask 97280
      %v1473 = vsel %vm1471, %v1444, %v770
      %v1475 = vsel %vm1471, %v1446, %v772
      %v1477 = vsel %vm1471, %v1448, %v774
      %v1479 = vsel %vm1471, %v1450, %v776
      %v1481 = vsel %vm1471, %v1452, %v778
      %v1483 = vsel %vm1471, %v1454, %v780
      %v1485 = vsel %vm1471, %v1456, %v782
      %v1487 = vsel %vm1471, %v1458, %v784
      %v1489 = vsel %vm1471, %v1460, %v786
      %v1491 = vsel %vm1471, %v1462, %v788
      %v1493 = vsel %vm1471, %v1464, %v790
      %v1495 = vsel %vm1471, %v1466, %v792
      %v1497 = vsel %vm1471, %v1468, %v794
      %v1499 = vsel %vm1471, %v1470, %v796
      %vm1500 = vcmask 130048
      %v1502 = vsel %vm1500, %v1473, %v938
      %v1504 = vsel %vm1500, %v1475, %v940
      %v1506 = vsel %vm1500, %v1477, %v942
      %v1508 = vsel %vm1500, %v1479, %v944
      %v1510 = vsel %vm1500, %v1481, %v946
      %v1512 = vsel %vm1500, %v1483, %v948
      %v1514 = vsel %vm1500, %v1485, %v950
      %v1516 = vsel %vm1500, %v1487, %v952
      %v1518 = vsel %vm1500, %v1489, %v954
      %v1520 = vsel %vm1500, %v1491, %v956
      %v1522 = vsel %vm1500, %v1493, %v958
      %v1524 = vsel %vm1500, %v1495, %v960
      %v1526 = vsel %vm1500, %v1497, %v962
      %v1528 = vsel %vm1500, %v1499, %v964
      %vm1529 = vcmask 162816
      %v1531 = vsel %vm1529, %v1502, %v1022
      %v1533 = vsel %vm1529, %v1504, %v1024
      %v1535 = vsel %vm1529, %v1506, %v1026
      %v1537 = vsel %vm1529, %v1508, %v1028
      %v1539 = vsel %vm1529, %v1510, %v1030
      %v1541 = vsel %vm1529, %v1512, %v1032
      %v1543 = vsel %vm1529, %v1514, %v1034
      %v1545 = vsel %vm1529, %v1516, %v1036
      %v1547 = vsel %vm1529, %v1518, %v1038
      %v1549 = vsel %vm1529, %v1520, %v1040
      %v1551 = vsel %vm1529, %v1522, %v1042
      %v1553 = vsel %vm1529, %v1524, %v1044
      %v1555 = vsel %vm1529, %v1526, %v1046
      %v1557 = vsel %vm1529, %v1528, %v1048
      %vm1558 = vcmask 195584
      %v1560 = vsel %vm1558, %v1531, %v1120
      %v1562 = vsel %vm1558, %v1533, %v1122
      %v1564 = vsel %vm1558, %v1535, %v1124
      %v1566 = vsel %vm1558, %v1537, %v1126
      %v1568 = vsel %vm1558, %v1539, %v1128
      %v1570 = vsel %vm1558, %v1541, %v1130
      %v1572 = vsel %vm1558, %v1543, %v1132
      %v1574 = vsel %vm1558, %v1545, %v1134
      %v1576 = vsel %vm1558, %v1547, %v1136
      %v1578 = vsel %vm1558, %v1549, %v1138
      %v1580 = vsel %vm1558, %v1551, %v1140
      %v1582 = vsel %vm1558, %v1553, %v1142
      %v1584 = vsel %vm1558, %v1555, %v1144
      %v1586 = vsel %vm1558, %v1557, %v1146
      %vm1587 = vcmask 228352
      %v1589 = vsel %vm1587, %v1560, %v1288
      %v1591 = vsel %vm1587, %v1562, %v1290
      %v1593 = vsel %vm1587, %v1564, %v1292
      %v1595 = vsel %vm1587, %v1566, %v1294
      %v1597 = vsel %vm1587, %v1568, %v1296
      %v1599 = vsel %vm1587, %v1570, %v1298
      %v1601 = vsel %vm1587, %v1572, %v1300
      %v1603 = vsel %vm1587, %v1574, %v1302
      %v1605 = vsel %vm1587, %v1576, %v1304
      %v1607 = vsel %vm1587, %v1578, %v1306
      %v1609 = vsel %vm1587, %v1580, %v1308
      %v1611 = vsel %vm1587, %v1582, %v1310
      %v1613 = vsel %vm1587, %v1584, %v1312
      %v1615 = vsel %vm1587, %v1586, %v1314
      %vm1616 = vcmask 261120
      %v1618 = vsel %vm1616, %v1589, %v1372
      %v1620 = vsel %vm1616, %v1591, %v1374
      %v1622 = vsel %vm1616, %v1593, %v1376
      %v1624 = vsel %vm1616, %v1595, %v1378
      %v1626 = vsel %vm1616, %v1597, %v1380
      %v1628 = vsel %vm1616, %v1599, %v1382
      %v1630 = vsel %vm1616, %v1601, %v1384
      %v1632 = vsel %vm1616, %v1603, %v1386
      %v1634 = vsel %vm1616, %v1605, %v1388
      %v1636 = vsel %vm1616, %v1607, %v1390
      %v1638 = vsel %vm1616, %v1609, %v1392
      %v1640 = vsel %vm1616, %v1611, %v1394
      %v1642 = vsel %vm1616, %v1613, %v1396
      %v1644 = vsel %vm1616, %v1615, %v1398
      %v1659 = vcombine.high %v1618, %v1618
      %v1661 = vunpack.c.l.s4 1966171168
      %v1662 = vunpack.c.0.s8 %v1661
      %v1663 = vlaneseq
      %v1664 = vshrl.u32 %v1663, 7
      %v1665 = vsub.s32 %v1662, %v1664
      %v1666 = vrot.slane %v1618, %v1665
      %v1668 = vunpack.c.l.s4 1966171168
      %v1669 = vunpack.c.0.s8 %v1668
      %v1670 = vlaneseq
      %v1671 = vshrl.u32 %v1670, 7
      %v1672 = vsub.s32 %v1669, %v1671
      %v1673 = vrot.slane %v1659, %v1672
      %v1674 = vcombine.high %v1666, %v1666
      %v1675 = vcombine.high %v1673, %v1673
      %v1677 = vunpack.c.l.s4 1966171168
      %v1678 = vunpack.c.0.s8 %v1677
      %v1679 = vlaneseq
      %v1680 = vshrl.u32 %v1679, 7
      %v1681 = vsub.s32 %v1678, %v1680
      %v1682 = vrot.slane %v1666, %v1681
      %v1684 = vunpack.c.l.s4 1966171168
      %v1685 = vunpack.c.0.s8 %v1684
      %v1686 = vlaneseq
      %v1687 = vshrl.u32 %v1686, 7
      %v1688 = vsub.s32 %v1685, %v1687
      %v1689 = vrot.slane %v1673, %v1688
      %v1691 = vunpack.c.l.s4 1966171168
      %v1692 = vunpack.c.0.s8 %v1691
      %v1693 = vlaneseq
      %v1694 = vshrl.u32 %v1693, 7
      %v1695 = vsub.s32 %v1692, %v1694
      %v1696 = vrot.slane %v1674, %v1695
      %v1698 = vunpack.c.l.s4 1966171168
      %v1699 = vunpack.c.0.s8 %v1698
      %v1700 = vlaneseq
      %v1701 = vshrl.u32 %v1700, 7
      %v1702 = vsub.s32 %v1699, %v1701
      %v1703 = vrot.slane %v1675, %v1702
      %v1704 = vcombine.high %v1682, %v1682
      %v1705 = vcombine.high %v1689, %v1689
      %v1706 = vcombine.high %v1696, %v1696
      %v1707 = vcombine.high %v1620, %v1620
      %v1709 = vunpack.c.l.s4 1966171168
      %v1710 = vunpack.c.0.s8 %v1709
      %v1711 = vlaneseq
      %v1712 = vshrl.u32 %v1711, 7
      %v1713 = vsub.s32 %v1710, %v1712
      %v1714 = vrot.slane %v1620, %v1713
      %v1716 = vunpack.c.l.s4 1966171168
      %v1717 = vunpack.c.0.s8 %v1716
      %v1718 = vlaneseq
      %v1719 = vshrl.u32 %v1718, 7
      %v1720 = vsub.s32 %v1717, %v1719
      %v1721 = vrot.slane %v1707, %v1720
      %v1722 = vcombine.high %v1714, %v1714
      %v1723 = vcombine.high %v1721, %v1721
      %v1725 = vunpack.c.l.s4 1966171168
      %v1726 = vunpack.c.0.s8 %v1725
      %v1727 = vlaneseq
      %v1728 = vshrl.u32 %v1727, 7
      %v1729 = vsub.s32 %v1726, %v1728
      %v1730 = vrot.slane %v1714, %v1729
      %v1732 = vunpack.c.l.s4 1966171168
      %v1733 = vunpack.c.0.s8 %v1732
      %v1734 = vlaneseq
      %v1735 = vshrl.u32 %v1734, 7
      %v1736 = vsub.s32 %v1733, %v1735
      %v1737 = vrot.slane %v1721, %v1736
      %v1739 = vunpack.c.l.s4 1966171168
      %v1740 = vunpack.c.0.s8 %v1739
      %v1741 = vlaneseq
      %v1742 = vshrl.u32 %v1741, 7
      %v1743 = vsub.s32 %v1740, %v1742
      %v1744 = vrot.slane %v1722, %v1743
      %v1746 = vunpack.c.l.s4 1966171168
      %v1747 = vunpack.c.0.s8 %v1746
      %v1748 = vlaneseq
      %v1749 = vshrl.u32 %v1748, 7
      %v1750 = vsub.s32 %v1747, %v1749
      %v1751 = vrot.slane %v1723, %v1750
      %v1752 = vcombine.high %v1730, %v1730
      %v1753 = vcombine.high %v1737, %v1737
      %v1754 = vcombine.high %v1744, %v1744
      %v1755 = vcombine.high %v1622, %v1622
      %v1757 = vunpack.c.l.s4 1966171168
      %v1758 = vunpack.c.0.s8 %v1757
      %v1759 = vlaneseq
      %v1760 = vshrl.u32 %v1759, 7
      %v1761 = vsub.s32 %v1758, %v1760
      %v1762 = vrot.slane %v1622, %v1761
      %v1764 = vunpack.c.l.s4 1966171168
      %v1765 = vunpack.c.0.s8 %v1764
      %v1766 = vlaneseq
      %v1767 = vshrl.u32 %v1766, 7
      %v1768 = vsub.s32 %v1765, %v1767
      %v1769 = vrot.slane %v1755, %v1768
      %v1770 = vcombine.high %v1762, %v1762
      %v1771 = vcombine.high %v1769, %v1769
      %v1773 = vunpack.c.l.s4 1966171168
      %v1774 = vunpack.c.0.s8 %v1773
      %v1775 = vlaneseq
      %v1776 = vshrl.u32 %v1775, 7
      %v1777 = vsub.s32 %v1774, %v1776
      %v1778 = vrot.slane %v1762, %v1777
      %v1780 = vunpack.c.l.s4 1966171168
      %v1781 = vunpack.c.0.s8 %v1780
      %v1782 = vlaneseq
      %v1783 = vshrl.u32 %v1782, 7
      %v1784 = vsub.s32 %v1781, %v1783
      %v1785 = vrot.slane %v1769, %v1784
      %v1787 = vunpack.c.l.s4 1966171168
      %v1788 = vunpack.c.0.s8 %v1787
      %v1789 = vlaneseq
      %v1790 = vshrl.u32 %v1789, 7
      %v1791 = vsub.s32 %v1788, %v1790
      %v1792 = vrot.slane %v1770, %v1791
      %v1794 = vunpack.c.l.s4 1966171168
      %v1795 = vunpack.c.0.s8 %v1794
      %v1796 = vlaneseq
      %v1797 = vshrl.u32 %v1796, 7
      %v1798 = vsub.s32 %v1795, %v1797
      %v1799 = vrot.slane %v1771, %v1798
      %v1800 = vcombine.high %v1778, %v1778
      %v1801 = vcombine.high %v1785, %v1785
      %v1802 = vcombine.high %v1792, %v1792
      %v1803 = vcombine.high %v1624, %v1624
      %v1805 = vunpack.c.l.s4 1966171168
      %v1806 = vunpack.c.0.s8 %v1805
      %v1807 = vlaneseq
      %v1808 = vshrl.u32 %v1807, 7
      %v1809 = vsub.s32 %v1806, %v1808
      %v1810 = vrot.slane %v1624, %v1809
      %v1812 = vunpack.c.l.s4 1966171168
      %v1813 = vunpack.c.0.s8 %v1812
      %v1814 = vlaneseq
      %v1815 = vshrl.u32 %v1814, 7
      %v1816 = vsub.s32 %v1813, %v1815
      %v1817 = vrot.slane %v1803, %v1816
      %v1818 = vcombine.high %v1810, %v1810
      %v1819 = vcombine.high %v1817, %v1817
      %v1821 = vunpack.c.l.s4 1966171168
      %v1822 = vunpack.c.0.s8 %v1821
      %v1823 = vlaneseq
      %v1824 = vshrl.u32 %v1823, 7
      %v1825 = vsub.s32 %v1822, %v1824
      %v1826 = vrot.slane %v1810, %v1825
      %v1828 = vunpack.c.l.s4 1966171168
      %v1829 = vunpack.c.0.s8 %v1828
      %v1830 = vlaneseq
      %v1831 = vshrl.u32 %v1830, 7
      %v1832 = vsub.s32 %v1829, %v1831
      %v1833 = vrot.slane %v1817, %v1832
      %v1835 = vunpack.c.l.s4 1966171168
      %v1836 = vunpack.c.0.s8 %v1835
      %v1837 = vlaneseq
      %v1838 = vshrl.u32 %v1837, 7
      %v1839 = vsub.s32 %v1836, %v1838
      %v1840 = vrot.slane %v1818, %v1839
      %v1842 = vunpack.c.l.s4 1966171168
      %v1843 = vunpack.c.0.s8 %v1842
      %v1844 = vlaneseq
      %v1845 = vshrl.u32 %v1844, 7
      %v1846 = vsub.s32 %v1843, %v1845
      %v1847 = vrot.slane %v1819, %v1846
      %v1848 = vcombine.high %v1826, %v1826
      %v1849 = vcombine.high %v1833, %v1833
      %v1850 = vcombine.high %v1840, %v1840
      %v1851 = vcombine.high %v1626, %v1626
      %v1853 = vunpack.c.l.s4 1966171168
      %v1854 = vunpack.c.0.s8 %v1853
      %v1855 = vlaneseq
      %v1856 = vshrl.u32 %v1855, 7
      %v1857 = vsub.s32 %v1854, %v1856
      %v1858 = vrot.slane %v1626, %v1857
      %v1860 = vunpack.c.l.s4 1966171168
      %v1861 = vunpack.c.0.s8 %v1860
      %v1862 = vlaneseq
      %v1863 = vshrl.u32 %v1862, 7
      %v1864 = vsub.s32 %v1861, %v1863
      %v1865 = vrot.slane %v1851, %v1864
      %v1866 = vcombine.high %v1858, %v1858
      %v1867 = vcombine.high %v1865, %v1865
      %v1869 = vunpack.c.l.s4 1966171168
      %v1870 = vunpack.c.0.s8 %v1869
      %v1871 = vlaneseq
      %v1872 = vshrl.u32 %v1871, 7
      %v1873 = vsub.s32 %v1870, %v1872
      %v1874 = vrot.slane %v1858, %v1873
      %v1876 = vunpack.c.l.s4 1966171168
      %v1877 = vunpack.c.0.s8 %v1876
      %v1878 = vlaneseq
      %v1879 = vshrl.u32 %v1878, 7
      %v1880 = vsub.s32 %v1877, %v1879
      %v1881 = vrot.slane %v1865, %v1880
      %v1883 = vunpack.c.l.s4 1966171168
      %v1884 = vunpack.c.0.s8 %v1883
      %v1885 = vlaneseq
      %v1886 = vshrl.u32 %v1885, 7
      %v1887 = vsub.s32 %v1884, %v1886
      %v1888 = vrot.slane %v1866, %v1887
      %v1890 = vunpack.c.l.s4 1966171168
      %v1891 = vunpack.c.0.s8 %v1890
      %v1892 = vlaneseq
      %v1893 = vshrl.u32 %v1892, 7
      %v1894 = vsub.s32 %v1891, %v1893
      %v1895 = vrot.slane %v1867, %v1894
      %v1896 = vcombine.high %v1874, %v1874
      %v1897 = vcombine.high %v1881, %v1881
      %v1898 = vcombine.high %v1888, %v1888
      %v1899 = vcombine.high %v1628, %v1628
      %v1901 = vunpack.c.l.s4 1966171168
      %v1902 = vunpack.c.0.s8 %v1901
      %v1903 = vlaneseq
      %v1904 = vshrl.u32 %v1903, 7
      %v1905 = vsub.s32 %v1902, %v1904
      %v1906 = vrot.slane %v1628, %v1905
      %v1908 = vunpack.c.l.s4 1966171168
      %v1909 = vunpack.c.0.s8 %v1908
      %v1910 = vlaneseq
      %v1911 = vshrl.u32 %v1910, 7
      %v1912 = vsub.s32 %v1909, %v1911
      %v1913 = vrot.slane %v1899, %v1912
      %v1914 = vcombine.high %v1906, %v1906
      %v1915 = vcombine.high %v1913, %v1913
      %v1917 = vunpack.c.l.s4 1966171168
      %v1918 = vunpack.c.0.s8 %v1917
      %v1919 = vlaneseq
      %v1920 = vshrl.u32 %v1919, 7
      %v1921 = vsub.s32 %v1918, %v1920
      %v1922 = vrot.slane %v1906, %v1921
      %v1924 = vunpack.c.l.s4 1966171168
      %v1925 = vunpack.c.0.s8 %v1924
      %v1926 = vlaneseq
      %v1927 = vshrl.u32 %v1926, 7
      %v1928 = vsub.s32 %v1925, %v1927
      %v1929 = vrot.slane %v1913, %v1928
      %v1931 = vunpack.c.l.s4 1966171168
      %v1932 = vunpack.c.0.s8 %v1931
      %v1933 = vlaneseq
      %v1934 = vshrl.u32 %v1933, 7
      %v1935 = vsub.s32 %v1932, %v1934
      %v1936 = vrot.slane %v1914, %v1935
      %v1938 = vunpack.c.l.s4 1966171168
      %v1939 = vunpack.c.0.s8 %v1938
      %v1940 = vlaneseq
      %v1941 = vshrl.u32 %v1940, 7
      %v1942 = vsub.s32 %v1939, %v1941
      %v1943 = vrot.slane %v1915, %v1942
      %v1944 = vcombine.high %v1922, %v1922
      %v1945 = vcombine.high %v1929, %v1929
      %v1946 = vcombine.high %v1936, %v1936
      %v1947 = vcombine.high %v1630, %v1630
      %v1949 = vunpack.c.l.s4 1966171168
      %v1950 = vunpack.c.0.s8 %v1949
      %v1951 = vlaneseq
      %v1952 = vshrl.u32 %v1951, 7
      %v1953 = vsub.s32 %v1950, %v1952
      %v1954 = vrot.slane %v1630, %v1953
      %v1956 = vunpack.c.l.s4 1966171168
      %v1957 = vunpack.c.0.s8 %v1956
      %v1958 = vlaneseq
      %v1959 = vshrl.u32 %v1958, 7
      %v1960 = vsub.s32 %v1957, %v1959
      %v1961 = vrot.slane %v1947, %v1960
      %v1962 = vcombine.high %v1954, %v1954
      %v1963 = vcombine.high %v1961, %v1961
      %v1965 = vunpack.c.l.s4 1966171168
      %v1966 = vunpack.c.0.s8 %v1965
      %v1967 = vlaneseq
      %v1968 = vshrl.u32 %v1967, 7
      %v1969 = vsub.s32 %v1966, %v1968
      %v1970 = vrot.slane %v1954, %v1969
      %v1972 = vunpack.c.l.s4 1966171168
      %v1973 = vunpack.c.0.s8 %v1972
      %v1974 = vlaneseq
      %v1975 = vshrl.u32 %v1974, 7
      %v1976 = vsub.s32 %v1973, %v1975
      %v1977 = vrot.slane %v1961, %v1976
      %v1979 = vunpack.c.l.s4 1966171168
      %v1980 = vunpack.c.0.s8 %v1979
      %v1981 = vlaneseq
      %v1982 = vshrl.u32 %v1981, 7
      %v1983 = vsub.s32 %v1980, %v1982
      %v1984 = vrot.slane %v1962, %v1983
      %v1986 = vunpack.c.l.s4 1966171168
      %v1987 = vunpack.c.0.s8 %v1986
      %v1988 = vlaneseq
      %v1989 = vshrl.u32 %v1988, 7
      %v1990 = vsub.s32 %v1987, %v1989
      %v1991 = vrot.slane %v1963, %v1990
      %v1992 = vcombine.high %v1970, %v1970
      %v1993 = vcombine.high %v1977, %v1977
      %v1994 = vcombine.high %v1984, %v1984
      %v1995 = vcombine.high %v1632, %v1632
      %v1997 = vunpack.c.l.s4 1966171168
      %v1998 = vunpack.c.0.s8 %v1997
      %v1999 = vlaneseq
      %v2000 = vshrl.u32 %v1999, 7
      %v2001 = vsub.s32 %v1998, %v2000
      %v2002 = vrot.slane %v1632, %v2001
      %v2004 = vunpack.c.l.s4 1966171168
      %v2005 = vunpack.c.0.s8 %v2004
      %v2006 = vlaneseq
      %v2007 = vshrl.u32 %v2006, 7
      %v2008 = vsub.s32 %v2005, %v2007
      %v2009 = vrot.slane %v1995, %v2008
      %v2010 = vcombine.high %v2002, %v2002
      %v2011 = vcombine.high %v2009, %v2009
      %v2013 = vunpack.c.l.s4 1966171168
      %v2014 = vunpack.c.0.s8 %v2013
      %v2015 = vlaneseq
      %v2016 = vshrl.u32 %v2015, 7
      %v2017 = vsub.s32 %v2014, %v2016
      %v2018 = vrot.slane %v2002, %v2017
      %v2020 = vunpack.c.l.s4 1966171168
      %v2021 = vunpack.c.0.s8 %v2020
      %v2022 = vlaneseq
      %v2023 = vshrl.u32 %v2022, 7
      %v2024 = vsub.s32 %v2021, %v2023
      %v2025 = vrot.slane %v2009, %v2024
      %v2027 = vunpack.c.l.s4 1966171168
      %v2028 = vunpack.c.0.s8 %v2027
      %v2029 = vlaneseq
      %v2030 = vshrl.u32 %v2029, 7
      %v2031 = vsub.s32 %v2028, %v2030
      %v2032 = vrot.slane %v2010, %v2031
      %v2034 = vunpack.c.l.s4 1966171168
      %v2035 = vunpack.c.0.s8 %v2034
      %v2036 = vlaneseq
      %v2037 = vshrl.u32 %v2036, 7
      %v2038 = vsub.s32 %v2035, %v2037
      %v2039 = vrot.slane %v2011, %v2038
      %v2040 = vcombine.high %v2018, %v2018
      %v2041 = vcombine.high %v2025, %v2025
      %v2042 = vcombine.high %v2032, %v2032
      %v2043 = vcombine.high %v1634, %v1634
      %v2045 = vunpack.c.l.s4 1966171168
      %v2046 = vunpack.c.0.s8 %v2045
      %v2047 = vlaneseq
      %v2048 = vshrl.u32 %v2047, 7
      %v2049 = vsub.s32 %v2046, %v2048
      %v2050 = vrot.slane %v1634, %v2049
      %v2052 = vunpack.c.l.s4 1966171168
      %v2053 = vunpack.c.0.s8 %v2052
      %v2054 = vlaneseq
      %v2055 = vshrl.u32 %v2054, 7
      %v2056 = vsub.s32 %v2053, %v2055
      %v2057 = vrot.slane %v2043, %v2056
      %v2058 = vcombine.high %v2050, %v2050
      %v2059 = vcombine.high %v2057, %v2057
      %v2061 = vunpack.c.l.s4 1966171168
      %v2062 = vunpack.c.0.s8 %v2061
      %v2063 = vlaneseq
      %v2064 = vshrl.u32 %v2063, 7
      %v2065 = vsub.s32 %v2062, %v2064
      %v2066 = vrot.slane %v2050, %v2065
      %v2068 = vunpack.c.l.s4 1966171168
      %v2069 = vunpack.c.0.s8 %v2068
      %v2070 = vlaneseq
      %v2071 = vshrl.u32 %v2070, 7
      %v2072 = vsub.s32 %v2069, %v2071
      %v2073 = vrot.slane %v2057, %v2072
      %v2075 = vunpack.c.l.s4 1966171168
      %v2076 = vunpack.c.0.s8 %v2075
      %v2077 = vlaneseq
      %v2078 = vshrl.u32 %v2077, 7
      %v2079 = vsub.s32 %v2076, %v2078
      %v2080 = vrot.slane %v2058, %v2079
      %v2082 = vunpack.c.l.s4 1966171168
      %v2083 = vunpack.c.0.s8 %v2082
      %v2084 = vlaneseq
      %v2085 = vshrl.u32 %v2084, 7
      %v2086 = vsub.s32 %v2083, %v2085
      %v2087 = vrot.slane %v2059, %v2086
      %v2088 = vcombine.high %v2066, %v2066
      %v2089 = vcombine.high %v2073, %v2073
      %v2090 = vcombine.high %v2080, %v2080
      %v2091 = vcombine.high %v1636, %v1636
      %v2093 = vunpack.c.l.s4 1966171168
      %v2094 = vunpack.c.0.s8 %v2093
      %v2095 = vlaneseq
      %v2096 = vshrl.u32 %v2095, 7
      %v2097 = vsub.s32 %v2094, %v2096
      %v2098 = vrot.slane %v1636, %v2097
      %v2100 = vunpack.c.l.s4 1966171168
      %v2101 = vunpack.c.0.s8 %v2100
      %v2102 = vlaneseq
      %v2103 = vshrl.u32 %v2102, 7
      %v2104 = vsub.s32 %v2101, %v2103
      %v2105 = vrot.slane %v2091, %v2104
      %v2106 = vcombine.high %v2098, %v2098
      %v2107 = vcombine.high %v2105, %v2105
      %v2109 = vunpack.c.l.s4 1966171168
      %v2110 = vunpack.c.0.s8 %v2109
      %v2111 = vlaneseq
      %v2112 = vshrl.u32 %v2111, 7
      %v2113 = vsub.s32 %v2110, %v2112
      %v2114 = vrot.slane %v2098, %v2113
      %v2116 = vunpack.c.l.s4 1966171168
      %v2117 = vunpack.c.0.s8 %v2116
      %v2118 = vlaneseq
      %v2119 = vshrl.u32 %v2118, 7
      %v2120 = vsub.s32 %v2117, %v2119
      %v2121 = vrot.slane %v2105, %v2120
      %v2123 = vunpack.c.l.s4 1966171168
      %v2124 = vunpack.c.0.s8 %v2123
      %v2125 = vlaneseq
      %v2126 = vshrl.u32 %v2125, 7
      %v2127 = vsub.s32 %v2124, %v2126
      %v2128 = vrot.slane %v2106, %v2127
      %v2130 = vunpack.c.l.s4 1966171168
      %v2131 = vunpack.c.0.s8 %v2130
      %v2132 = vlaneseq
      %v2133 = vshrl.u32 %v2132, 7
      %v2134 = vsub.s32 %v2131, %v2133
      %v2135 = vrot.slane %v2107, %v2134
      %v2136 = vcombine.high %v2114, %v2114
      %v2137 = vcombine.high %v2121, %v2121
      %v2138 = vcombine.high %v2128, %v2128
      %v2139 = vcombine.high %v1638, %v1638
      %v2141 = vunpack.c.l.s4 1966171168
      %v2142 = vunpack.c.0.s8 %v2141
      %v2143 = vlaneseq
      %v2144 = vshrl.u32 %v2143, 7
      %v2145 = vsub.s32 %v2142, %v2144
      %v2146 = vrot.slane %v1638, %v2145
      %v2148 = vunpack.c.l.s4 1966171168
      %v2149 = vunpack.c.0.s8 %v2148
      %v2150 = vlaneseq
      %v2151 = vshrl.u32 %v2150, 7
      %v2152 = vsub.s32 %v2149, %v2151
      %v2153 = vrot.slane %v2139, %v2152
      %v2154 = vcombine.high %v2146, %v2146
      %v2155 = vcombine.high %v2153, %v2153
      %v2157 = vunpack.c.l.s4 1966171168
      %v2158 = vunpack.c.0.s8 %v2157
      %v2159 = vlaneseq
      %v2160 = vshrl.u32 %v2159, 7
      %v2161 = vsub.s32 %v2158, %v2160
      %v2162 = vrot.slane %v2146, %v2161
      %v2164 = vunpack.c.l.s4 1966171168
      %v2165 = vunpack.c.0.s8 %v2164
      %v2166 = vlaneseq
      %v2167 = vshrl.u32 %v2166, 7
      %v2168 = vsub.s32 %v2165, %v2167
      %v2169 = vrot.slane %v2153, %v2168
      %v2171 = vunpack.c.l.s4 1966171168
      %v2172 = vunpack.c.0.s8 %v2171
      %v2173 = vlaneseq
      %v2174 = vshrl.u32 %v2173, 7
      %v2175 = vsub.s32 %v2172, %v2174
      %v2176 = vrot.slane %v2154, %v2175
      %v2178 = vunpack.c.l.s4 1966171168
      %v2179 = vunpack.c.0.s8 %v2178
      %v2180 = vlaneseq
      %v2181 = vshrl.u32 %v2180, 7
      %v2182 = vsub.s32 %v2179, %v2181
      %v2183 = vrot.slane %v2155, %v2182
      %v2184 = vcombine.high %v2162, %v2162
      %v2185 = vcombine.high %v2169, %v2169
      %v2186 = vcombine.high %v2176, %v2176
      %v2187 = vcombine.high %v1640, %v1640
      %v2189 = vunpack.c.l.s4 1966171168
      %v2190 = vunpack.c.0.s8 %v2189
      %v2191 = vlaneseq
      %v2192 = vshrl.u32 %v2191, 7
      %v2193 = vsub.s32 %v2190, %v2192
      %v2194 = vrot.slane %v1640, %v2193
      %v2196 = vunpack.c.l.s4 1966171168
      %v2197 = vunpack.c.0.s8 %v2196
      %v2198 = vlaneseq
      %v2199 = vshrl.u32 %v2198, 7
      %v2200 = vsub.s32 %v2197, %v2199
      %v2201 = vrot.slane %v2187, %v2200
      %v2202 = vcombine.high %v2194, %v2194
      %v2203 = vcombine.high %v2201, %v2201
      %v2205 = vunpack.c.l.s4 1966171168
      %v2206 = vunpack.c.0.s8 %v2205
      %v2207 = vlaneseq
      %v2208 = vshrl.u32 %v2207, 7
      %v2209 = vsub.s32 %v2206, %v2208
      %v2210 = vrot.slane %v2194, %v2209
      %v2212 = vunpack.c.l.s4 1966171168
      %v2213 = vunpack.c.0.s8 %v2212
      %v2214 = vlaneseq
      %v2215 = vshrl.u32 %v2214, 7
      %v2216 = vsub.s32 %v2213, %v2215
      %v2217 = vrot.slane %v2201, %v2216
      %v2219 = vunpack.c.l.s4 1966171168
      %v2220 = vunpack.c.0.s8 %v2219
      %v2221 = vlaneseq
      %v2222 = vshrl.u32 %v2221, 7
      %v2223 = vsub.s32 %v2220, %v2222
      %v2224 = vrot.slane %v2202, %v2223
      %v2226 = vunpack.c.l.s4 1966171168
      %v2227 = vunpack.c.0.s8 %v2226
      %v2228 = vlaneseq
      %v2229 = vshrl.u32 %v2228, 7
      %v2230 = vsub.s32 %v2227, %v2229
      %v2231 = vrot.slane %v2203, %v2230
      %v2232 = vcombine.high %v2210, %v2210
      %v2233 = vcombine.high %v2217, %v2217
      %v2234 = vcombine.high %v2224, %v2224
      %v2235 = vcombine.high %v1642, %v1642
      %v2237 = vunpack.c.l.s4 1966171168
      %v2238 = vunpack.c.0.s8 %v2237
      %v2239 = vlaneseq
      %v2240 = vshrl.u32 %v2239, 7
      %v2241 = vsub.s32 %v2238, %v2240
      %v2242 = vrot.slane %v1642, %v2241
      %v2244 = vunpack.c.l.s4 1966171168
      %v2245 = vunpack.c.0.s8 %v2244
      %v2246 = vlaneseq
      %v2247 = vshrl.u32 %v2246, 7
      %v2248 = vsub.s32 %v2245, %v2247
      %v2249 = vrot.slane %v2235, %v2248
      %v2250 = vcombine.high %v2242, %v2242
      %v2251 = vcombine.high %v2249, %v2249
      %v2253 = vunpack.c.l.s4 1966171168
      %v2254 = vunpack.c.0.s8 %v2253
      %v2255 = vlaneseq
      %v2256 = vshrl.u32 %v2255, 7
      %v2257 = vsub.s32 %v2254, %v2256
      %v2258 = vrot.slane %v2242, %v2257
      %v2260 = vunpack.c.l.s4 1966171168
      %v2261 = vunpack.c.0.s8 %v2260
      %v2262 = vlaneseq
      %v2263 = vshrl.u32 %v2262, 7
      %v2264 = vsub.s32 %v2261, %v2263
      %v2265 = vrot.slane %v2249, %v2264
      %v2267 = vunpack.c.l.s4 1966171168
      %v2268 = vunpack.c.0.s8 %v2267
      %v2269 = vlaneseq
      %v2270 = vshrl.u32 %v2269, 7
      %v2271 = vsub.s32 %v2268, %v2270
      %v2272 = vrot.slane %v2250, %v2271
      %v2274 = vunpack.c.l.s4 1966171168
      %v2275 = vunpack.c.0.s8 %v2274
      %v2276 = vlaneseq
      %v2277 = vshrl.u32 %v2276, 7
      %v2278 = vsub.s32 %v2275, %v2277
      %v2279 = vrot.slane %v2251, %v2278
      %v2280 = vcombine.high %v2258, %v2258
      %v2281 = vcombine.high %v2265, %v2265
      %v2282 = vcombine.high %v2272, %v2272
      %v2283 = vcombine.high %v1644, %v1644
      %v2285 = vunpack.c.l.s4 1966171168
      %v2286 = vunpack.c.0.s8 %v2285
      %v2287 = vlaneseq
      %v2288 = vshrl.u32 %v2287, 7
      %v2289 = vsub.s32 %v2286, %v2288
      %v2290 = vrot.slane %v1644, %v2289
      %v2292 = vunpack.c.l.s4 1966171168
      %v2293 = vunpack.c.0.s8 %v2292
      %v2294 = vlaneseq
      %v2295 = vshrl.u32 %v2294, 7
      %v2296 = vsub.s32 %v2293, %v2295
      %v2297 = vrot.slane %v2283, %v2296
      %v2298 = vcombine.high %v2290, %v2290
      %v2299 = vcombine.high %v2297, %v2297
      %v2301 = vunpack.c.l.s4 1966171168
      %v2302 = vunpack.c.0.s8 %v2301
      %v2303 = vlaneseq
      %v2304 = vshrl.u32 %v2303, 7
      %v2305 = vsub.s32 %v2302, %v2304
      %v2306 = vrot.slane %v2290, %v2305
      %v2308 = vunpack.c.l.s4 1966171168
      %v2309 = vunpack.c.0.s8 %v2308
      %v2310 = vlaneseq
      %v2311 = vshrl.u32 %v2310, 7
      %v2312 = vsub.s32 %v2309, %v2311
      %v2313 = vrot.slane %v2297, %v2312
      %v2315 = vunpack.c.l.s4 1966171168
      %v2316 = vunpack.c.0.s8 %v2315
      %v2317 = vlaneseq
      %v2318 = vshrl.u32 %v2317, 7
      %v2319 = vsub.s32 %v2316, %v2318
      %v2320 = vrot.slane %v2298, %v2319
      %v2322 = vunpack.c.l.s4 1966171168
      %v2323 = vunpack.c.0.s8 %v2322
      %v2324 = vlaneseq
      %v2325 = vshrl.u32 %v2324, 7
      %v2326 = vsub.s32 %v2323, %v2325
      %v2327 = vrot.slane %v2299, %v2326
      %v2328 = vcombine.high %v2306, %v2306
      %v2329 = vcombine.high %v2313, %v2313
      %v2330 = vcombine.high %v2320, %v2320
      %v2331 = vld [vmem:[%s1] sm:$0xf]
      %v2332 = vld [vmem:[%s1 + $0x4] sm:$0xf]
      %v2333 = vld [vmem:[%s1 + $0x8] sm:$0xf]
      %v2334 = vld [vmem:[%s1 + $0xc] sm:$0xf]
      %v2335 = vld [vmem:[%s1 + $0x10] sm:$0x3]
      %v2336 = vld [vmem:[%s2] sm:$0x1]
      %v2338 = vlaneseq
      %v2339 = vshrl.u32 %v2338, 7
      %v2340 = vsub.s32 0, %v2339
      %v2341 = vrot.slane %v2336, %v2340
      %v2343 = vcombine.low %v1682, %v1696
      %v2344 = vcombine.low %v1704, %v1706
      %v2345 = vcombine.low %v1689, %v1703
      %v2346 = vcombine.low %v1705, %v1730
      %v2348 = vunpack.c.l.s4 1966171168
      %v2349 = vunpack.c.0.s8 %v2348
      %v2350 = vlaneseq
      %v2351 = vshrl.u32 %v2350, 7
      %v2352 = vsub.s32 %v2349, %v2351
      %v2353 = vrot.slane %v2343, %v2352
      %v2355 = vunpack.c.l.s4 1966171168
      %v2356 = vunpack.c.0.s8 %v2355
      %v2357 = vlaneseq
      %v2358 = vshrl.u32 %v2357, 7
      %v2359 = vsub.s32 %v2356, %v2358
      %v2360 = vrot.slane %v2344, %v2359
      %v2362 = vunpack.c.l.s4 1966171168
      %v2363 = vunpack.c.0.s8 %v2362
      %v2364 = vlaneseq
      %v2365 = vshrl.u32 %v2364, 7
      %v2366 = vsub.s32 %v2363, %v2365
      %v2367 = vrot.slane %v2345, %v2366
      %v2369 = vunpack.c.l.s4 1966171168
      %v2370 = vunpack.c.0.s8 %v2369
      %v2371 = vlaneseq
      %v2372 = vshrl.u32 %v2371, 7
      %v2373 = vsub.s32 %v2370, %v2372
      %v2374 = vrot.slane %v2346, %v2373
      %v2375 = vcombine.low %v2353, %v2360
      %v2376 = vcombine.low %v2367, %v2374
      %v2378 = vunpack.c.l.s4 1966171168
      %v2379 = vunpack.c.0.s8 %v2378
      %v2380 = vlaneseq
      %v2381 = vshrl.u32 %v2380, 7
      %v2382 = vsub.s32 %v2379, %v2381
      %v2383 = vrot.slane %v2375, %v2382
      %v2385 = vunpack.c.l.s4 1966171168
      %v2386 = vunpack.c.0.s8 %v2385
      %v2387 = vlaneseq
      %v2388 = vshrl.u32 %v2387, 7
      %v2389 = vsub.s32 %v2386, %v2388
      %v2390 = vrot.slane %v2376, %v2389
      %v2391 = vcombine.low %v2383, %v2390
      %v2392 = vcombine.low %v1744, %v1752
      %v2393 = vcombine.low %v1754, %v1737
      %v2394 = vcombine.low %v1751, %v1753
      %v2395 = vcombine.low %v1778, %v1792
      %v2397 = vunpack.c.l.s4 1966171168
      %v2398 = vunpack.c.0.s8 %v2397
      %v2399 = vlaneseq
      %v2400 = vshrl.u32 %v2399, 7
      %v2401 = vsub.s32 %v2398, %v2400
      %v2402 = vrot.slane %v2392, %v2401
      %v2404 = vunpack.c.l.s4 1966171168
      %v2405 = vunpack.c.0.s8 %v2404
      %v2406 = vlaneseq
      %v2407 = vshrl.u32 %v2406, 7
      %v2408 = vsub.s32 %v2405, %v2407
      %v2409 = vrot.slane %v2393, %v2408
      %v2411 = vunpack.c.l.s4 1966171168
      %v2412 = vunpack.c.0.s8 %v2411
      %v2413 = vlaneseq
      %v2414 = vshrl.u32 %v2413, 7
      %v2415 = vsub.s32 %v2412, %v2414
      %v2416 = vrot.slane %v2394, %v2415
      %v2418 = vunpack.c.l.s4 1966171168
      %v2419 = vunpack.c.0.s8 %v2418
      %v2420 = vlaneseq
      %v2421 = vshrl.u32 %v2420, 7
      %v2422 = vsub.s32 %v2419, %v2421
      %v2423 = vrot.slane %v2395, %v2422
      %v2424 = vcombine.low %v2402, %v2409
      %v2425 = vcombine.low %v2416, %v2423
      %v2427 = vunpack.c.l.s4 1966171168
      %v2428 = vunpack.c.0.s8 %v2427
      %v2429 = vlaneseq
      %v2430 = vshrl.u32 %v2429, 7
      %v2431 = vsub.s32 %v2428, %v2430
      %v2432 = vrot.slane %v2424, %v2431
      %v2434 = vunpack.c.l.s4 1966171168
      %v2435 = vunpack.c.0.s8 %v2434
      %v2436 = vlaneseq
      %v2437 = vshrl.u32 %v2436, 7
      %v2438 = vsub.s32 %v2435, %v2437
      %v2439 = vrot.slane %v2425, %v2438
      %v2440 = vcombine.low %v2432, %v2439
      %v2441 = vcombine.low %v1800, %v1802
      %v2442 = vcombine.low %v1785, %v1799
      %v2443 = vcombine.low %v1801, %v1826
      %v2444 = vcombine.low %v1840, %v1848
      %v2446 = vunpack.c.l.s4 1966171168
      %v2447 = vunpack.c.0.s8 %v2446
      %v2448 = vlaneseq
      %v2449 = vshrl.u32 %v2448, 7
      %v2450 = vsub.s32 %v2447, %v2449
      %v2451 = vrot.slane %v2441, %v2450
      %v2453 = vunpack.c.l.s4 1966171168
      %v2454 = vunpack.c.0.s8 %v2453
      %v2455 = vlaneseq
      %v2456 = vshrl.u32 %v2455, 7
      %v2457 = vsub.s32 %v2454, %v2456
      %v2458 = vrot.slane %v2442, %v2457
      %v2460 = vunpack.c.l.s4 1966171168
      %v2461 = vunpack.c.0.s8 %v2460
      %v2462 = vlaneseq
      %v2463 = vshrl.u32 %v2462, 7
      %v2464 = vsub.s32 %v2461, %v2463
      %v2465 = vrot.slane %v2443, %v2464
      %v2467 = vunpack.c.l.s4 1966171168
      %v2468 = vunpack.c.0.s8 %v2467
      %v2469 = vlaneseq
      %v2470 = vshrl.u32 %v2469, 7
      %v2471 = vsub.s32 %v2468, %v2470
      %v2472 = vrot.slane %v2444, %v2471
      %v2473 = vcombine.low %v2451, %v2458
      %v2474 = vcombine.low %v2465, %v2472
      %v2476 = vunpack.c.l.s4 1966171168
      %v2477 = vunpack.c.0.s8 %v2476
      %v2478 = vlaneseq
      %v2479 = vshrl.u32 %v2478, 7
      %v2480 = vsub.s32 %v2477, %v2479
      %v2481 = vrot.slane %v2473, %v2480
      %v2483 = vunpack.c.l.s4 1966171168
      %v2484 = vunpack.c.0.s8 %v2483
      %v2485 = vlaneseq
      %v2486 = vshrl.u32 %v2485, 7
      %v2487 = vsub.s32 %v2484, %v2486
      %v2488 = vrot.slane %v2474, %v2487
      %v2489 = vcombine.low %v2481, %v2488
      %v2490 = vcombine.low %v1850, %v1833
      %v2491 = vcombine.low %v1847, %v1849
      %v2492 = vcombine.low %v1874, %v1888
      %v2493 = vcombine.low %v1896, %v1898
      %v2495 = vunpack.c.l.s4 1966171168
      %v2496 = vunpack.c.0.s8 %v2495
      %v2497 = vlaneseq
      %v2498 = vshrl.u32 %v2497, 7
      %v2499 = vsub.s32 %v2496, %v2498
      %v2500 = vrot.slane %v2490, %v2499
      %v2502 = vunpack.c.l.s4 1966171168
      %v2503 = vunpack.c.0.s8 %v2502
      %v2504 = vlaneseq
      %v2505 = vshrl.u32 %v2504, 7
      %v2506 = vsub.s32 %v2503, %v2505
      %v2507 = vrot.slane %v2491, %v2506
      %v2509 = vunpack.c.l.s4 1966171168
      %v2510 = vunpack.c.0.s8 %v2509
      %v2511 = vlaneseq
      %v2512 = vshrl.u32 %v2511, 7
      %v2513 = vsub.s32 %v2510, %v2512
      %v2514 = vrot.slane %v2492, %v2513
      %v2516 = vunpack.c.l.s4 1966171168
      %v2517 = vunpack.c.0.s8 %v2516
      %v2518 = vlaneseq
      %v2519 = vshrl.u32 %v2518, 7
      %v2520 = vsub.s32 %v2517, %v2519
      %v2521 = vrot.slane %v2493, %v2520
      %v2522 = vcombine.low %v2500, %v2507
      %v2523 = vcombine.low %v2514, %v2521
      %v2525 = vunpack.c.l.s4 1966171168
      %v2526 = vunpack.c.0.s8 %v2525
      %v2527 = vlaneseq
      %v2528 = vshrl.u32 %v2527, 7
      %v2529 = vsub.s32 %v2526, %v2528
      %v2530 = vrot.slane %v2522, %v2529
      %v2532 = vunpack.c.l.s4 1966171168
      %v2533 = vunpack.c.0.s8 %v2532
      %v2534 = vlaneseq
      %v2535 = vshrl.u32 %v2534, 7
      %v2536 = vsub.s32 %v2533, %v2535
      %v2537 = vrot.slane %v2523, %v2536
      %v2538 = vcombine.low %v2530, %v2537
      %v2539 = vcombine.low %v1881, %v1895
      %v2540 = vcombine.low %v1897, %v1922
      %v2541 = vcombine.low %v1936, %v1944
      %v2542 = vcombine.low %v1946, %v1929
      %v2544 = vunpack.c.l.s4 1966171168
      %v2545 = vunpack.c.0.s8 %v2544
      %v2546 = vlaneseq
      %v2547 = vshrl.u32 %v2546, 7
      %v2548 = vsub.s32 %v2545, %v2547
      %v2549 = vrot.slane %v2539, %v2548
      %v2551 = vunpack.c.l.s4 1966171168
      %v2552 = vunpack.c.0.s8 %v2551
      %v2553 = vlaneseq
      %v2554 = vshrl.u32 %v2553, 7
      %v2555 = vsub.s32 %v2552, %v2554
      %v2556 = vrot.slane %v2540, %v2555
      %v2558 = vunpack.c.l.s4 1966171168
      %v2559 = vunpack.c.0.s8 %v2558
      %v2560 = vlaneseq
      %v2561 = vshrl.u32 %v2560, 7
      %v2562 = vsub.s32 %v2559, %v2561
      %v2563 = vrot.slane %v2541, %v2562
      %v2565 = vunpack.c.l.s4 1966171168
      %v2566 = vunpack.c.0.s8 %v2565
      %v2567 = vlaneseq
      %v2568 = vshrl.u32 %v2567, 7
      %v2569 = vsub.s32 %v2566, %v2568
      %v2570 = vrot.slane %v2542, %v2569
      %v2571 = vcombine.low %v2549, %v2556
      %v2572 = vcombine.low %v2563, %v2570
      %v2574 = vunpack.c.l.s4 1966171168
      %v2575 = vunpack.c.0.s8 %v2574
      %v2576 = vlaneseq
      %v2577 = vshrl.u32 %v2576, 7
      %v2578 = vsub.s32 %v2575, %v2577
      %v2579 = vrot.slane %v2571, %v2578
      %v2581 = vunpack.c.l.s4 1966171168
      %v2582 = vunpack.c.0.s8 %v2581
      %v2583 = vlaneseq
      %v2584 = vshrl.u32 %v2583, 7
      %v2585 = vsub.s32 %v2582, %v2584
      %v2586 = vrot.slane %v2572, %v2585
      %v2587 = vcombine.low %v2579, %v2586
      %v2588 = vcombine.low %v1943, %v1945
      %v2589 = vcombine.low %v1970, %v1984
      %v2590 = vcombine.low %v1992, %v1994
      %v2591 = vcombine.low %v1977, %v1991
      %v2593 = vunpack.c.l.s4 1966171168
      %v2594 = vunpack.c.0.s8 %v2593
      %v2595 = vlaneseq
      %v2596 = vshrl.u32 %v2595, 7
      %v2597 = vsub.s32 %v2594, %v2596
      %v2598 = vrot.slane %v2588, %v2597
      %v2600 = vunpack.c.l.s4 1966171168
      %v2601 = vunpack.c.0.s8 %v2600
      %v2602 = vlaneseq
      %v2603 = vshrl.u32 %v2602, 7
      %v2604 = vsub.s32 %v2601, %v2603
      %v2605 = vrot.slane %v2589, %v2604
      %v2607 = vunpack.c.l.s4 1966171168
      %v2608 = vunpack.c.0.s8 %v2607
      %v2609 = vlaneseq
      %v2610 = vshrl.u32 %v2609, 7
      %v2611 = vsub.s32 %v2608, %v2610
      %v2612 = vrot.slane %v2590, %v2611
      %v2614 = vunpack.c.l.s4 1966171168
      %v2615 = vunpack.c.0.s8 %v2614
      %v2616 = vlaneseq
      %v2617 = vshrl.u32 %v2616, 7
      %v2618 = vsub.s32 %v2615, %v2617
      %v2619 = vrot.slane %v2591, %v2618
      %v2620 = vcombine.low %v2598, %v2605
      %v2621 = vcombine.low %v2612, %v2619
      %v2623 = vunpack.c.l.s4 1966171168
      %v2624 = vunpack.c.0.s8 %v2623
      %v2625 = vlaneseq
      %v2626 = vshrl.u32 %v2625, 7
      %v2627 = vsub.s32 %v2624, %v2626
      %v2628 = vrot.slane %v2620, %v2627
      %v2630 = vunpack.c.l.s4 1966171168
      %v2631 = vunpack.c.0.s8 %v2630
      %v2632 = vlaneseq
      %v2633 = vshrl.u32 %v2632, 7
      %v2634 = vsub.s32 %v2631, %v2633
      %v2635 = vrot.slane %v2621, %v2634
      %v2636 = vcombine.low %v2628, %v2635
      %v2637 = vcombine.low %v1993, %v2018
      %v2638 = vcombine.low %v2032, %v2040
      %v2639 = vcombine.low %v2042, %v2025
      %v2640 = vcombine.low %v2039, %v2041
      %v2642 = vunpack.c.l.s4 1966171168
      %v2643 = vunpack.c.0.s8 %v2642
      %v2644 = vlaneseq
      %v2645 = vshrl.u32 %v2644, 7
      %v2646 = vsub.s32 %v2643, %v2645
      %v2647 = vrot.slane %v2637, %v2646
      %v2649 = vunpack.c.l.s4 1966171168
      %v2650 = vunpack.c.0.s8 %v2649
      %v2651 = vlaneseq
      %v2652 = vshrl.u32 %v2651, 7
      %v2653 = vsub.s32 %v2650, %v2652
      %v2654 = vrot.slane %v2638, %v2653
      %v2656 = vunpack.c.l.s4 1966171168
      %v2657 = vunpack.c.0.s8 %v2656
      %v2658 = vlaneseq
      %v2659 = vshrl.u32 %v2658, 7
      %v2660 = vsub.s32 %v2657, %v2659
      %v2661 = vrot.slane %v2639, %v2660
      %v2663 = vunpack.c.l.s4 1966171168
      %v2664 = vunpack.c.0.s8 %v2663
      %v2665 = vlaneseq
      %v2666 = vshrl.u32 %v2665, 7
      %v2667 = vsub.s32 %v2664, %v2666
      %v2668 = vrot.slane %v2640, %v2667
      %v2669 = vcombine.low %v2647, %v2654
      %v2670 = vcombine.low %v2661, %v2668
      %v2672 = vunpack.c.l.s4 1966171168
      %v2673 = vunpack.c.0.s8 %v2672
      %v2674 = vlaneseq
      %v2675 = vshrl.u32 %v2674, 7
      %v2676 = vsub.s32 %v2673, %v2675
      %v2677 = vrot.slane %v2669, %v2676
      %v2679 = vunpack.c.l.s4 1966171168
      %v2680 = vunpack.c.0.s8 %v2679
      %v2681 = vlaneseq
      %v2682 = vshrl.u32 %v2681, 7
      %v2683 = vsub.s32 %v2680, %v2682
      %v2684 = vrot.slane %v2670, %v2683
      %v2685 = vcombine.low %v2677, %v2684
      %v2686 = vcombine.low %v2066, %v2080
      %v2687 = vcombine.low %v2088, %v2090
      %v2688 = vcombine.low %v2073, %v2087
      %v2689 = vcombine.low %v2089, %v2114
      %v2691 = vunpack.c.l.s4 1966171168
      %v2692 = vunpack.c.0.s8 %v2691
      %v2693 = vlaneseq
      %v2694 = vshrl.u32 %v2693, 7
      %v2695 = vsub.s32 %v2692, %v2694
      %v2696 = vrot.slane %v2686, %v2695
      %v2698 = vunpack.c.l.s4 1966171168
      %v2699 = vunpack.c.0.s8 %v2698
      %v2700 = vlaneseq
      %v2701 = vshrl.u32 %v2700, 7
      %v2702 = vsub.s32 %v2699, %v2701
      %v2703 = vrot.slane %v2687, %v2702
      %v2705 = vunpack.c.l.s4 1966171168
      %v2706 = vunpack.c.0.s8 %v2705
      %v2707 = vlaneseq
      %v2708 = vshrl.u32 %v2707, 7
      %v2709 = vsub.s32 %v2706, %v2708
      %v2710 = vrot.slane %v2688, %v2709
      %v2712 = vunpack.c.l.s4 1966171168
      %v2713 = vunpack.c.0.s8 %v2712
      %v2714 = vlaneseq
      %v2715 = vshrl.u32 %v2714, 7
      %v2716 = vsub.s32 %v2713, %v2715
      %v2717 = vrot.slane %v2689, %v2716
      %v2718 = vcombine.low %v2696, %v2703
      %v2719 = vcombine.low %v2710, %v2717
      %v2721 = vunpack.c.l.s4 1966171168
      %v2722 = vunpack.c.0.s8 %v2721
      %v2723 = vlaneseq
      %v2724 = vshrl.u32 %v2723, 7
      %v2725 = vsub.s32 %v2722, %v2724
      %v2726 = vrot.slane %v2718, %v2725
      %v2728 = vunpack.c.l.s4 1966171168
      %v2729 = vunpack.c.0.s8 %v2728
      %v2730 = vlaneseq
      %v2731 = vshrl.u32 %v2730, 7
      %v2732 = vsub.s32 %v2729, %v2731
      %v2733 = vrot.slane %v2719, %v2732
      %v2734 = vcombine.low %v2726, %v2733
      %v2735 = vcombine.low %v2128, %v2136
      %v2736 = vcombine.low %v2138, %v2121
      %v2737 = vcombine.low %v2135, %v2137
      %v2738 = vcombine.low %v2162, %v2176
      %v2740 = vunpack.c.l.s4 1966171168
      %v2741 = vunpack.c.0.s8 %v2740
      %v2742 = vlaneseq
      %v2743 = vshrl.u32 %v2742, 7
      %v2744 = vsub.s32 %v2741, %v2743
      %v2745 = vrot.slane %v2735, %v2744
      %v2747 = vunpack.c.l.s4 1966171168
      %v2748 = vunpack.c.0.s8 %v2747
      %v2749 = vlaneseq
      %v2750 = vshrl.u32 %v2749, 7
      %v2751 = vsub.s32 %v2748, %v2750
      %v2752 = vrot.slane %v2736, %v2751
      %v2754 = vunpack.c.l.s4 1966171168
      %v2755 = vunpack.c.0.s8 %v2754
      %v2756 = vlaneseq
      %v2757 = vshrl.u32 %v2756, 7
      %v2758 = vsub.s32 %v2755, %v2757
      %v2759 = vrot.slane %v2737, %v2758
      %v2761 = vunpack.c.l.s4 1966171168
      %v2762 = vunpack.c.0.s8 %v2761
      %v2763 = vlaneseq
      %v2764 = vshrl.u32 %v2763, 7
      %v2765 = vsub.s32 %v2762, %v2764
      %v2766 = vrot.slane %v2738, %v2765
      %v2767 = vcombine.low %v2745, %v2752
      %v2768 = vcombine.low %v2759, %v2766
      %v2770 = vunpack.c.l.s4 1966171168
      %v2771 = vunpack.c.0.s8 %v2770
      %v2772 = vlaneseq
      %v2773 = vshrl.u32 %v2772, 7
      %v2774 = vsub.s32 %v2771, %v2773
      %v2775 = vrot.slane %v2767, %v2774
      %v2777 = vunpack.c.l.s4 1966171168
      %v2778 = vunpack.c.0.s8 %v2777
      %v2779 = vlaneseq
      %v2780 = vshrl.u32 %v2779, 7
      %v2781 = vsub.s32 %v2778, %v2780
      %v2782 = vrot.slane %v2768, %v2781
      %v2783 = vcombine.low %v2775, %v2782
      %v2784 = vcombine.low %v2184, %v2186
      %v2785 = vcombine.low %v2169, %v2183
      %v2786 = vcombine.low %v2185, %v2210
      %v2787 = vcombine.low %v2224, %v2232
      %v2789 = vunpack.c.l.s4 1966171168
      %v2790 = vunpack.c.0.s8 %v2789
      %v2791 = vlaneseq
      %v2792 = vshrl.u32 %v2791, 7
      %v2793 = vsub.s32 %v2790, %v2792
      %v2794 = vrot.slane %v2784, %v2793
      %v2796 = vunpack.c.l.s4 1966171168
      %v2797 = vunpack.c.0.s8 %v2796
      %v2798 = vlaneseq
      %v2799 = vshrl.u32 %v2798, 7
      %v2800 = vsub.s32 %v2797, %v2799
      %v2801 = vrot.slane %v2785, %v2800
      %v2803 = vunpack.c.l.s4 1966171168
      %v2804 = vunpack.c.0.s8 %v2803
      %v2805 = vlaneseq
      %v2806 = vshrl.u32 %v2805, 7
      %v2807 = vsub.s32 %v2804, %v2806
      %v2808 = vrot.slane %v2786, %v2807
      %v2810 = vunpack.c.l.s4 1966171168
      %v2811 = vunpack.c.0.s8 %v2810
      %v2812 = vlaneseq
      %v2813 = vshrl.u32 %v2812, 7
      %v2814 = vsub.s32 %v2811, %v2813
      %v2815 = vrot.slane %v2787, %v2814
      %v2816 = vcombine.low %v2794, %v2801
      %v2817 = vcombine.low %v2808, %v2815
      %v2819 = vunpack.c.l.s4 1966171168
      %v2820 = vunpack.c.0.s8 %v2819
      %v2821 = vlaneseq
      %v2822 = vshrl.u32 %v2821, 7
      %v2823 = vsub.s32 %v2820, %v2822
      %v2824 = vrot.slane %v2816, %v2823
      %v2826 = vunpack.c.l.s4 1966171168
      %v2827 = vunpack.c.0.s8 %v2826
      %v2828 = vlaneseq
      %v2829 = vshrl.u32 %v2828, 7
      %v2830 = vsub.s32 %v2827, %v2829
      %v2831 = vrot.slane %v2817, %v2830
      %v2832 = vcombine.low %v2824, %v2831
      %v2833 = vcombine.low %v2234, %v2217
      %v2834 = vcombine.low %v2231, %v2233
      %v2835 = vcombine.low %v2258, %v2272
      %v2836 = vcombine.low %v2280, %v2282
      %v2838 = vunpack.c.l.s4 1966171168
      %v2839 = vunpack.c.0.s8 %v2838
      %v2840 = vlaneseq
      %v2841 = vshrl.u32 %v2840, 7
      %v2842 = vsub.s32 %v2839, %v2841
      %v2843 = vrot.slane %v2833, %v2842
      %v2845 = vunpack.c.l.s4 1966171168
      %v2846 = vunpack.c.0.s8 %v2845
      %v2847 = vlaneseq
      %v2848 = vshrl.u32 %v2847, 7
      %v2849 = vsub.s32 %v2846, %v2848
      %v2850 = vrot.slane %v2834, %v2849
      %v2852 = vunpack.c.l.s4 1966171168
      %v2853 = vunpack.c.0.s8 %v2852
      %v2854 = vlaneseq
      %v2855 = vshrl.u32 %v2854, 7
      %v2856 = vsub.s32 %v2853, %v2855
      %v2857 = vrot.slane %v2835, %v2856
      %v2859 = vunpack.c.l.s4 1966171168
      %v2860 = vunpack.c.0.s8 %v2859
      %v2861 = vlaneseq
      %v2862 = vshrl.u32 %v2861, 7
      %v2863 = vsub.s32 %v2860, %v2862
      %v2864 = vrot.slane %v2836, %v2863
      %v2865 = vcombine.low %v2843, %v2850
      %v2866 = vcombine.low %v2857, %v2864
      %v2868 = vunpack.c.l.s4 1966171168
      %v2869 = vunpack.c.0.s8 %v2868
      %v2870 = vlaneseq
      %v2871 = vshrl.u32 %v2870, 7
      %v2872 = vsub.s32 %v2869, %v2871
      %v2873 = vrot.slane %v2865, %v2872
      %v2875 = vunpack.c.l.s4 1966171168
      %v2876 = vunpack.c.0.s8 %v2875
      %v2877 = vlaneseq
      %v2878 = vshrl.u32 %v2877, 7
      %v2879 = vsub.s32 %v2876, %v2878
      %v2880 = vrot.slane %v2866, %v2879
      %v2881 = vcombine.low %v2873, %v2880
      %v2882 = vcombine.low %v2265, %v2279
      %v2883 = vcombine.low %v2281, %v2306
      %v2884 = vcombine.low %v2320, %v2328
      %v2885 = vcombine.low %v2330, %v2313
      %v2887 = vunpack.c.l.s4 1966171168
      %v2888 = vunpack.c.0.s8 %v2887
      %v2889 = vlaneseq
      %v2890 = vshrl.u32 %v2889, 7
      %v2891 = vsub.s32 %v2888, %v2890
      %v2892 = vrot.slane %v2882, %v2891
      %v2894 = vunpack.c.l.s4 1966171168
      %v2895 = vunpack.c.0.s8 %v2894
      %v2896 = vlaneseq
      %v2897 = vshrl.u32 %v2896, 7
      %v2898 = vsub.s32 %v2895, %v2897
      %v2899 = vrot.slane %v2883, %v2898
      %v2901 = vunpack.c.l.s4 1966171168
      %v2902 = vunpack.c.0.s8 %v2901
      %v2903 = vlaneseq
      %v2904 = vshrl.u32 %v2903, 7
      %v2905 = vsub.s32 %v2902, %v2904
      %v2906 = vrot.slane %v2884, %v2905
      %v2908 = vunpack.c.l.s4 1966171168
      %v2909 = vunpack.c.0.s8 %v2908
      %v2910 = vlaneseq
      %v2911 = vshrl.u32 %v2910, 7
      %v2912 = vsub.s32 %v2909, %v2911
      %v2913 = vrot.slane %v2885, %v2912
      %v2914 = vcombine.low %v2892, %v2899
      %v2915 = vcombine.low %v2906, %v2913
      %v2917 = vunpack.c.l.s4 1966171168
      %v2918 = vunpack.c.0.s8 %v2917
      %v2919 = vlaneseq
      %v2920 = vshrl.u32 %v2919, 7
      %v2921 = vsub.s32 %v2918, %v2920
      %v2922 = vrot.slane %v2914, %v2921
      %v2924 = vunpack.c.l.s4 1966171168
      %v2925 = vunpack.c.0.s8 %v2924
      %v2926 = vlaneseq
      %v2927 = vshrl.u32 %v2926, 7
      %v2928 = vsub.s32 %v2925, %v2927
      %v2929 = vrot.slane %v2915, %v2928
      %v2930 = vcombine.low %v2922, %v2929
      %v2931 = vcombine.low %v2327, %v2329
      %v2933 = vunpack.c.l.s4 1966171168
      %v2934 = vunpack.c.0.s8 %v2933
      %v2935 = vlaneseq
      %v2936 = vshrl.u32 %v2935, 7
      %v2937 = vsub.s32 %v2934, %v2936
      %v2938 = vrot.slane %v2931, %v2937
      %v2940 = vunpack.c.l.s4 1966171168
      %v2941 = vunpack.c.0.s8 %v2940
      %v2942 = vlaneseq
      %v2943 = vshrl.u32 %v2942, 7
      %v2944 = vsub.s32 %v2941, %v2943
      %v2945 = vrot.slane %v2938, %v2944
      %v2951 = vunpack.c.l.b16 %v2331
      %v2952 = vunpack.c.l.b16 %v2332
      %v2953 = vunpack.c.l.b16 %v2333
      %v2954 = vunpack.c.l.b16 %v2334
      %v2955 = vunpack.c.l.b16 %v2335
      %v2956 = vpack.c.b16 %v2952, %v2951
      %v2957 = vpack.c.b16 %v2954, %v2953
      %v2958 = vpack.c.b16 %v2955, %v2955
      %vm2961 = vcmask 293888
      %v2963 = vsel %vm2961, %v2391, 0
      %v2966 = vsel %vm2961, %v2440, 0
      %v2969 = vsel %vm2961, %v2489, 0
      %v2972 = vsel %vm2961, %v2538, 0
      %v2975 = vsel %vm2961, %v2587, 0
      %v2978 = vsel %vm2961, %v2636, 0
      %v2981 = vsel %vm2961, %v2685, 0
      %v2984 = vsel %vm2961, %v2734, 0
      %v2987 = vsel %vm2961, %v2783, 0
      %v2990 = vsel %vm2961, %v2832, 0
      %v2993 = vsel %vm2961, %v2881, 0
      %v2996 = vsel %vm2961, %v2930, 0
      %v2999 = vsel %vm2961, %v2945, 0
      %vm3001 = vcmask 1041408
      %v3003 = vsel %vm3001, %v2958, 0
      %3005 = vmatprep.subr.bf16.mxu0 0
      %3006 = vmatpush1.bf16.msra.mxu0 %v2956
      %3007 = vmatprep.subr.bf16.mxu0 0
      %3008 = vmatpush1.bf16.msra.mxu0 %v2957
      %3009 = vmatprep.subr.bf16.mxu0 0
      %3010 = vmatpush1.bf16.msra.mxu0 %v3003
      %3011 = vmatprep.subr.bf16.mxu0 0
      %3012 = vmatpush1.bf16.msra.mxu0 0
      %3013 = vmatprep.subr.bf16.mxu0 0
      %3014 = vmatpush1.bf16.msra.mxu0 0
      %3015 = vmatprep.subr.bf16.mxu0 0
      %3016 = vmatpush1.bf16.msra.mxu0 0
      %3017 = vmatprep.subr.bf16.mxu0 0
      %3018 = vmatpush1.bf16.msra.mxu0 0
      %3019 = vmatprep.subr.bf16.mxu0 0
      %3020 = vmatpush1.bf16.msra.mxu0 0
      %3021 = vmatprep.subr.bf16.mxu0 0
      %3022 = vmatpush1.bf16.msra.mxu0 0
      %3023 = vmatprep.subr.bf16.mxu0 0
      %3024 = vmatpush1.bf16.msra.mxu0 0
      %3025 = vmatprep.subr.bf16.mxu0 0
      %3026 = vmatpush1.bf16.msra.mxu0 0
      %3027 = vmatprep.subr.bf16.mxu0 0
      %3028 = vmatpush1.bf16.msra.mxu0 0
      %3029 = vmatprep.subr.bf16.mxu0 0
      %3030 = vmatpush1.bf16.msra.mxu0 0
      %3031 = vmatprep.subr.bf16.mxu0 0
      %3032 = vmatpush1.bf16.msra.mxu0 0
      %3033 = vmatprep.subr.bf16.mxu0 0
      %3034 = vmatpush1.bf16.msra.mxu0 0
      %3035 = vmatprep.subr.bf16.mxu0 0
      %3036 = vmatpush1.bf16.msra.mxu0 0
      %3037 = vmatprep.mubr.bf16.mxu0 0
      %3038 = vmatmul.mubr.bf16.gmra.mrb[0].mxu0 %v2963
      %v3039 = vpop.f32.mrb[0].mxu0
      %v3040 = vadd.f32 %v2341, %v3039
      %v3041 = vpop.f32.mrb[0].mxu0
      %v3042 = vpop.f32.mrb[0].mxu0
      %v3043 = vadd.f32 %v2341, %v3042
      %v3044 = vpop.f32.mrb[0].mxu0
      %3045 = vmatprep.mubr.bf16.mxu0 0
      %3046 = vmatmul.mubr.bf16.gmra.mrb[0].mxu0 %v2966
      %v3047 = vpop.f32.mrb[0].mxu0
      %v3048 = vadd.f32 %v2341, %v3047
      %v3049 = vpop.f32.mrb[0].mxu0
      %v3050 = vpop.f32.mrb[0].mxu0
      %v3051 = vadd.f32 %v2341, %v3050
      %v3052 = vpop.f32.mrb[0].mxu0
      %3053 = vmatprep.mubr.bf16.mxu0 0
      %3054 = vmatmul.mubr.bf16.gmra.mrb[0].mxu0 %v2969
      %v3055 = vpop.f32.mrb[0].mxu0
      %v3056 = vadd.f32 %v2341, %v3055
      %v3057 = vpop.f32.mrb[0].mxu0
      %v3058 = vpop.f32.mrb[0].mxu0
      %v3059 = vadd.f32 %v2341, %v3058
      %v3060 = vpop.f32.mrb[0].mxu0
      %3061 = vmatprep.mubr.bf16.mxu0 0
      %3062 = vmatmul.mubr.bf16.gmra.mrb[0].mxu0 %v2972
      %v3063 = vpop.f32.mrb[0].mxu0
      %v3064 = vadd.f32 %v2341, %v3063
      %v3065 = vpop.f32.mrb[0].mxu0
      %v3066 = vpop.f32.mrb[0].mxu0
      %v3067 = vadd.f32 %v2341, %v3066
      %v3068 = vpop.f32.mrb[0].mxu0
      %3069 = vmatprep.mubr.bf16.mxu0 0
      %3070 = vmatmul.mubr.bf16.gmra.mrb[0].mxu0 %v2975
      %v3071 = vpop.f32.mrb[0].mxu0
      %v3072 = vadd.f32 %v2341, %v3071
      %v3073 = vpop.f32.mrb[0].mxu0
      %v3074 = vpop.f32.mrb[0].mxu0
      %v3075 = vadd.f32 %v2341, %v3074
      %v3076 = vpop.f32.mrb[0].mxu0
      %3077 = vmatprep.mubr.bf16.mxu0 0
      %3078 = vmatmul.mubr.bf16.gmra.mrb[0].mxu0 %v2978
      %v3079 = vpop.f32.mrb[0].mxu0
      %v3080 = vadd.f32 %v2341, %v3079
      %v3081 = vpop.f32.mrb[0].mxu0
      %v3082 = vpop.f32.mrb[0].mxu0
      %v3083 = vadd.f32 %v2341, %v3082
      %v3084 = vpop.f32.mrb[0].mxu0
      %3085 = vmatprep.mubr.bf16.mxu0 0
      %3086 = vmatmul.mubr.bf16.gmra.mrb[0].mxu0 %v2981
      %v3087 = vpop.f32.mrb[0].mxu0
      %v3088 = vadd.f32 %v2341, %v3087
      %v3089 = vpop.f32.mrb[0].mxu0
      %v3090 = vpop.f32.mrb[0].mxu0
      %v3091 = vadd.f32 %v2341, %v3090
      %v3092 = vpop.f32.mrb[0].mxu0
      %3093 = vmatprep.mubr.bf16.mxu0 0
      %3094 = vmatmul.mubr.bf16.gmra.mrb[0].mxu0 %v2984
      %v3095 = vpop.f32.mrb[0].mxu0
      %v3096 = vadd.f32 %v2341, %v3095
      %v3097 = vpop.f32.mrb[0].mxu0
      %v3098 = vpop.f32.mrb[0].mxu0
      %v3099 = vadd.f32 %v2341, %v3098
      %v3100 = vpop.f32.mrb[0].mxu0
      %3101 = vmatprep.mubr.bf16.mxu0 0
      %3102 = vmatmul.mubr.bf16.gmra.mrb[0].mxu0 %v2987
      %v3103 = vpop.f32.mrb[0].mxu0
      %v3104 = vadd.f32 %v2341, %v3103
      %v3105 = vpop.f32.mrb[0].mxu0
      %v3106 = vpop.f32.mrb[0].mxu0
      %v3107 = vadd.f32 %v2341, %v3106
      %v3108 = vpop.f32.mrb[0].mxu0
      %3109 = vmatprep.mubr.bf16.mxu0 0
      %3110 = vmatmul.mubr.bf16.gmra.mrb[0].mxu0 %v2990
      %v3111 = vpop.f32.mrb[0].mxu0
      %v3112 = vadd.f32 %v2341, %v3111
      %v3113 = vpop.f32.mrb[0].mxu0
      %v3114 = vpop.f32.mrb[0].mxu0
      %v3115 = vadd.f32 %v2341, %v3114
      %v3116 = vpop.f32.mrb[0].mxu0
      %3117 = vmatprep.mubr.bf16.mxu0 0
      %3118 = vmatmul.mubr.bf16.gmra.mrb[0].mxu0 %v2993
      %v3119 = vpop.f32.mrb[0].mxu0
      %v3120 = vadd.f32 %v2341, %v3119
      %v3121 = vpop.f32.mrb[0].mxu0
      %v3122 = vpop.f32.mrb[0].mxu0
      %v3123 = vadd.f32 %v2341, %v3122
      %v3124 = vpop.f32.mrb[0].mxu0
      %3125 = vmatprep.mubr.bf16.mxu0 0
      %3126 = vmatmul.mubr.bf16.gmra.mrb[0].mxu0 %v2996
      %v3127 = vpop.f32.mrb[0].mxu0
      %v3128 = vadd.f32 %v2341, %v3127
      %v3129 = vpop.f32.mrb[0].mxu0
      %v3130 = vpop.f32.mrb[0].mxu0
      %v3131 = vadd.f32 %v2341, %v3130
      %v3132 = vpop.f32.mrb[0].mxu0
      %3133 = vmatprep.mubr.bf16.mxu0 0
      %3134 = vmatmul.mubr.bf16.gmra.mrb[0].mxu0 %v2999
      %v3135 = vpop.f32.mrb[0].mxu0
      %v3136 = vadd.f32 %v2341, %v3135
      %v3137 = vpop.f32.mrb[0].mxu0
      %v3138 = vpop.f32.mrb[0].mxu0
      %v3139 = vpop.f32.mrb[0].mxu0
      %3140 = vdwg.mxu0
      %vm3141 = vcmp.ge.f32.partialorder %v3040, 0.0
      %vm3142 = vcmp.ge.f32.partialorder %v3043, 0.0
      %vm3143 = vcmp.ge.f32.partialorder %v3048, 0.0
      %vm3144 = vcmp.ge.f32.partialorder %v3051, 0.0
      %vm3145 = vcmp.ge.f32.partialorder %v3056, 0.0
      %vm3146 = vcmp.ge.f32.partialorder %v3059, 0.0
      %vm3147 = vcmp.ge.f32.partialorder %v3064, 0.0
      %vm3148 = vcmp.ge.f32.partialorder %v3067, 0.0
      %vm3149 = vcmp.ge.f32.partialorder %v3072, 0.0
      %vm3150 = vcmp.ge.f32.partialorder %v3075, 0.0
      %vm3151 = vcmp.ge.f32.partialorder %v3080, 0.0
      %vm3152 = vcmp.ge.f32.partialorder %v3083, 0.0
      %vm3153 = vcmp.ge.f32.partialorder %v3088, 0.0
      %vm3154 = vcmp.ge.f32.partialorder %v3091, 0.0
      %vm3155 = vcmp.ge.f32.partialorder %v3096, 0.0
      %vm3156 = vcmp.ge.f32.partialorder %v3099, 0.0
      %vm3157 = vcmp.ge.f32.partialorder %v3104, 0.0
      %vm3158 = vcmp.ge.f32.partialorder %v3107, 0.0
      %vm3159 = vcmp.ge.f32.partialorder %v3112, 0.0
      %vm3160 = vcmp.ge.f32.partialorder %v3115, 0.0
      %vm3161 = vcmp.ge.f32.partialorder %v3120, 0.0
      %vm3162 = vcmp.ge.f32.partialorder %v3123, 0.0
      %vm3163 = vcmp.ge.f32.partialorder %v3128, 0.0
      %vm3164 = vcmp.ge.f32.partialorder %v3131, 0.0
      %vm3165 = vcmp.ge.f32.partialorder %v3136, 0.0
      %v3166 = vmul.f32 %v3040, 0.1
      %v3167 = vmul.f32 %v3043, 0.1
      %v3168 = vmul.f32 %v3048, 0.1
      %v3169 = vmul.f32 %v3051, 0.1
      %v3170 = vmul.f32 %v3056, 0.1
      %v3171 = vmul.f32 %v3059, 0.1
      %v3172 = vmul.f32 %v3064, 0.1
      %v3173 = vmul.f32 %v3067, 0.1
      %v3174 = vmul.f32 %v3072, 0.1
      %v3175 = vmul.f32 %v3075, 0.1
      %v3176 = vmul.f32 %v3080, 0.1
      %v3177 = vmul.f32 %v3083, 0.1
      %v3178 = vmul.f32 %v3088, 0.1
      %v3179 = vmul.f32 %v3091, 0.1
      %v3180 = vmul.f32 %v3096, 0.1
      %v3181 = vmul.f32 %v3099, 0.1
      %v3182 = vmul.f32 %v3104, 0.1
      %v3183 = vmul.f32 %v3107, 0.1
      %v3184 = vmul.f32 %v3112, 0.1
      %v3185 = vmul.f32 %v3115, 0.1
      %v3186 = vmul.f32 %v3120, 0.1
      %v3187 = vmul.f32 %v3123, 0.1
      %v3188 = vmul.f32 %v3128, 0.1
      %v3189 = vmul.f32 %v3131, 0.1
      %v3190 = vmul.f32 %v3136, 0.1
      %v3191 = vsel %vm3141, %v3040, %v3166
      %v3192 = vsel %vm3142, %v3043, %v3167
      %v3193 = vsel %vm3143, %v3048, %v3168
      %v3194 = vsel %vm3144, %v3051, %v3169
      %v3195 = vsel %vm3145, %v3056, %v3170
      %v3196 = vsel %vm3146, %v3059, %v3171
      %v3197 = vsel %vm3147, %v3064, %v3172
      %v3198 = vsel %vm3148, %v3067, %v3173
      %v3199 = vsel %vm3149, %v3072, %v3174
      %v3200 = vsel %vm3150, %v3075, %v3175
      %v3201 = vsel %vm3151, %v3080, %v3176
      %v3202 = vsel %vm3152, %v3083, %v3177
      %v3203 = vsel %vm3153, %v3088, %v3178
      %v3204 = vsel %vm3154, %v3091, %v3179
      %v3205 = vsel %vm3155, %v3096, %v3180
      %v3206 = vsel %vm3156, %v3099, %v3181
      %v3207 = vsel %vm3157, %v3104, %v3182
      %v3208 = vsel %vm3158, %v3107, %v3183
      %v3209 = vsel %vm3159, %v3112, %v3184
      %v3210 = vsel %vm3160, %v3115, %v3185
      %v3211 = vsel %vm3161, %v3120, %v3186
      %v3212 = vsel %vm3162, %v3123, %v3187
      %v3213 = vsel %vm3163, %v3128, %v3188
      %v3214 = vsel %vm3164, %v3131, %v3189
      %v3215 = vsel %vm3165, %v3136, %v3190
      %v3216 = vpack.c.bf16 %v3192, %v3191
      %v3217 = vpack.c.bf16 %v3194, %v3193
      %v3218 = vpack.c.bf16 %v3196, %v3195
      %v3219 = vpack.c.bf16 %v3198, %v3197
      %v3220 = vpack.c.bf16 %v3200, %v3199
      %v3221 = vpack.c.bf16 %v3202, %v3201
      %v3222 = vpack.c.bf16 %v3204, %v3203
      %v3223 = vpack.c.bf16 %v3206, %v3205
      %v3224 = vpack.c.bf16 %v3208, %v3207
      %v3225 = vpack.c.bf16 %v3210, %v3209
      %v3226 = vpack.c.bf16 %v3212, %v3211
      %v3227 = vpack.c.bf16 %v3214, %v3213
      %v3228 = vpack.c.bf16 %v3215, %v3215
      %v3242 = vcombine.high %v3216, %v3216
      %v3244 = vunpack.c.l.s4 1966171168
      %v3245 = vunpack.c.0.s8 %v3244
      %v3246 = vlaneseq
      %v3247 = vshrl.u32 %v3246, 7
      %v3248 = vsub.s32 %v3245, %v3247
      %v3249 = vrot.slane %v3216, %v3248
      %v3251 = vunpack.c.l.s4 1966171168
      %v3252 = vunpack.c.0.s8 %v3251
      %v3253 = vlaneseq
      %v3254 = vshrl.u32 %v3253, 7
      %v3255 = vsub.s32 %v3252, %v3254
      %v3256 = vrot.slane %v3242, %v3255
      %v3257 = vcombine.high %v3249, %v3249
      %v3258 = vcombine.high %v3256, %v3256
      %v3260 = vunpack.c.l.s4 1966171168
      %v3261 = vunpack.c.0.s8 %v3260
      %v3262 = vlaneseq
      %v3263 = vshrl.u32 %v3262, 7
      %v3264 = vsub.s32 %v3261, %v3263
      %v3265 = vrot.slane %v3249, %v3264
      %v3267 = vunpack.c.l.s4 1966171168
      %v3268 = vunpack.c.0.s8 %v3267
      %v3269 = vlaneseq
      %v3270 = vshrl.u32 %v3269, 7
      %v3271 = vsub.s32 %v3268, %v3270
      %v3272 = vrot.slane %v3256, %v3271
      %v3274 = vunpack.c.l.s4 1966171168
      %v3275 = vunpack.c.0.s8 %v3274
      %v3276 = vlaneseq
      %v3277 = vshrl.u32 %v3276, 7
      %v3278 = vsub.s32 %v3275, %v3277
      %v3279 = vrot.slane %v3257, %v3278
      %v3281 = vunpack.c.l.s4 1966171168
      %v3282 = vunpack.c.0.s8 %v3281
      %v3283 = vlaneseq
      %v3284 = vshrl.u32 %v3283, 7
      %v3285 = vsub.s32 %v3282, %v3284
      %v3286 = vrot.slane %v3258, %v3285
      %v3287 = vcombine.high %v3265, %v3265
      %v3288 = vcombine.high %v3272, %v3272
      %v3289 = vcombine.high %v3279, %v3279
      %v3290 = vcombine.high %v3286, %v3286
      %v3291 = vcombine.high %v3217, %v3217
      %v3293 = vunpack.c.l.s4 1966171168
      %v3294 = vunpack.c.0.s8 %v3293
      %v3295 = vlaneseq
      %v3296 = vshrl.u32 %v3295, 7
      %v3297 = vsub.s32 %v3294, %v3296
      %v3298 = vrot.slane %v3217, %v3297
      %v3300 = vunpack.c.l.s4 1966171168
      %v3301 = vunpack.c.0.s8 %v3300
      %v3302 = vlaneseq
      %v3303 = vshrl.u32 %v3302, 7
      %v3304 = vsub.s32 %v3301, %v3303
      %v3305 = vrot.slane %v3291, %v3304
      %v3306 = vcombine.high %v3298, %v3298
      %v3307 = vcombine.high %v3305, %v3305
      %v3309 = vunpack.c.l.s4 1966171168
      %v3310 = vunpack.c.0.s8 %v3309
      %v3311 = vlaneseq
      %v3312 = vshrl.u32 %v3311, 7
      %v3313 = vsub.s32 %v3310, %v3312
      %v3314 = vrot.slane %v3298, %v3313
      %v3316 = vunpack.c.l.s4 1966171168
      %v3317 = vunpack.c.0.s8 %v3316
      %v3318 = vlaneseq
      %v3319 = vshrl.u32 %v3318, 7
      %v3320 = vsub.s32 %v3317, %v3319
      %v3321 = vrot.slane %v3305, %v3320
      %v3323 = vunpack.c.l.s4 1966171168
      %v3324 = vunpack.c.0.s8 %v3323
      %v3325 = vlaneseq
      %v3326 = vshrl.u32 %v3325, 7
      %v3327 = vsub.s32 %v3324, %v3326
      %v3328 = vrot.slane %v3306, %v3327
      %v3330 = vunpack.c.l.s4 1966171168
      %v3331 = vunpack.c.0.s8 %v3330
      %v3332 = vlaneseq
      %v3333 = vshrl.u32 %v3332, 7
      %v3334 = vsub.s32 %v3331, %v3333
      %v3335 = vrot.slane %v3307, %v3334
      %v3336 = vcombine.high %v3314, %v3314
      %v3337 = vcombine.high %v3321, %v3321
      %v3338 = vcombine.high %v3328, %v3328
      %v3339 = vcombine.high %v3335, %v3335
      %v3340 = vcombine.high %v3218, %v3218
      %v3342 = vunpack.c.l.s4 1966171168
      %v3343 = vunpack.c.0.s8 %v3342
      %v3344 = vlaneseq
      %v3345 = vshrl.u32 %v3344, 7
      %v3346 = vsub.s32 %v3343, %v3345
      %v3347 = vrot.slane %v3218, %v3346
      %v3349 = vunpack.c.l.s4 1966171168
      %v3350 = vunpack.c.0.s8 %v3349
      %v3351 = vlaneseq
      %v3352 = vshrl.u32 %v3351, 7
      %v3353 = vsub.s32 %v3350, %v3352
      %v3354 = vrot.slane %v3340, %v3353
      %v3355 = vcombine.high %v3347, %v3347
      %v3356 = vcombine.high %v3354, %v3354
      %v3358 = vunpack.c.l.s4 1966171168
      %v3359 = vunpack.c.0.s8 %v3358
      %v3360 = vlaneseq
      %v3361 = vshrl.u32 %v3360, 7
      %v3362 = vsub.s32 %v3359, %v3361
      %v3363 = vrot.slane %v3347, %v3362
      %v3365 = vunpack.c.l.s4 1966171168
      %v3366 = vunpack.c.0.s8 %v3365
      %v3367 = vlaneseq
      %v3368 = vshrl.u32 %v3367, 7
      %v3369 = vsub.s32 %v3366, %v3368
      %v3370 = vrot.slane %v3354, %v3369
      %v3372 = vunpack.c.l.s4 1966171168
      %v3373 = vunpack.c.0.s8 %v3372
      %v3374 = vlaneseq
      %v3375 = vshrl.u32 %v3374, 7
      %v3376 = vsub.s32 %v3373, %v3375
      %v3377 = vrot.slane %v3355, %v3376
      %v3379 = vunpack.c.l.s4 1966171168
      %v3380 = vunpack.c.0.s8 %v3379
      %v3381 = vlaneseq
      %v3382 = vshrl.u32 %v3381, 7
      %v3383 = vsub.s32 %v3380, %v3382
      %v3384 = vrot.slane %v3356, %v3383
      %v3385 = vcombine.high %v3363, %v3363
      %v3386 = vcombine.high %v3370, %v3370
      %v3387 = vcombine.high %v3377, %v3377
      %v3388 = vcombine.high %v3384, %v3384
      %v3389 = vcombine.high %v3219, %v3219
      %v3391 = vunpack.c.l.s4 1966171168
      %v3392 = vunpack.c.0.s8 %v3391
      %v3393 = vlaneseq
      %v3394 = vshrl.u32 %v3393, 7
      %v3395 = vsub.s32 %v3392, %v3394
      %v3396 = vrot.slane %v3219, %v3395
      %v3398 = vunpack.c.l.s4 1966171168
      %v3399 = vunpack.c.0.s8 %v3398
      %v3400 = vlaneseq
      %v3401 = vshrl.u32 %v3400, 7
      %v3402 = vsub.s32 %v3399, %v3401
      %v3403 = vrot.slane %v3389, %v3402
      %v3404 = vcombine.high %v3396, %v3396
      %v3405 = vcombine.high %v3403, %v3403
      %v3407 = vunpack.c.l.s4 1966171168
      %v3408 = vunpack.c.0.s8 %v3407
      %v3409 = vlaneseq
      %v3410 = vshrl.u32 %v3409, 7
      %v3411 = vsub.s32 %v3408, %v3410
      %v3412 = vrot.slane %v3396, %v3411
      %v3414 = vunpack.c.l.s4 1966171168
      %v3415 = vunpack.c.0.s8 %v3414
      %v3416 = vlaneseq
      %v3417 = vshrl.u32 %v3416, 7
      %v3418 = vsub.s32 %v3415, %v3417
      %v3419 = vrot.slane %v3403, %v3418
      %v3421 = vunpack.c.l.s4 1966171168
      %v3422 = vunpack.c.0.s8 %v3421
      %v3423 = vlaneseq
      %v3424 = vshrl.u32 %v3423, 7
      %v3425 = vsub.s32 %v3422, %v3424
      %v3426 = vrot.slane %v3404, %v3425
      %v3428 = vunpack.c.l.s4 1966171168
      %v3429 = vunpack.c.0.s8 %v3428
      %v3430 = vlaneseq
      %v3431 = vshrl.u32 %v3430, 7
      %v3432 = vsub.s32 %v3429, %v3431
      %v3433 = vrot.slane %v3405, %v3432
      %v3434 = vcombine.high %v3412, %v3412
      %v3435 = vcombine.high %v3419, %v3419
      %v3436 = vcombine.high %v3426, %v3426
      %v3437 = vcombine.high %v3433, %v3433
      %v3438 = vcombine.high %v3220, %v3220
      %v3440 = vunpack.c.l.s4 1966171168
      %v3441 = vunpack.c.0.s8 %v3440
      %v3442 = vlaneseq
      %v3443 = vshrl.u32 %v3442, 7
      %v3444 = vsub.s32 %v3441, %v3443
      %v3445 = vrot.slane %v3220, %v3444
      %v3447 = vunpack.c.l.s4 1966171168
      %v3448 = vunpack.c.0.s8 %v3447
      %v3449 = vlaneseq
      %v3450 = vshrl.u32 %v3449, 7
      %v3451 = vsub.s32 %v3448, %v3450
      %v3452 = vrot.slane %v3438, %v3451
      %v3453 = vcombine.high %v3445, %v3445
      %v3454 = vcombine.high %v3452, %v3452
      %v3456 = vunpack.c.l.s4 1966171168
      %v3457 = vunpack.c.0.s8 %v3456
      %v3458 = vlaneseq
      %v3459 = vshrl.u32 %v3458, 7
      %v3460 = vsub.s32 %v3457, %v3459
      %v3461 = vrot.slane %v3445, %v3460
      %v3463 = vunpack.c.l.s4 1966171168
      %v3464 = vunpack.c.0.s8 %v3463
      %v3465 = vlaneseq
      %v3466 = vshrl.u32 %v3465, 7
      %v3467 = vsub.s32 %v3464, %v3466
      %v3468 = vrot.slane %v3452, %v3467
      %v3470 = vunpack.c.l.s4 1966171168
      %v3471 = vunpack.c.0.s8 %v3470
      %v3472 = vlaneseq
      %v3473 = vshrl.u32 %v3472, 7
      %v3474 = vsub.s32 %v3471, %v3473
      %v3475 = vrot.slane %v3453, %v3474
      %v3477 = vunpack.c.l.s4 1966171168
      %v3478 = vunpack.c.0.s8 %v3477
      %v3479 = vlaneseq
      %v3480 = vshrl.u32 %v3479, 7
      %v3481 = vsub.s32 %v3478, %v3480
      %v3482 = vrot.slane %v3454, %v3481
      %v3483 = vcombine.high %v3461, %v3461
      %v3484 = vcombine.high %v3468, %v3468
      %v3485 = vcombine.high %v3475, %v3475
      %v3486 = vcombine.high %v3482, %v3482
      %v3487 = vcombine.high %v3221, %v3221
      %v3489 = vunpack.c.l.s4 1966171168
      %v3490 = vunpack.c.0.s8 %v3489
      %v3491 = vlaneseq
      %v3492 = vshrl.u32 %v3491, 7
      %v3493 = vsub.s32 %v3490, %v3492
      %v3494 = vrot.slane %v3221, %v3493
      %v3496 = vunpack.c.l.s4 1966171168
      %v3497 = vunpack.c.0.s8 %v3496
      %v3498 = vlaneseq
      %v3499 = vshrl.u32 %v3498, 7
      %v3500 = vsub.s32 %v3497, %v3499
      %v3501 = vrot.slane %v3487, %v3500
      %v3502 = vcombine.high %v3494, %v3494
      %v3503 = vcombine.high %v3501, %v3501
      %v3505 = vunpack.c.l.s4 1966171168
      %v3506 = vunpack.c.0.s8 %v3505
      %v3507 = vlaneseq
      %v3508 = vshrl.u32 %v3507, 7
      %v3509 = vsub.s32 %v3506, %v3508
      %v3510 = vrot.slane %v3494, %v3509
      %v3512 = vunpack.c.l.s4 1966171168
      %v3513 = vunpack.c.0.s8 %v3512
      %v3514 = vlaneseq
      %v3515 = vshrl.u32 %v3514, 7
      %v3516 = vsub.s32 %v3513, %v3515
      %v3517 = vrot.slane %v3501, %v3516
      %v3519 = vunpack.c.l.s4 1966171168
      %v3520 = vunpack.c.0.s8 %v3519
      %v3521 = vlaneseq
      %v3522 = vshrl.u32 %v3521, 7
      %v3523 = vsub.s32 %v3520, %v3522
      %v3524 = vrot.slane %v3502, %v3523
      %v3526 = vunpack.c.l.s4 1966171168
      %v3527 = vunpack.c.0.s8 %v3526
      %v3528 = vlaneseq
      %v3529 = vshrl.u32 %v3528, 7
      %v3530 = vsub.s32 %v3527, %v3529
      %v3531 = vrot.slane %v3503, %v3530
      %v3532 = vcombine.high %v3510, %v3510
      %v3533 = vcombine.high %v3517, %v3517
      %v3534 = vcombine.high %v3524, %v3524
      %v3535 = vcombine.high %v3531, %v3531
      %v3536 = vcombine.high %v3222, %v3222
      %v3538 = vunpack.c.l.s4 1966171168
      %v3539 = vunpack.c.0.s8 %v3538
      %v3540 = vlaneseq
      %v3541 = vshrl.u32 %v3540, 7
      %v3542 = vsub.s32 %v3539, %v3541
      %v3543 = vrot.slane %v3222, %v3542
      %v3545 = vunpack.c.l.s4 1966171168
      %v3546 = vunpack.c.0.s8 %v3545
      %v3547 = vlaneseq
      %v3548 = vshrl.u32 %v3547, 7
      %v3549 = vsub.s32 %v3546, %v3548
      %v3550 = vrot.slane %v3536, %v3549
      %v3551 = vcombine.high %v3543, %v3543
      %v3552 = vcombine.high %v3550, %v3550
      %v3554 = vunpack.c.l.s4 1966171168
      %v3555 = vunpack.c.0.s8 %v3554
      %v3556 = vlaneseq
      %v3557 = vshrl.u32 %v3556, 7
      %v3558 = vsub.s32 %v3555, %v3557
      %v3559 = vrot.slane %v3543, %v3558
      %v3561 = vunpack.c.l.s4 1966171168
      %v3562 = vunpack.c.0.s8 %v3561
      %v3563 = vlaneseq
      %v3564 = vshrl.u32 %v3563, 7
      %v3565 = vsub.s32 %v3562, %v3564
      %v3566 = vrot.slane %v3550, %v3565
      %v3568 = vunpack.c.l.s4 1966171168
      %v3569 = vunpack.c.0.s8 %v3568
      %v3570 = vlaneseq
      %v3571 = vshrl.u32 %v3570, 7
      %v3572 = vsub.s32 %v3569, %v3571
      %v3573 = vrot.slane %v3551, %v3572
      %v3575 = vunpack.c.l.s4 1966171168
      %v3576 = vunpack.c.0.s8 %v3575
      %v3577 = vlaneseq
      %v3578 = vshrl.u32 %v3577, 7
      %v3579 = vsub.s32 %v3576, %v3578
      %v3580 = vrot.slane %v3552, %v3579
      %v3581 = vcombine.high %v3559, %v3559
      %v3582 = vcombine.high %v3566, %v3566
      %v3583 = vcombine.high %v3573, %v3573
      %v3584 = vcombine.high %v3580, %v3580
      %v3585 = vcombine.high %v3223, %v3223
      %v3587 = vunpack.c.l.s4 1966171168
      %v3588 = vunpack.c.0.s8 %v3587
      %v3589 = vlaneseq
      %v3590 = vshrl.u32 %v3589, 7
      %v3591 = vsub.s32 %v3588, %v3590
      %v3592 = vrot.slane %v3223, %v3591
      %v3594 = vunpack.c.l.s4 1966171168
      %v3595 = vunpack.c.0.s8 %v3594
      %v3596 = vlaneseq
      %v3597 = vshrl.u32 %v3596, 7
      %v3598 = vsub.s32 %v3595, %v3597
      %v3599 = vrot.slane %v3585, %v3598
      %v3600 = vcombine.high %v3592, %v3592
      %v3601 = vcombine.high %v3599, %v3599
      %v3603 = vunpack.c.l.s4 1966171168
      %v3604 = vunpack.c.0.s8 %v3603
      %v3605 = vlaneseq
      %v3606 = vshrl.u32 %v3605, 7
      %v3607 = vsub.s32 %v3604, %v3606
      %v3608 = vrot.slane %v3592, %v3607
      %v3610 = vunpack.c.l.s4 1966171168
      %v3611 = vunpack.c.0.s8 %v3610
      %v3612 = vlaneseq
      %v3613 = vshrl.u32 %v3612, 7
      %v3614 = vsub.s32 %v3611, %v3613
      %v3615 = vrot.slane %v3599, %v3614
      %v3617 = vunpack.c.l.s4 1966171168
      %v3618 = vunpack.c.0.s8 %v3617
      %v3619 = vlaneseq
      %v3620 = vshrl.u32 %v3619, 7
      %v3621 = vsub.s32 %v3618, %v3620
      %v3622 = vrot.slane %v3600, %v3621
      %v3624 = vunpack.c.l.s4 1966171168
      %v3625 = vunpack.c.0.s8 %v3624
      %v3626 = vlaneseq
      %v3627 = vshrl.u32 %v3626, 7
      %v3628 = vsub.s32 %v3625, %v3627
      %v3629 = vrot.slane %v3601, %v3628
      %v3630 = vcombine.high %v3608, %v3608
      %v3631 = vcombine.high %v3615, %v3615
      %v3632 = vcombine.high %v3622, %v3622
      %v3633 = vcombine.high %v3629, %v3629
      %v3634 = vcombine.high %v3224, %v3224
      %v3636 = vunpack.c.l.s4 1966171168
      %v3637 = vunpack.c.0.s8 %v3636
      %v3638 = vlaneseq
      %v3639 = vshrl.u32 %v3638, 7
      %v3640 = vsub.s32 %v3637, %v3639
      %v3641 = vrot.slane %v3224, %v3640
      %v3643 = vunpack.c.l.s4 1966171168
      %v3644 = vunpack.c.0.s8 %v3643
      %v3645 = vlaneseq
      %v3646 = vshrl.u32 %v3645, 7
      %v3647 = vsub.s32 %v3644, %v3646
      %v3648 = vrot.slane %v3634, %v3647
      %v3649 = vcombine.high %v3641, %v3641
      %v3650 = vcombine.high %v3648, %v3648
      %v3652 = vunpack.c.l.s4 1966171168
      %v3653 = vunpack.c.0.s8 %v3652
      %v3654 = vlaneseq
      %v3655 = vshrl.u32 %v3654, 7
      %v3656 = vsub.s32 %v3653, %v3655
      %v3657 = vrot.slane %v3641, %v3656
      %v3659 = vunpack.c.l.s4 1966171168
      %v3660 = vunpack.c.0.s8 %v3659
      %v3661 = vlaneseq
      %v3662 = vshrl.u32 %v3661, 7
      %v3663 = vsub.s32 %v3660, %v3662
      %v3664 = vrot.slane %v3648, %v3663
      %v3666 = vunpack.c.l.s4 1966171168
      %v3667 = vunpack.c.0.s8 %v3666
      %v3668 = vlaneseq
      %v3669 = vshrl.u32 %v3668, 7
      %v3670 = vsub.s32 %v3667, %v3669
      %v3671 = vrot.slane %v3649, %v3670
      %v3673 = vunpack.c.l.s4 1966171168
      %v3674 = vunpack.c.0.s8 %v3673
      %v3675 = vlaneseq
      %v3676 = vshrl.u32 %v3675, 7
      %v3677 = vsub.s32 %v3674, %v3676
      %v3678 = vrot.slane %v3650, %v3677
      %v3679 = vcombine.high %v3657, %v3657
      %v3680 = vcombine.high %v3664, %v3664
      %v3681 = vcombine.high %v3671, %v3671
      %v3682 = vcombine.high %v3678, %v3678
      %v3683 = vcombine.high %v3225, %v3225
      %v3685 = vunpack.c.l.s4 1966171168
      %v3686 = vunpack.c.0.s8 %v3685
      %v3687 = vlaneseq
      %v3688 = vshrl.u32 %v3687, 7
      %v3689 = vsub.s32 %v3686, %v3688
      %v3690 = vrot.slane %v3225, %v3689
      %v3692 = vunpack.c.l.s4 1966171168
      %v3693 = vunpack.c.0.s8 %v3692
      %v3694 = vlaneseq
      %v3695 = vshrl.u32 %v3694, 7
      %v3696 = vsub.s32 %v3693, %v3695
      %v3697 = vrot.slane %v3683, %v3696
      %v3698 = vcombine.high %v3690, %v3690
      %v3699 = vcombine.high %v3697, %v3697
      %v3701 = vunpack.c.l.s4 1966171168
      %v3702 = vunpack.c.0.s8 %v3701
      %v3703 = vlaneseq
      %v3704 = vshrl.u32 %v3703, 7
      %v3705 = vsub.s32 %v3702, %v3704
      %v3706 = vrot.slane %v3690, %v3705
      %v3708 = vunpack.c.l.s4 1966171168
      %v3709 = vunpack.c.0.s8 %v3708
      %v3710 = vlaneseq
      %v3711 = vshrl.u32 %v3710, 7
      %v3712 = vsub.s32 %v3709, %v3711
      %v3713 = vrot.slane %v3697, %v3712
      %v3715 = vunpack.c.l.s4 1966171168
      %v3716 = vunpack.c.0.s8 %v3715
      %v3717 = vlaneseq
      %v3718 = vshrl.u32 %v3717, 7
      %v3719 = vsub.s32 %v3716, %v3718
      %v3720 = vrot.slane %v3698, %v3719
      %v3722 = vunpack.c.l.s4 1966171168
      %v3723 = vunpack.c.0.s8 %v3722
      %v3724 = vlaneseq
      %v3725 = vshrl.u32 %v3724, 7
      %v3726 = vsub.s32 %v3723, %v3725
      %v3727 = vrot.slane %v3699, %v3726
      %v3728 = vcombine.high %v3706, %v3706
      %v3729 = vcombine.high %v3713, %v3713
      %v3730 = vcombine.high %v3720, %v3720
      %v3731 = vcombine.high %v3727, %v3727
      %v3732 = vcombine.high %v3226, %v3226
      %v3734 = vunpack.c.l.s4 1966171168
      %v3735 = vunpack.c.0.s8 %v3734
      %v3736 = vlaneseq
      %v3737 = vshrl.u32 %v3736, 7
      %v3738 = vsub.s32 %v3735, %v3737
      %v3739 = vrot.slane %v3226, %v3738
      %v3741 = vunpack.c.l.s4 1966171168
      %v3742 = vunpack.c.0.s8 %v3741
      %v3743 = vlaneseq
      %v3744 = vshrl.u32 %v3743, 7
      %v3745 = vsub.s32 %v3742, %v3744
      %v3746 = vrot.slane %v3732, %v3745
      %v3747 = vcombine.high %v3739, %v3739
      %v3748 = vcombine.high %v3746, %v3746
      %v3750 = vunpack.c.l.s4 1966171168
      %v3751 = vunpack.c.0.s8 %v3750
      %v3752 = vlaneseq
      %v3753 = vshrl.u32 %v3752, 7
      %v3754 = vsub.s32 %v3751, %v3753
      %v3755 = vrot.slane %v3739, %v3754
      %v3757 = vunpack.c.l.s4 1966171168
      %v3758 = vunpack.c.0.s8 %v3757
      %v3759 = vlaneseq
      %v3760 = vshrl.u32 %v3759, 7
      %v3761 = vsub.s32 %v3758, %v3760
      %v3762 = vrot.slane %v3746, %v3761
      %v3764 = vunpack.c.l.s4 1966171168
      %v3765 = vunpack.c.0.s8 %v3764
      %v3766 = vlaneseq
      %v3767 = vshrl.u32 %v3766, 7
      %v3768 = vsub.s32 %v3765, %v3767
      %v3769 = vrot.slane %v3747, %v3768
      %v3771 = vunpack.c.l.s4 1966171168
      %v3772 = vunpack.c.0.s8 %v3771
      %v3773 = vlaneseq
      %v3774 = vshrl.u32 %v3773, 7
      %v3775 = vsub.s32 %v3772, %v3774
      %v3776 = vrot.slane %v3748, %v3775
      %v3777 = vcombine.high %v3755, %v3755
      %v3778 = vcombine.high %v3762, %v3762
      %v3779 = vcombine.high %v3769, %v3769
      %v3780 = vcombine.high %v3776, %v3776
      %v3781 = vcombine.high %v3227, %v3227
      %v3783 = vunpack.c.l.s4 1966171168
      %v3784 = vunpack.c.0.s8 %v3783
      %v3785 = vlaneseq
      %v3786 = vshrl.u32 %v3785, 7
      %v3787 = vsub.s32 %v3784, %v3786
      %v3788 = vrot.slane %v3227, %v3787
      %v3790 = vunpack.c.l.s4 1966171168
      %v3791 = vunpack.c.0.s8 %v3790
      %v3792 = vlaneseq
      %v3793 = vshrl.u32 %v3792, 7
      %v3794 = vsub.s32 %v3791, %v3793
      %v3795 = vrot.slane %v3781, %v3794
      %v3796 = vcombine.high %v3788, %v3788
      %v3797 = vcombine.high %v3795, %v3795
      %v3799 = vunpack.c.l.s4 1966171168
      %v3800 = vunpack.c.0.s8 %v3799
      %v3801 = vlaneseq
      %v3802 = vshrl.u32 %v3801, 7
      %v3803 = vsub.s32 %v3800, %v3802
      %v3804 = vrot.slane %v3788, %v3803
      %v3806 = vunpack.c.l.s4 1966171168
      %v3807 = vunpack.c.0.s8 %v3806
      %v3808 = vlaneseq
      %v3809 = vshrl.u32 %v3808, 7
      %v3810 = vsub.s32 %v3807, %v3809
      %v3811 = vrot.slane %v3795, %v3810
      %v3813 = vunpack.c.l.s4 1966171168
      %v3814 = vunpack.c.0.s8 %v3813
      %v3815 = vlaneseq
      %v3816 = vshrl.u32 %v3815, 7
      %v3817 = vsub.s32 %v3814, %v3816
      %v3818 = vrot.slane %v3796, %v3817
      %v3820 = vunpack.c.l.s4 1966171168
      %v3821 = vunpack.c.0.s8 %v3820
      %v3822 = vlaneseq
      %v3823 = vshrl.u32 %v3822, 7
      %v3824 = vsub.s32 %v3821, %v3823
      %v3825 = vrot.slane %v3797, %v3824
      %v3826 = vcombine.high %v3804, %v3804
      %v3827 = vcombine.high %v3811, %v3811
      %v3828 = vcombine.high %v3818, %v3818
      %v3829 = vcombine.high %v3825, %v3825
      %v3831 = vunpack.c.l.s4 1966171168
      %v3832 = vunpack.c.0.s8 %v3831
      %v3833 = vlaneseq
      %v3834 = vshrl.u32 %v3833, 7
      %v3835 = vsub.s32 %v3832, %v3834
      %v3836 = vrot.slane %v3228, %v3835
      %v3837 = vcombine.high %v3836, %v3836
      %v3839 = vunpack.c.l.s4 1966171168
      %v3840 = vunpack.c.0.s8 %v3839
      %v3841 = vlaneseq
      %v3842 = vshrl.u32 %v3841, 7
      %v3843 = vsub.s32 %v3840, %v3842
      %v3844 = vrot.slane %v3836, %v3843
      %v3846 = vunpack.c.l.s4 1966171168
      %v3847 = vunpack.c.0.s8 %v3846
      %v3848 = vlaneseq
      %v3849 = vshrl.u32 %v3848, 7
      %v3850 = vsub.s32 %v3847, %v3849
      %v3851 = vrot.slane %v3837, %v3850
      %v3852 = vcombine.low %v3265, %v3287
      %v3853 = vcombine.low %v3279, %v3289
      %v3855 = vunpack.c.l.s4 1935823168
      %v3856 = vunpack.c.0.s8 %v3855
      %v3857 = vlaneseq
      %v3858 = vshrl.u32 %v3857, 7
      %v3859 = vsub.s32 %v3856, %v3858
      %v3860 = vrot.slane %v3852, %v3859
      %v3862 = vunpack.c.l.s4 1935823168
      %v3863 = vunpack.c.0.s8 %v3862
      %v3864 = vlaneseq
      %v3865 = vshrl.u32 %v3864, 7
      %v3866 = vsub.s32 %v3863, %v3865
      %v3867 = vrot.slane %v3853, %v3866
      %v3868 = vcombine.low %v3860, %v3867
      %v3870 = vunpack.c.l.s4 1935823168
      %v3871 = vunpack.c.0.s8 %v3870
      %v3872 = vlaneseq
      %v3873 = vshrl.u32 %v3872, 7
      %v3874 = vsub.s32 %v3871, %v3873
      %v3875 = vrot.slane %v3868, %v3874
      %v3876 = vcombine.low %v3272, %v3288
      %v3878 = vunpack.c.l.s4 1935823168
      %v3879 = vunpack.c.0.s8 %v3878
      %v3880 = vlaneseq
      %v3881 = vshrl.u32 %v3880, 7
      %v3882 = vsub.s32 %v3879, %v3881
      %v3883 = vrot.slane %v3876, %v3882
      %v3885 = vunpack.c.l.s4 1935823168
      %v3886 = vunpack.c.0.s8 %v3885
      %v3887 = vlaneseq
      %v3888 = vshrl.u32 %v3887, 7
      %v3889 = vsub.s32 %v3886, %v3888
      %v3890 = vrot.slane %v3286, %v3889
      %v3891 = vcombine.low %v3883, %v3890
      %v3893 = vunpack.c.l.s4 1935823168
      %v3894 = vunpack.c.0.s8 %v3893
      %v3895 = vlaneseq
      %v3896 = vshrl.u32 %v3895, 7
      %v3897 = vsub.s32 %v3894, %v3896
      %v3898 = vrot.slane %v3891, %v3897
      %v3899 = vcombine.low %v3290, %v3328
      %v3900 = vcombine.low %v3314, %v3336
      %v3902 = vunpack.c.l.s4 1935823168
      %v3903 = vunpack.c.0.s8 %v3902
      %v3904 = vlaneseq
      %v3905 = vshrl.u32 %v3904, 7
      %v3906 = vsub.s32 %v3903, %v3905
      %v3907 = vrot.slane %v3899, %v3906
      %v3909 = vunpack.c.l.s4 1935823168
      %v3910 = vunpack.c.0.s8 %v3909
      %v3911 = vlaneseq
      %v3912 = vshrl.u32 %v3911, 7
      %v3913 = vsub.s32 %v3910, %v3912
      %v3914 = vrot.slane %v3900, %v3913
      %v3915 = vcombine.low %v3907, %v3914
      %v3917 = vunpack.c.l.s4 1935823168
      %v3918 = vunpack.c.0.s8 %v3917
      %v3919 = vlaneseq
      %v3920 = vshrl.u32 %v3919, 7
      %v3921 = vsub.s32 %v3918, %v3920
      %v3922 = vrot.slane %v3915, %v3921
      %v3923 = vcombine.low %v3338, %v3335
      %v3925 = vunpack.c.l.s4 1935823168
      %v3926 = vunpack.c.0.s8 %v3925
      %v3927 = vlaneseq
      %v3928 = vshrl.u32 %v3927, 7
      %v3929 = vsub.s32 %v3926, %v3928
      %v3930 = vrot.slane %v3923, %v3929
      %v3932 = vunpack.c.l.s4 1935823168
      %v3933 = vunpack.c.0.s8 %v3932
      %v3934 = vlaneseq
      %v3935 = vshrl.u32 %v3934, 7
      %v3936 = vsub.s32 %v3933, %v3935
      %v3937 = vrot.slane %v3321, %v3936
      %v3938 = vcombine.low %v3930, %v3937
      %v3940 = vunpack.c.l.s4 1935823168
      %v3941 = vunpack.c.0.s8 %v3940
      %v3942 = vlaneseq
      %v3943 = vshrl.u32 %v3942, 7
      %v3944 = vsub.s32 %v3941, %v3943
      %v3945 = vrot.slane %v3938, %v3944
      %v3946 = vcombine.low %v3337, %v3363
      %v3947 = vcombine.low %v3339, %v3377
      %v3949 = vunpack.c.l.s4 1935823168
      %v3950 = vunpack.c.0.s8 %v3949
      %v3951 = vlaneseq
      %v3952 = vshrl.u32 %v3951, 7
      %v3953 = vsub.s32 %v3950, %v3952
      %v3954 = vrot.slane %v3946, %v3953
      %v3956 = vunpack.c.l.s4 1935823168
      %v3957 = vunpack.c.0.s8 %v3956
      %v3958 = vlaneseq
      %v3959 = vshrl.u32 %v3958, 7
      %v3960 = vsub.s32 %v3957, %v3959
      %v3961 = vrot.slane %v3947, %v3960
      %v3962 = vcombine.low %v3954, %v3961
      %v3964 = vunpack.c.l.s4 1935823168
      %v3965 = vunpack.c.0.s8 %v3964
      %v3966 = vlaneseq
      %v3967 = vshrl.u32 %v3966, 7
      %v3968 = vsub.s32 %v3965, %v3967
      %v3969 = vrot.slane %v3962, %v3968
      %v3970 = vcombine.low %v3385, %v3370
      %v3972 = vunpack.c.l.s4 1935823168
      %v3973 = vunpack.c.0.s8 %v3972
      %v3974 = vlaneseq
      %v3975 = vshrl.u32 %v3974, 7
      %v3976 = vsub.s32 %v3973, %v3975
      %v3977 = vrot.slane %v3970, %v3976
      %v3979 = vunpack.c.l.s4 1935823168
      %v3980 = vunpack.c.0.s8 %v3979
      %v3981 = vlaneseq
      %v3982 = vshrl.u32 %v3981, 7
      %v3983 = vsub.s32 %v3980, %v3982
      %v3984 = vrot.slane %v3387, %v3983
      %v3985 = vcombine.low %v3977, %v3984
      %v3987 = vunpack.c.l.s4 1935823168
      %v3988 = vunpack.c.0.s8 %v3987
      %v3989 = vlaneseq
      %v3990 = vshrl.u32 %v3989, 7
      %v3991 = vsub.s32 %v3988, %v3990
      %v3992 = vrot.slane %v3985, %v3991
      %v3993 = vcombine.low %v3384, %v3388
      %v3994 = vcombine.low %v3386, %v3412
      %v3996 = vunpack.c.l.s4 1935823168
      %v3997 = vunpack.c.0.s8 %v3996
      %v3998 = vlaneseq
      %v3999 = vshrl.u32 %v3998, 7
      %v4000 = vsub.s32 %v3997, %v3999
      %v4001 = vrot.slane %v3993, %v4000
      %v4003 = vunpack.c.l.s4 1935823168
      %v4004 = vunpack.c.0.s8 %v4003
      %v4005 = vlaneseq
      %v4006 = vshrl.u32 %v4005, 7
      %v4007 = vsub.s32 %v4004, %v4006
      %v4008 = vrot.slane %v3994, %v4007
      %v4009 = vcombine.low %v4001, %v4008
      %v4011 = vunpack.c.l.s4 1935823168
      %v4012 = vunpack.c.0.s8 %v4011
      %v4013 = vlaneseq
      %v4014 = vshrl.u32 %v4013, 7
      %v4015 = vsub.s32 %v4012, %v4014
      %v4016 = vrot.slane %v4009, %v4015
      %v4017 = vcombine.low %v3426, %v3436
      %v4019 = vunpack.c.l.s4 1935823168
      %v4020 = vunpack.c.0.s8 %v4019
      %v4021 = vlaneseq
      %v4022 = vshrl.u32 %v4021, 7
      %v4023 = vsub.s32 %v4020, %v4022
      %v4024 = vrot.slane %v4017, %v4023
      %v4026 = vunpack.c.l.s4 1935823168
      %v4027 = vunpack.c.0.s8 %v4026
      %v4028 = vlaneseq
      %v4029 = vshrl.u32 %v4028, 7
      %v4030 = vsub.s32 %v4027, %v4029
      %v4031 = vrot.slane %v3434, %v4030
      %v4032 = vcombine.low %v4024, %v4031
      %v4034 = vunpack.c.l.s4 1935823168
      %v4035 = vunpack.c.0.s8 %v4034
      %v4036 = vlaneseq
      %v4037 = vshrl.u32 %v4036, 7
      %v4038 = vsub.s32 %v4035, %v4037
      %v4039 = vrot.slane %v4032, %v4038
      %v4040 = vcombine.low %v3419, %v3435
      %v4041 = vcombine.low %v3433, %v3437
      %v4043 = vunpack.c.l.s4 1935823168
      %v4044 = vunpack.c.0.s8 %v4043
      %v4045 = vlaneseq
      %v4046 = vshrl.u32 %v4045, 7
      %v4047 = vsub.s32 %v4044, %v4046
      %v4048 = vrot.slane %v4040, %v4047
      %v4050 = vunpack.c.l.s4 1935823168
      %v4051 = vunpack.c.0.s8 %v4050
      %v4052 = vlaneseq
      %v4053 = vshrl.u32 %v4052, 7
      %v4054 = vsub.s32 %v4051, %v4053
      %v4055 = vrot.slane %v4041, %v4054
      %v4056 = vcombine.low %v4048, %v4055
      %v4058 = vunpack.c.l.s4 1935823168
      %v4059 = vunpack.c.0.s8 %v4058
      %v4060 = vlaneseq
      %v4061 = vshrl.u32 %v4060, 7
      %v4062 = vsub.s32 %v4059, %v4061
      %v4063 = vrot.slane %v4056, %v4062
      %v4064 = vcombine.low %v3461, %v3483
      %v4066 = vunpack.c.l.s4 1935823168
      %v4067 = vunpack.c.0.s8 %v4066
      %v4068 = vlaneseq
      %v4069 = vshrl.u32 %v4068, 7
      %v4070 = vsub.s32 %v4067, %v4069
      %v4071 = vrot.slane %v4064, %v4070
      %v4073 = vunpack.c.l.s4 1935823168
      %v4074 = vunpack.c.0.s8 %v4073
      %v4075 = vlaneseq
      %v4076 = vshrl.u32 %v4075, 7
      %v4077 = vsub.s32 %v4074, %v4076
      %v4078 = vrot.slane %v3475, %v4077
      %v4079 = vcombine.low %v4071, %v4078
      %v4081 = vunpack.c.l.s4 1935823168
      %v4082 = vunpack.c.0.s8 %v4081
      %v4083 = vlaneseq
      %v4084 = vshrl.u32 %v4083, 7
      %v4085 = vsub.s32 %v4082, %v4084
      %v4086 = vrot.slane %v4079, %v4085
      %v4087 = vcombine.low %v3485, %v3482
      %v4088 = vcombine.low %v3468, %v3484
      %v4090 = vunpack.c.l.s4 1935823168
      %v4091 = vunpack.c.0.s8 %v4090
      %v4092 = vlaneseq
      %v4093 = vshrl.u32 %v4092, 7
      %v4094 = vsub.s32 %v4091, %v4093
      %v4095 = vrot.slane %v4087, %v4094
      %v4097 = vunpack.c.l.s4 1935823168
      %v4098 = vunpack.c.0.s8 %v4097
      %v4099 = vlaneseq
      %v4100 = vshrl.u32 %v4099, 7
      %v4101 = vsub.s32 %v4098, %v4100
      %v4102 = vrot.slane %v4088, %v4101
      %v4103 = vcombine.low %v4095, %v4102
      %v4105 = vunpack.c.l.s4 1935823168
      %v4106 = vunpack.c.0.s8 %v4105
      %v4107 = vlaneseq
      %v4108 = vshrl.u32 %v4107, 7
      %v4109 = vsub.s32 %v4106, %v4108
      %v4110 = vrot.slane %v4103, %v4109
      %v4111 = vcombine.low %v3486, %v3524
      %v4113 = vunpack.c.l.s4 1935823168
      %v4114 = vunpack.c.0.s8 %v4113
      %v4115 = vlaneseq
      %v4116 = vshrl.u32 %v4115, 7
      %v4117 = vsub.s32 %v4114, %v4116
      %v4118 = vrot.slane %v4111, %v4117
      %v4120 = vunpack.c.l.s4 1935823168
      %v4121 = vunpack.c.0.s8 %v4120
      %v4122 = vlaneseq
      %v4123 = vshrl.u32 %v4122, 7
      %v4124 = vsub.s32 %v4121, %v4123
      %v4125 = vrot.slane %v3510, %v4124
      %v4126 = vcombine.low %v4118, %v4125
      %v4128 = vunpack.c.l.s4 1935823168
      %v4129 = vunpack.c.0.s8 %v4128
      %v4130 = vlaneseq
      %v4131 = vshrl.u32 %v4130, 7
      %v4132 = vsub.s32 %v4129, %v4131
      %v4133 = vrot.slane %v4126, %v4132
      %v4134 = vcombine.low %v3532, %v3517
      %v4135 = vcombine.low %v3534, %v3531
      %v4137 = vunpack.c.l.s4 1935823168
      %v4138 = vunpack.c.0.s8 %v4137
      %v4139 = vlaneseq
      %v4140 = vshrl.u32 %v4139, 7
      %v4141 = vsub.s32 %v4138, %v4140
      %v4142 = vrot.slane %v4134, %v4141
      %v4144 = vunpack.c.l.s4 1935823168
      %v4145 = vunpack.c.0.s8 %v4144
      %v4146 = vlaneseq
      %v4147 = vshrl.u32 %v4146, 7
      %v4148 = vsub.s32 %v4145, %v4147
      %v4149 = vrot.slane %v4135, %v4148
      %v4150 = vcombine.low %v4142, %v4149
      %v4152 = vunpack.c.l.s4 1935823168
      %v4153 = vunpack.c.0.s8 %v4152
      %v4154 = vlaneseq
      %v4155 = vshrl.u32 %v4154, 7
      %v4156 = vsub.s32 %v4153, %v4155
      %v4157 = vrot.slane %v4150, %v4156
      %v4158 = vcombine.low %v3533, %v3559
      %v4160 = vunpack.c.l.s4 1935823168
      %v4161 = vunpack.c.0.s8 %v4160
      %v4162 = vlaneseq
      %v4163 = vshrl.u32 %v4162, 7
      %v4164 = vsub.s32 %v4161, %v4163
      %v4165 = vrot.slane %v4158, %v4164
      %v4167 = vunpack.c.l.s4 1935823168
      %v4168 = vunpack.c.0.s8 %v4167
      %v4169 = vlaneseq
      %v4170 = vshrl.u32 %v4169, 7
      %v4171 = vsub.s32 %v4168, %v4170
      %v4172 = vrot.slane %v3535, %v4171
      %v4173 = vcombine.low %v4165, %v4172
      %v4175 = vunpack.c.l.s4 1935823168
      %v4176 = vunpack.c.0.s8 %v4175
      %v4177 = vlaneseq
      %v4178 = vshrl.u32 %v4177, 7
      %v4179 = vsub.s32 %v4176, %v4178
      %v4180 = vrot.slane %v4173, %v4179
      %v4181 = vcombine.low %v3573, %v3583
      %v4182 = vcombine.low %v3581, %v3566
      %v4184 = vunpack.c.l.s4 1935823168
      %v4185 = vunpack.c.0.s8 %v4184
      %v4186 = vlaneseq
      %v4187 = vshrl.u32 %v4186, 7
      %v4188 = vsub.s32 %v4185, %v4187
      %v4189 = vrot.slane %v4181, %v4188
      %v4191 = vunpack.c.l.s4 1935823168
      %v4192 = vunpack.c.0.s8 %v4191
      %v4193 = vlaneseq
      %v4194 = vshrl.u32 %v4193, 7
      %v4195 = vsub.s32 %v4192, %v4194
      %v4196 = vrot.slane %v4182, %v4195
      %v4197 = vcombine.low %v4189, %v4196
      %v4199 = vunpack.c.l.s4 1935823168
      %v4200 = vunpack.c.0.s8 %v4199
      %v4201 = vlaneseq
      %v4202 = vshrl.u32 %v4201, 7
      %v4203 = vsub.s32 %v4200, %v4202
      %v4204 = vrot.slane %v4197, %v4203
      %v4205 = vcombine.low %v3580, %v3584
      %v4207 = vunpack.c.l.s4 1935823168
      %v4208 = vunpack.c.0.s8 %v4207
      %v4209 = vlaneseq
      %v4210 = vshrl.u32 %v4209, 7
      %v4211 = vsub.s32 %v4208, %v4210
      %v4212 = vrot.slane %v4205, %v4211
      %v4214 = vunpack.c.l.s4 1935823168
      %v4215 = vunpack.c.0.s8 %v4214
      %v4216 = vlaneseq
      %v4217 = vshrl.u32 %v4216, 7
      %v4218 = vsub.s32 %v4215, %v4217
      %v4219 = vrot.slane %v3582, %v4218
      %v4220 = vcombine.low %v4212, %v4219
      %v4222 = vunpack.c.l.s4 1935823168
      %v4223 = vunpack.c.0.s8 %v4222
      %v4224 = vlaneseq
      %v4225 = vshrl.u32 %v4224, 7
      %v4226 = vsub.s32 %v4223, %v4225
      %v4227 = vrot.slane %v4220, %v4226
      %v4228 = vcombine.low %v3608, %v3630
      %v4229 = vcombine.low %v3622, %v3632
      %v4231 = vunpack.c.l.s4 1935823168
      %v4232 = vunpack.c.0.s8 %v4231
      %v4233 = vlaneseq
      %v4234 = vshrl.u32 %v4233, 7
      %v4235 = vsub.s32 %v4232, %v4234
      %v4236 = vrot.slane %v4228, %v4235
      %v4238 = vunpack.c.l.s4 1935823168
      %v4239 = vunpack.c.0.s8 %v4238
      %v4240 = vlaneseq
      %v4241 = vshrl.u32 %v4240, 7
      %v4242 = vsub.s32 %v4239, %v4241
      %v4243 = vrot.slane %v4229, %v4242
      %v4244 = vcombine.low %v4236, %v4243
      %v4246 = vunpack.c.l.s4 1935823168
      %v4247 = vunpack.c.0.s8 %v4246
      %v4248 = vlaneseq
      %v4249 = vshrl.u32 %v4248, 7
      %v4250 = vsub.s32 %v4247, %v4249
      %v4251 = vrot.slane %v4244, %v4250
      %v4252 = vcombine.low %v3615, %v3631
      %v4254 = vunpack.c.l.s4 1935823168
      %v4255 = vunpack.c.0.s8 %v4254
      %v4256 = vlaneseq
      %v4257 = vshrl.u32 %v4256, 7
      %v4258 = vsub.s32 %v4255, %v4257
      %v4259 = vrot.slane %v4252, %v4258
      %v4261 = vunpack.c.l.s4 1935823168
      %v4262 = vunpack.c.0.s8 %v4261
      %v4263 = vlaneseq
      %v4264 = vshrl.u32 %v4263, 7
      %v4265 = vsub.s32 %v4262, %v4264
      %v4266 = vrot.slane %v3629, %v4265
      %v4267 = vcombine.low %v4259, %v4266
      %v4269 = vunpack.c.l.s4 1935823168
      %v4270 = vunpack.c.0.s8 %v4269
      %v4271 = vlaneseq
      %v4272 = vshrl.u32 %v4271, 7
      %v4273 = vsub.s32 %v4270, %v4272
      %v4274 = vrot.slane %v4267, %v4273
      %v4275 = vcombine.low %v3633, %v3671
      %v4276 = vcombine.low %v3657, %v3679
      %v4278 = vunpack.c.l.s4 1935823168
      %v4279 = vunpack.c.0.s8 %v4278
      %v4280 = vlaneseq
      %v4281 = vshrl.u32 %v4280, 7
      %v4282 = vsub.s32 %v4279, %v4281
      %v4283 = vrot.slane %v4275, %v4282
      %v4285 = vunpack.c.l.s4 1935823168
      %v4286 = vunpack.c.0.s8 %v4285
      %v4287 = vlaneseq
      %v4288 = vshrl.u32 %v4287, 7
      %v4289 = vsub.s32 %v4286, %v4288
      %v4290 = vrot.slane %v4276, %v4289
      %v4291 = vcombine.low %v4283, %v4290
      %v4293 = vunpack.c.l.s4 1935823168
      %v4294 = vunpack.c.0.s8 %v4293
      %v4295 = vlaneseq
      %v4296 = vshrl.u32 %v4295, 7
      %v4297 = vsub.s32 %v4294, %v4296
      %v4298 = vrot.slane %v4291, %v4297
      %v4299 = vcombine.low %v3681, %v3678
      %v4301 = vunpack.c.l.s4 1935823168
      %v4302 = vunpack.c.0.s8 %v4301
      %v4303 = vlaneseq
      %v4304 = vshrl.u32 %v4303, 7
      %v4305 = vsub.s32 %v4302, %v4304
      %v4306 = vrot.slane %v4299, %v4305
      %v4308 = vunpack.c.l.s4 1935823168
      %v4309 = vunpack.c.0.s8 %v4308
      %v4310 = vlaneseq
      %v4311 = vshrl.u32 %v4310, 7
      %v4312 = vsub.s32 %v4309, %v4311
      %v4313 = vrot.slane %v3664, %v4312
      %v4314 = vcombine.low %v4306, %v4313
      %v4316 = vunpack.c.l.s4 1935823168
      %v4317 = vunpack.c.0.s8 %v4316
      %v4318 = vlaneseq
      %v4319 = vshrl.u32 %v4318, 7
      %v4320 = vsub.s32 %v4317, %v4319
      %v4321 = vrot.slane %v4314, %v4320
      %v4322 = vcombine.low %v3680, %v3706
      %v4323 = vcombine.low %v3682, %v3720
      %v4325 = vunpack.c.l.s4 1935823168
      %v4326 = vunpack.c.0.s8 %v4325
      %v4327 = vlaneseq
      %v4328 = vshrl.u32 %v4327, 7
      %v4329 = vsub.s32 %v4326, %v4328
      %v4330 = vrot.slane %v4322, %v4329
      %v4332 = vunpack.c.l.s4 1935823168
      %v4333 = vunpack.c.0.s8 %v4332
      %v4334 = vlaneseq
      %v4335 = vshrl.u32 %v4334, 7
      %v4336 = vsub.s32 %v4333, %v4335
      %v4337 = vrot.slane %v4323, %v4336
      %v4338 = vcombine.low %v4330, %v4337
      %v4340 = vunpack.c.l.s4 1935823168
      %v4341 = vunpack.c.0.s8 %v4340
      %v4342 = vlaneseq
      %v4343 = vshrl.u32 %v4342, 7
      %v4344 = vsub.s32 %v4341, %v4343
      %v4345 = vrot.slane %v4338, %v4344
      %v4346 = vcombine.low %v3728, %v3713
      %v4348 = vunpack.c.l.s4 1935823168
      %v4349 = vunpack.c.0.s8 %v4348
      %v4350 = vlaneseq
      %v4351 = vshrl.u32 %v4350, 7
      %v4352 = vsub.s32 %v4349, %v4351
      %v4353 = vrot.slane %v4346, %v4352
      %v4355 = vunpack.c.l.s4 1935823168
      %v4356 = vunpack.c.0.s8 %v4355
      %v4357 = vlaneseq
      %v4358 = vshrl.u32 %v4357, 7
      %v4359 = vsub.s32 %v4356, %v4358
      %v4360 = vrot.slane %v3730, %v4359
      %v4361 = vcombine.low %v4353, %v4360
      %v4363 = vunpack.c.l.s4 1935823168
      %v4364 = vunpack.c.0.s8 %v4363
      %v4365 = vlaneseq
      %v4366 = vshrl.u32 %v4365, 7
      %v4367 = vsub.s32 %v4364, %v4366
      %v4368 = vrot.slane %v4361, %v4367
      %v4369 = vcombine.low %v3727, %v3731
      %v4370 = vcombine.low %v3729, %v3755
      %v4372 = vunpack.c.l.s4 1935823168
      %v4373 = vunpack.c.0.s8 %v4372
      %v4374 = vlaneseq
      %v4375 = vshrl.u32 %v4374, 7
      %v4376 = vsub.s32 %v4373, %v4375
      %v4377 = vrot.slane %v4369, %v4376
      %v4379 = vunpack.c.l.s4 1935823168
      %v4380 = vunpack.c.0.s8 %v4379
      %v4381 = vlaneseq
      %v4382 = vshrl.u32 %v4381, 7
      %v4383 = vsub.s32 %v4380, %v4382
      %v4384 = vrot.slane %v4370, %v4383
      %v4385 = vcombine.low %v4377, %v4384
      %v4387 = vunpack.c.l.s4 1935823168
      %v4388 = vunpack.c.0.s8 %v4387
      %v4389 = vlaneseq
      %v4390 = vshrl.u32 %v4389, 7
      %v4391 = vsub.s32 %v4388, %v4390
      %v4392 = vrot.slane %v4385, %v4391
      %v4393 = vcombine.low %v3769, %v3779
      %v4395 = vunpack.c.l.s4 1935823168
      %v4396 = vunpack.c.0.s8 %v4395
      %v4397 = vlaneseq
      %v4398 = vshrl.u32 %v4397, 7
      %v4399 = vsub.s32 %v4396, %v4398
      %v4400 = vrot.slane %v4393, %v4399
      %v4402 = vunpack.c.l.s4 1935823168
      %v4403 = vunpack.c.0.s8 %v4402
      %v4404 = vlaneseq
      %v4405 = vshrl.u32 %v4404, 7
      %v4406 = vsub.s32 %v4403, %v4405
      %v4407 = vrot.slane %v3777, %v4406
      %v4408 = vcombine.low %v4400, %v4407
      %v4410 = vunpack.c.l.s4 1935823168
      %v4411 = vunpack.c.0.s8 %v4410
      %v4412 = vlaneseq
      %v4413 = vshrl.u32 %v4412, 7
      %v4414 = vsub.s32 %v4411, %v4413
      %v4415 = vrot.slane %v4408, %v4414
      %v4416 = vcombine.low %v3762, %v3778
      %v4417 = vcombine.low %v3776, %v3780
      %v4419 = vunpack.c.l.s4 1935823168
      %v4420 = vunpack.c.0.s8 %v4419
      %v4421 = vlaneseq
      %v4422 = vshrl.u32 %v4421, 7
      %v4423 = vsub.s32 %v4420, %v4422
      %v4424 = vrot.slane %v4416, %v4423
      %v4426 = vunpack.c.l.s4 1935823168
      %v4427 = vunpack.c.0.s8 %v4426
      %v4428 = vlaneseq
      %v4429 = vshrl.u32 %v4428, 7
      %v4430 = vsub.s32 %v4427, %v4429
      %v4431 = vrot.slane %v4417, %v4430
      %v4432 = vcombine.low %v4424, %v4431
      %v4434 = vunpack.c.l.s4 1935823168
      %v4435 = vunpack.c.0.s8 %v4434
      %v4436 = vlaneseq
      %v4437 = vshrl.u32 %v4436, 7
      %v4438 = vsub.s32 %v4435, %v4437
      %v4439 = vrot.slane %v4432, %v4438
      %v4440 = vcombine.low %v3804, %v3826
      %v4442 = vunpack.c.l.s4 1935823168
      %v4443 = vunpack.c.0.s8 %v4442
      %v4444 = vlaneseq
      %v4445 = vshrl.u32 %v4444, 7
      %v4446 = vsub.s32 %v4443, %v4445
      %v4447 = vrot.slane %v4440, %v4446
      %v4449 = vunpack.c.l.s4 1935823168
      %v4450 = vunpack.c.0.s8 %v4449
      %v4451 = vlaneseq
      %v4452 = vshrl.u32 %v4451, 7
      %v4453 = vsub.s32 %v4450, %v4452
      %v4454 = vrot.slane %v3818, %v4453
      %v4455 = vcombine.low %v4447, %v4454
      %v4457 = vunpack.c.l.s4 1935823168
      %v4458 = vunpack.c.0.s8 %v4457
      %v4459 = vlaneseq
      %v4460 = vshrl.u32 %v4459, 7
      %v4461 = vsub.s32 %v4458, %v4460
      %v4462 = vrot.slane %v4455, %v4461
      %v4463 = vcombine.low %v3828, %v3825
      %v4464 = vcombine.low %v3811, %v3827
      %v4466 = vunpack.c.l.s4 1935823168
      %v4467 = vunpack.c.0.s8 %v4466
      %v4468 = vlaneseq
      %v4469 = vshrl.u32 %v4468, 7
      %v4470 = vsub.s32 %v4467, %v4469
      %v4471 = vrot.slane %v4463, %v4470
      %v4473 = vunpack.c.l.s4 1935823168
      %v4474 = vunpack.c.0.s8 %v4473
      %v4475 = vlaneseq
      %v4476 = vshrl.u32 %v4475, 7
      %v4477 = vsub.s32 %v4474, %v4476
      %v4478 = vrot.slane %v4464, %v4477
      %v4479 = vcombine.low %v4471, %v4478
      %v4481 = vunpack.c.l.s4 1935823168
      %v4482 = vunpack.c.0.s8 %v4481
      %v4483 = vlaneseq
      %v4484 = vshrl.u32 %v4483, 7
      %v4485 = vsub.s32 %v4482, %v4484
      %v4486 = vrot.slane %v4479, %v4485
      %v4487 = vcombine.low %v3829, %v3851
      %v4489 = vunpack.c.l.s4 1935823168
      %v4490 = vunpack.c.0.s8 %v4489
      %v4491 = vlaneseq
      %v4492 = vshrl.u32 %v4491, 7
      %v4493 = vsub.s32 %v4490, %v4492
      %v4494 = vrot.slane %v4487, %v4493
      %v4496 = vunpack.c.l.s4 1935823168
      %v4497 = vunpack.c.0.s8 %v4496
      %v4498 = vlaneseq
      %v4499 = vshrl.u32 %v4498, 7
      %v4500 = vsub.s32 %v4497, %v4499
      %v4501 = vrot.slane %v3844, %v4500
      %v4502 = vcombine.low %v4494, %v4501
      %v4504 = vunpack.c.l.s4 1935823168
      %v4505 = vunpack.c.0.s8 %v4504
      %v4506 = vlaneseq
      %v4507 = vshrl.u32 %v4506, 7
      %v4508 = vsub.s32 %v4505, %v4507
      %v4509 = vrot.slane %v4502, %v4508
      %vm4538 = vcmask 60416
      %4539 = vst.msk [vmem:[%s194] sm:$0xf] %vm4538, %v3875
      %vm4540 = vcmask 59392
      %4541 = vst.msk [vmem:[%s194 + $0x4] sm:$0x7] %vm4540, %v3898
      %4542 = vst.msk [vmem:[%s194 + $0x8] sm:$0xf] %vm4538, %v3922
      %4543 = vst.msk [vmem:[%s194 + $0xc] sm:$0x7] %vm4540, %v3945
      %4544 = vst.msk [vmem:[%s194 + $0x10] sm:$0xf] %vm4538, %v3969
      %4545 = vst.msk [vmem:[%s194 + $0x14] sm:$0x7] %vm4540, %v3992
      %4546 = vst.msk [vmem:[%s194 + $0x18] sm:$0xf] %vm4538, %v4016
      %4547 = vst.msk [vmem:[%s194 + $0x1c] sm:$0x7] %vm4540, %v4039
      %4548 = vst.msk [vmem:[%s194 + $0x20] sm:$0xf] %vm4538, %v4063
      %4549 = vst.msk [vmem:[%s194 + $0x24] sm:$0x7] %vm4540, %v4086
      %4550 = vst.msk [vmem:[%s194 + $0x28] sm:$0xf] %vm4538, %v4110
      %4551 = vst.msk [vmem:[%s194 + $0x2c] sm:$0x7] %vm4540, %v4133
      %4552 = vst.msk [vmem:[%s194 + $0x30] sm:$0xf] %vm4538, %v4157
      %4553 = vst.msk [vmem:[%s194 + $0x34] sm:$0x7] %vm4540, %v4180
      %4554 = vst.msk [vmem:[%s194 + $0x38] sm:$0xf] %vm4538, %v4204
      %4555 = vst.msk [vmem:[%s194 + $0x3c] sm:$0x7] %vm4540, %v4227
      %4556 = vst.msk [vmem:[%s194 + $0x40] sm:$0xf] %vm4538, %v4251
      %4557 = vst.msk [vmem:[%s194 + $0x44] sm:$0x7] %vm4540, %v4274
      %4558 = vst.msk [vmem:[%s194 + $0x48] sm:$0xf] %vm4538, %v4298
      %4559 = vst.msk [vmem:[%s194 + $0x4c] sm:$0x7] %vm4540, %v4321
      %4560 = vst.msk [vmem:[%s194 + $0x50] sm:$0xf] %vm4538, %v4345
      %4561 = vst.msk [vmem:[%s194 + $0x54] sm:$0x7] %vm4540, %v4368
      %4562 = vst.msk [vmem:[%s194 + $0x58] sm:$0xf] %vm4538, %v4392
      %4563 = vst.msk [vmem:[%s194 + $0x5c] sm:$0x7] %vm4540, %v4415
      %4564 = vst.msk [vmem:[%s194 + $0x60] sm:$0xf] %vm4538, %v4439
      %4565 = vst.msk [vmem:[%s194 + $0x64] sm:$0x7] %vm4540, %v4462
      %4566 = vst.msk [vmem:[%s194 + $0x68] sm:$0xf] %vm4538, %v4486
      %4567 = vst.msk [vmem:[%s194 + $0x6c] sm:$0x7] %vm4540, %v4509
      %s4568 = smul.u32 14, %s19
      %p4569 = scmp.lt.s32.totalorder %s18, 1
      %s4570 = scalar_select %p4569, %s18, 1
      %p4571 = scmp.lt.s32.totalorder %s4568, 13
      %s4572 = scalar_select %p4571, %s4568, 13
      %s4573 = smul.addr %s4572, 2
      %s4574 = smul.addr %s4570, 28
      %s4575 = sadd.s32 %s4573, %s4574
      %s4576 = smul.addr %s4575, 4
      %s4577 = scalar_lea.vmem %s3, %s4576
      // Predicated region
      $region33: #{tpu_custom_call.1} parent=31 // pred_check
        %p4578 = pneg %p114
      $region34: #{tpu_custom_call.1} parent=31 // pred_check_branch
        %4580 = sbr.rel (%p4578) target = $region36
      $region35: #{tpu_custom_call.1} parent=31 // pred_region
        %s4581 = smul.u32 14, %s19
      $region36: #{tpu_custom_call.1} parent=31 // pred_fallthru
        _
    $region32: #{tpu_custom_call.1} parent=5 // pred_fallthru
      _
    %p4582 = scmp.le.s32.totalorder 2, %s9
    // Predicated region
    $region37: #{tpu_custom_call.1} parent=5 // pred_check
      %p4583 = pneg %p4582
    $region38: #{tpu_custom_call.1} parent=5 // pred_check_branch
      %4585 = sbr.rel (%p4583) target = $region40
    $region39: #{tpu_custom_call.1} parent=5 // pred_region
      %s4586 = ssub.s32 %s9, 2
      // Predicated region
      $region41: #{tpu_custom_call.1} parent=39 // pred_check
        %p4587 = pneg %p120
      $region42: #{tpu_custom_call.1} parent=39 // pred_check_branch
        %4589 = sbr.rel (%p4587) target = $region44
      $region43: #{tpu_custom_call.1} parent=39 // pred_region
        %s4590 = smul.u32 14, %s21
        %p4591 = scmp.lt.s32.totalorder %s20, 1
        %s4592 = scalar_select %p4591, %s20, 1
        %p4593 = scmp.lt.s32.totalorder %s4590, 13
        %s4594 = scalar_select %p4593, %s4590, 13
        %s4595 = smul.addr %s4594, 2
        %s4596 = smul.addr %s4592, 28
        %s4597 = sadd.s32 %s4595, %s4596
        %s4598 = smul.addr %s4597, 4
        %s4599 = scalar_lea.vmem %s3, %s4598
      $region44: #{tpu_custom_call.1} parent=39 // pred_fallthru
        _
    $region40: #{tpu_custom_call.1} parent=5 // pred_fallthru
      _
  $region6: #{tpu_custom_call.1} parent=0 // loop_footer
    %s13 = sadd.s32 1, %s9
  $region7: #{tpu_custom_call.1} parent=0 // loop_footer_branch
    %8 = sbr.rel target = $region3
  $region8: #{tpu_custom_call.1} parent=0 // loop_exit
    _

</llo_original>
